<compile_context>
chip_gen: v7x
topology: tpu7x:2x2x1
jax: 0.10.0
libtpu: 0.0.40
codegen_flags: <defaults>
</compile_context>

<pallas_src>
import math
from functools import partial

import jax
import jax.numpy as jnp
from jax.experimental import pallas as pl
from jax.experimental.pallas import tpu as pltpu

# ---- static module configuration -------------------------------------------
CHANNELS = 32
NUM_HEAD_CHANNELS = 8
NUM_HEADS = CHANNELS // NUM_HEAD_CHANNELS        # 4
NUM_GROUPS = 8
EPS = 1e-5
RESCALE = 1.0

BATCH = 2
HEIGHT = 8
WIDTH = 8
SEQ = HEIGHT * WIDTH                             # 64

HEAD_CHUNK = 2   # heads processed together through softmax (bounds vreg use)


# ---- Pallas kernel -----------------------------------------------------------
def attention_block_kernel(
    x_ref,       # (Bb, C, S)  input / residual, channel-on-sublane
    wqkv_ref,    # (3C, C)     fused q/k/v weight (scale + gamma folded in)
    bqkv_ref,    # (3C, 1)     fused q/k/v bias   (scale + beta folded in)
    wp_ref,      # (C, C)      output projection weight (applied as Wp @ attn)
    bp_ref,      # (C, 1)
    agrp_ref,    # (C, C)      group-averaging matrix: 1/(Cg*S) within a group
    o_ref,       # (Bb, C, S)
):
    Bb, C, S = x_ref.shape
    NH = NUM_HEADS
    Dh = C // NH

    x = x_ref[...].astype(jnp.float32)                                 # (Bb, C, S)

    # ---- GroupNorm statistics: lane reductions + ONE tiny group matmul -----
    stat_cols = []
    for b in range(Bb):
        xb = x[b]                                                      # (C, S)
        stat_cols.append(jnp.sum(xb, axis=1, keepdims=True))           # sum x   (C,1)
        stat_cols.append(jnp.sum(xb * xb, axis=1, keepdims=True))      # sum x^2 (C,1)
    stats = jnp.concatenate(stat_cols, axis=1)                         # (C, 2*Bb)
    gstats = jnp.dot(agrp_ref[...], stats,
                     preferred_element_type=jnp.float32)               # (C, 2*Bb)

    # ---- normalize; build lane-dense (C, Bb*S) slab -------------------------
    h_cols = []
    for b in range(Bb):
        mean_c = gstats[:, 2 * b:2 * b + 1]                            # (C, 1)
        ex2_c = gstats[:, 2 * b + 1:2 * b + 2]                         # (C, 1)
        var_c = jnp.maximum(ex2_c - mean_c * mean_c, 0.0)              # clamp >= 0
        rstd_c = jax.lax.rsqrt(var_c + EPS)
        h_cols.append((x[b] - mean_c) * rstd_c)                        # (C, S)
    h = jnp.concatenate(h_cols, axis=1)                                # (C, Bb*S)

    # ---- fused q/k/v projection: one lane-dense MXU matmul ------------------
    qkv = jnp.dot(wqkv_ref[...], h,
                  preferred_element_type=jnp.float32) + bqkv_ref[...]  # (3C, Bb*S)

    # ---- multi-head attention, chunked over heads ---------------------------
    attn_slabs = []
    for b in range(Bb):
        c0, c1 = b * S, (b + 1) * S
        q_b = qkv[0 * C:1 * C, c0:c1].reshape(NH, Dh, S)
        k_b = qkv[1 * C:2 * C, c0:c1].reshape(NH, Dh, S)
        v_b = qkv[2 * C:3 * C, c0:c1].reshape(NH, Dh, S)
        head_outs = []
        for h0 in range(0, NH, HEAD_CHUNK):
            qc = jnp.transpose(q_b[h0:h0 + HEAD_CHUNK], (0, 2, 1))     # (HC, S, Dh)
            kc = k_b[h0:h0 + HEAD_CHUNK]                               # (HC, Dh, S)
            vc = v_b[h0:h0 + HEAD_CHUNK]                               # (HC, Dh, S)
            # attention scale already folded into Wq/bq
            scores = jnp.einsum("hsd,hdt->hst", qc, kc,
                                preferred_element_type=jnp.float32)    # (HC, S, S)
            scores = scores - jnp.max(scores, axis=-1, keepdims=True)
            p = jnp.exp(scores)                                        # unnormalized
            denom = jnp.sum(p, axis=-1)                                # (HC, S)
            attn_un = jnp.einsum("hdt,hst->hds", vc, p,
                                 preferred_element_type=jnp.float32)   # (HC, Dh, S)
            # deferred normalization on the small PV result (EUP reciprocal)
            inv = pl.reciprocal(denom, approx=True)[:, None, :]        # (HC, 1, S)
            head_outs.append(attn_un * inv)
        attn_b = jnp.concatenate(head_outs, axis=0).reshape(C, S)      # (C, S)
        attn_slabs.append(attn_b)
    attn = jnp.concatenate(attn_slabs, axis=1)                         # (C, Bb*S)

    # ---- output projection + residual (+ optional rescale) ------------------
    out = jnp.dot(wp_ref[...], attn,
                  preferred_element_type=jnp.float32) + bp_ref[...]    # (C, Bb*S)
    x_slab = jnp.concatenate([x[b] for b in range(Bb)], axis=1)        # (C, Bb*S)
    out = out + x_slab
    if RESCALE != 1.0:
        out = out * jnp.float32(1.0 / RESCALE)
    for b in range(Bb):
        o_ref[b] = out[:, b * S:(b + 1) * S].astype(o_ref.dtype)


# ---- one-time parameter preparation (hoisted out of the per-call path) ------
def fuse_params(params):
    C = CHANNELS
    scale = 1.0 / math.sqrt(C / NUM_HEADS)
    gamma = params["gamma"]
    beta = params["beta"]

    # Fuse q/k/v weights; fold attention scale into Wq/bq and the GroupNorm
    # affine into the fused weight/bias:
    #   q = Wq.(xn*gamma + beta) + bq = (Wq*gamma).xn + (Wq@beta + bq)
    w_qkv = jnp.concatenate(
        [params["wq"] * scale, params["wk"], params["wv"]], axis=0)     # (3C, C)
    b_qkv = jnp.concatenate(
        [params["bq"] * scale, params["bk"], params["bv"]], axis=0)     # (3C,)
    b_qkv = (b_qkv + w_qkv @ beta).reshape(3 * C, 1)                    # beta fold (pre-gamma W)
    w_qkv = w_qkv * gamma[None, :]                                      # gamma fold

    wp = params["wp"]                       # applied as Wp @ attn (channel-major)
    bp = params["bp"].reshape(C, 1)

    # Group-averaging matrix: A[c, c'] = 1/(Cg*S) if same group (applied to
    # lane-reduced sums -> produces group mean / group E[x^2]).
    Cg = C // NUM_GROUPS
    grp = jnp.arange(C) // Cg
    a_group = (grp[:, None] == grp[None, :]).astype(jnp.float32) / float(Cg * SEQ)

    return {"w_qkv": w_qkv, "b_qkv": b_qkv, "wp": wp, "bp": bp, "a_group": a_group}


def _has_multiple_tensorcores():
    """True only for chips with 2 TensorCores (v7x); v5e/v6e keep grid-free."""
    try:
        kind = jax.devices()[0].device_kind.lower()
    except Exception:
        return False
    return ("v7" in kind) or ("7x" in kind)


# ---- wrapper ----------------------------------------------------------------
@partial(jax.jit, static_argnames=("use_grid",))
def attention_block(x_nchw, fused, use_grid=False):
    """x_nchw: (B, C, H, W) float32. Returns (B, C, H, W)."""
    B, C, H, W = x_nchw.shape
    S = H * W
    assert C % NUM_GROUPS == 0 and C % NUM_HEADS == 0

    # NCHW -> (B, C, S) is a pure (free) reshape; kernel consumes/produces the
    # channel-on-sublane layout directly — no transposes around the call.
    x_bcs = x_nchw.reshape(B, C, S)
    out_shape = jax.ShapeDtypeStruct((B, C, S), x_nchw.dtype)
    args = (x_bcs, fused["w_qkv"], fused["b_qkv"],
            fused["wp"], fused["bp"], fused["a_group"])

    if use_grid and B > 1:
        # v7x: one batch per grid step; the two TensorCores split the work.
        def full(shape):
            return pl.BlockSpec(shape, lambda b, _s=shape: (0,) * len(_s))

        out_bcs = pl.pallas_call(
            attention_block_kernel,
            out_shape=out_shape,
            grid=(B,),
            in_specs=[
                pl.BlockSpec((1, C, S), lambda b: (b, 0, 0)),
                full((3 * C, C)),
                full((3 * C, 1)),
                full((C, C)),
                full((C, 1)),
                full((C, C)),
            ],
            out_specs=pl.BlockSpec((1, C, S), lambda b: (b, 0, 0)),
            input_output_aliases={0: 0},
            compiler_params=pltpu.CompilerParams(
                dimension_semantics=("parallel",)),
        )(*args)
    else:
        # v5e / v6e (single TensorCore): grid-free, everything in VMEM.
        vmem = pl.BlockSpec(memory_space=pltpu.MemorySpace.VMEM)
        out_bcs = pl.pallas_call(
            attention_block_kernel,
            out_shape=out_shape,
            in_specs=[vmem] * 6,
            out_specs=vmem,
            input_output_aliases={0: 0},
        )(*args)

    return out_bcs.reshape(B, C, H, W)   # free reshape back to NCHW


# ---- pure-JAX reference (for correctness check) -----------------------------
def attention_block_ref(x_nchw, params):
    B, C, H, W = x_nchw.shape
    S = H * W
    xg = x_nchw.reshape(B, NUM_GROUPS, C // NUM_GROUPS, H, W)
    mean = xg.mean(axis=(2, 3, 4), keepdims=True)
    var = xg.var(axis=(2, 3, 4), keepdims=True)
    xn = (xg - mean) / jnp.sqrt(var + EPS)
    xn = xn.reshape(B, C, H, W)
    xn = xn * params["gamma"][None, :, None, None] + params["beta"][None, :, None, None]

    h = jnp.transpose(xn.reshape(B, C, S), (0, 2, 1))  # (B, S, C)
    q = h @ params["wq"].T + params["bq"]
    k = h @ params["wk"].T + params["bk"]
    v = h @ params["wv"].T + params["bv"]

    Dh = C // NUM_HEADS
    scale = 1.0 / math.sqrt(C / NUM_HEADS)

    def split(t):
        return jnp.transpose(t.reshape(B, S, NUM_HEADS, Dh), (0, 2, 1, 3))  # (B, Hd, S, Dh)

    qh, kh, vh = split(q), split(k), split(v)
    scores = jnp.einsum("bhqd,bhkd->bhqk", qh, kh) * scale
    probs = jax.nn.softmax(scores, axis=-1)
    out = jnp.einsum("bhqk,bhkd->bhqd", probs, vh)
    out = jnp.transpose(out, (0, 2, 1, 3)).reshape(B, S, C)
    out = out @ params["wp"].T + params["bp"]
    out_nchw = jnp.transpose(out, (0, 2, 1)).reshape(B, C, H, W)
    return (out_nchw + x_nchw) / RESCALE


# ---- main -------------------------------------------------------------------
if __name__ == "__main__":
    key = jax.random.PRNGKey(0)
    keys = jax.random.split(key, 10)

    x = jax.random.normal(keys[0], (BATCH, CHANNELS, HEIGHT, WIDTH), dtype=jnp.float32)

    params = {
        "wq": 0.05 * jax.random.normal(keys[1], (CHANNELS, CHANNELS), dtype=jnp.float32),
        "bq": 0.01 * jax.random.normal(keys[2], (CHANNELS,), dtype=jnp.float32),
        "wk": 0.05 * jax.random.normal(keys[3], (CHANNELS, CHANNELS), dtype=jnp.float32),
        "bk": 0.01 * jax.random.normal(keys[4], (CHANNELS,), dtype=jnp.float32),
        "wv": 0.05 * jax.random.normal(keys[5], (CHANNELS, CHANNELS), dtype=jnp.float32),
        "bv": 0.01 * jax.random.normal(keys[6], (CHANNELS,), dtype=jnp.float32),
        "wp": 0.05 * jax.random.normal(keys[7], (CHANNELS, CHANNELS), dtype=jnp.float32),
        "bp": 0.01 * jax.random.normal(keys[8], (CHANNELS,), dtype=jnp.float32),
        "gamma": 1.0 + 0.1 * jax.random.normal(keys[9], (CHANNELS,), dtype=jnp.float32),
        "beta": jnp.linspace(-0.1, 0.1, CHANNELS, dtype=jnp.float32),
    }

    fused = jax.tree.map(jax.block_until_ready, fuse_params(params))   # one-time prep
    use_grid = _has_multiple_tensorcores()

    out = jax.block_until_ready(attention_block(x, fused, use_grid=use_grid))
    ref = jax.block_until_ready(attention_block_ref(x, params))

    assert out.shape == x.shape and out.dtype == x.dtype
    max_err = float(jnp.max(jnp.abs(out - ref)))
    assert max_err < 1e-4, f"mismatch vs reference: {max_err}"
    print("KERNEL_OK")
</pallas_src>

<mosaic_0001>
module attributes {stable_mosaic.version = 11 : i64} {
  func.func @attention_block_kernel(%arg0: memref<2x32x64xf32, #tpu.memory_space<vmem>>, %arg1: memref<96x32xf32, #tpu.memory_space<vmem>>, %arg2: memref<96x1xf32, #tpu.memory_space<vmem>>, %arg3: memref<32x32xf32, #tpu.memory_space<vmem>>, %arg4: memref<32x1xf32, #tpu.memory_space<vmem>>, %arg5: memref<32x32xf32, #tpu.memory_space<vmem>>, %arg6: memref<2x32x64xf32, #tpu.memory_space<vmem>>) attributes {dimension_semantics = [], scalar_prefetch = 0 : i64, scratch_operands = 0 : i64, tpu.core_type = #tpu.core_type<tc>} {
    %c0 = arith.constant 0 : index
    %c0_0 = arith.constant 0 : index
    %c0_1 = arith.constant 0 : index
    %0 = vector.load %arg0[%c0, %c0_0, %c0_1] : memref<2x32x64xf32, #tpu.memory_space<vmem>>, vector<2x32x64xf32>
    %1 = vector.extract_strided_slice %0 {offsets = [0, 0, 0], sizes = [1, 32, 64], strides = [1, 1, 1]} : vector<2x32x64xf32> to vector<1x32x64xf32>
    %2 = vector.shape_cast %1 : vector<1x32x64xf32> to vector<32x64xf32>
    %cst = arith.constant dense<0.000000e+00> : vector<32xf32>
    %3 = vector.multi_reduction <add>, %2, %cst [1] : vector<32x64xf32> to vector<32xf32>
    %4 = vector.shape_cast %3 : vector<32xf32> to vector<32x1xf32>
    %5 = arith.mulf %2, %2 : vector<32x64xf32>
    %cst_2 = arith.constant dense<0.000000e+00> : vector<32xf32>
    %6 = vector.multi_reduction <add>, %5, %cst_2 [1] : vector<32x64xf32> to vector<32xf32>
    %7 = vector.shape_cast %6 : vector<32xf32> to vector<32x1xf32>
    %8 = vector.extract_strided_slice %0 {offsets = [1, 0, 0], sizes = [1, 32, 64], strides = [1, 1, 1]} : vector<2x32x64xf32> to vector<1x32x64xf32>
    %9 = vector.shape_cast %8 : vector<1x32x64xf32> to vector<32x64xf32>
    %cst_3 = arith.constant dense<0.000000e+00> : vector<32xf32>
    %10 = vector.multi_reduction <add>, %9, %cst_3 [1] : vector<32x64xf32> to vector<32xf32>
    %11 = vector.shape_cast %10 : vector<32xf32> to vector<32x1xf32>
    %12 = arith.mulf %9, %9 : vector<32x64xf32>
    %cst_4 = arith.constant dense<0.000000e+00> : vector<32xf32>
    %13 = vector.multi_reduction <add>, %12, %cst_4 [1] : vector<32x64xf32> to vector<32xf32>
    %14 = vector.shape_cast %13 : vector<32xf32> to vector<32x1xf32>
    %15 = tpu.concatenate %4, %7, %11, %14 in 1 : vector<32x1xf32>, vector<32x1xf32>, vector<32x1xf32>, vector<32x1xf32> -> vector<32x4xf32>
    %c0_5 = arith.constant 0 : index
    %c0_6 = arith.constant 0 : index
    %16 = vector.load %arg5[%c0_5, %c0_6] : memref<32x32xf32, #tpu.memory_space<vmem>>, vector<32x32xf32>
    %cst_7 = arith.constant dense<0.000000e+00> : vector<32x4xf32>
    %17 = tpu.matmul %16, %15, %cst_7 {dimension_numbers = #tpu.dot_dimension_numbers<[1], [0], [0], [1], [0, 0, 1, 1], [], []>} : vector<32x32xf32>, vector<32x4xf32>, vector<32x4xf32> -> vector<32x4xf32>
    %18 = vector.extract_strided_slice %17 {offsets = [0, 0], sizes = [32, 1], strides = [1, 1]} : vector<32x4xf32> to vector<32x1xf32>
    %19 = vector.extract_strided_slice %17 {offsets = [0, 1], sizes = [32, 1], strides = [1, 1]} : vector<32x4xf32> to vector<32x1xf32>
    %20 = arith.mulf %18, %18 : vector<32x1xf32>
    %21 = arith.subf %19, %20 : vector<32x1xf32>
    %cst_8 = arith.constant 0.000000e+00 : f32
    %22 = vector.broadcast %cst_8 : f32 to vector<32x1xf32>
    %23 = arith.maximumf %21, %22 : vector<32x1xf32>
    %cst_9 = arith.constant 9.99999974E-6 : f32
    %24 = vector.broadcast %cst_9 : f32 to vector<32x1xf32>
    %25 = arith.addf %23, %24 : vector<32x1xf32>
    %26 = math.rsqrt %25 : vector<32x1xf32>
    %27 = vector.extract_strided_slice %0 {offsets = [0, 0, 0], sizes = [1, 32, 64], strides = [1, 1, 1]} : vector<2x32x64xf32> to vector<1x32x64xf32>
    %28 = vector.shape_cast %27 : vector<1x32x64xf32> to vector<32x64xf32>
    %29 = vector.broadcast %18 : vector<32x1xf32> to vector<32x64xf32>
    %30 = arith.subf %28, %29 : vector<32x64xf32>
    %31 = vector.broadcast %26 : vector<32x1xf32> to vector<32x64xf32>
    %32 = arith.mulf %30, %31 : vector<32x64xf32>
    %33 = vector.extract_strided_slice %17 {offsets = [0, 2], sizes = [32, 1], strides = [1, 1]} : vector<32x4xf32> to vector<32x1xf32>
    %34 = vector.extract_strided_slice %17 {offsets = [0, 3], sizes = [32, 1], strides = [1, 1]} : vector<32x4xf32> to vector<32x1xf32>
    %35 = arith.mulf %33, %33 : vector<32x1xf32>
    %36 = arith.subf %34, %35 : vector<32x1xf32>
    %cst_10 = arith.constant 0.000000e+00 : f32
    %37 = vector.broadcast %cst_10 : f32 to vector<32x1xf32>
    %38 = arith.maximumf %36, %37 : vector<32x1xf32>
    %cst_11 = arith.constant 9.99999974E-6 : f32
    %39 = vector.broadcast %cst_11 : f32 to vector<32x1xf32>
    %40 = arith.addf %38, %39 : vector<32x1xf32>
    %41 = math.rsqrt %40 : vector<32x1xf32>
    %42 = vector.extract_strided_slice %0 {offsets = [1, 0, 0], sizes = [1, 32, 64], strides = [1, 1, 1]} : vector<2x32x64xf32> to vector<1x32x64xf32>
    %43 = vector.shape_cast %42 : vector<1x32x64xf32> to vector<32x64xf32>
    %44 = vector.broadcast %33 : vector<32x1xf32> to vector<32x64xf32>
    %45 = arith.subf %43, %44 : vector<32x64xf32>
    %46 = vector.broadcast %41 : vector<32x1xf32> to vector<32x64xf32>
    %47 = arith.mulf %45, %46 : vector<32x64xf32>
    %48 = tpu.concatenate %32, %47 in 1 : vector<32x64xf32>, vector<32x64xf32> -> vector<32x128xf32>
    %c0_12 = arith.constant 0 : index
    %c0_13 = arith.constant 0 : index
    %49 = vector.load %arg1[%c0_12, %c0_13] : memref<96x32xf32, #tpu.memory_space<vmem>>, vector<96x32xf32>
    %cst_14 = arith.constant dense<0.000000e+00> : vector<96x128xf32>
    %50 = tpu.matmul %49, %48, %cst_14 {dimension_numbers = #tpu.dot_dimension_numbers<[1], [0], [0], [1], [0, 0, 1, 1], [], []>} : vector<96x32xf32>, vector<32x128xf32>, vector<96x128xf32> -> vector<96x128xf32>
    %c0_15 = arith.constant 0 : index
    %c0_16 = arith.constant 0 : index
    %51 = vector.load %arg2[%c0_15, %c0_16] : memref<96x1xf32, #tpu.memory_space<vmem>>, vector<96x1xf32>
    %52 = vector.broadcast %51 : vector<96x1xf32> to vector<96x128xf32>
    %53 = arith.addf %50, %52 : vector<96x128xf32>
    %54 = vector.extract_strided_slice %53 {offsets = [0, 0], sizes = [32, 64], strides = [1, 1]} : vector<96x128xf32> to vector<32x64xf32>
    %55 = vector.shape_cast %54 : vector<32x64xf32> to vector<4x8x64xf32>
    %56 = vector.extract_strided_slice %53 {offsets = [32, 0], sizes = [32, 64], strides = [1, 1]} : vector<96x128xf32> to vector<32x64xf32>
    %57 = vector.shape_cast %56 : vector<32x64xf32> to vector<4x8x64xf32>
    %58 = vector.extract_strided_slice %53 {offsets = [64, 0], sizes = [32, 64], strides = [1, 1]} : vector<96x128xf32> to vector<32x64xf32>
    %59 = vector.shape_cast %58 : vector<32x64xf32> to vector<4x8x64xf32>
    %60 = vector.extract_strided_slice %55 {offsets = [0, 0, 0], sizes = [2, 8, 64], strides = [1, 1, 1]} : vector<4x8x64xf32> to vector<2x8x64xf32>
    %61 = tpu.transpose %60, [0, 2, 1] : vector<2x8x64xf32> -> vector<2x64x8xf32>
    %62 = vector.extract_strided_slice %57 {offsets = [0, 0, 0], sizes = [2, 8, 64], strides = [1, 1, 1]} : vector<4x8x64xf32> to vector<2x8x64xf32>
    %63 = vector.extract_strided_slice %59 {offsets = [0, 0, 0], sizes = [2, 8, 64], strides = [1, 1, 1]} : vector<4x8x64xf32> to vector<2x8x64xf32>
    "tpu.trace_start"() <{level = 10 : i32, message = "hsd,hdt->hst"}> : () -> ()
    %cst_17 = arith.constant dense<0.000000e+00> : vector<2x64x64xf32>
    %64 = tpu.matmul %61, %62, %cst_17 {dimension_numbers = #tpu.dot_dimension_numbers<[2], [1], [1], [2], [0, 0, 0, 1, 1, 2], [0], [0]>} : vector<2x64x8xf32>, vector<2x8x64xf32>, vector<2x64x64xf32> -> vector<2x64x64xf32>
    "tpu.trace_stop"() : () -> ()
    %cst_18 = arith.constant dense<0xFF800000> : vector<2x64xf32>
    %65 = vector.multi_reduction <maximumf>, %64, %cst_18 [2] : vector<2x64x64xf32> to vector<2x64xf32>
    %66 = vector.shape_cast %65 : vector<2x64xf32> to vector<2x64x1xf32>
    %67 = vector.broadcast %66 : vector<2x64x1xf32> to vector<2x64x64xf32>
    %68 = arith.subf %64, %67 : vector<2x64x64xf32>
    %69 = math.exp %68 : vector<2x64x64xf32>
    %cst_19 = arith.constant dense<0.000000e+00> : vector<2x64xf32>
    %70 = vector.multi_reduction <add>, %69, %cst_19 [2] : vector<2x64x64xf32> to vector<2x64xf32>
    "tpu.trace_start"() <{level = 10 : i32, message = "hdt,hst->hds"}> : () -> ()
    %cst_20 = arith.constant dense<0.000000e+00> : vector<2x8x64xf32>
    %71 = tpu.matmul %63, %69, %cst_20 {dimension_numbers = #tpu.dot_dimension_numbers<[2], [2], [1], [1], [0, 0, 0, 1, 1, 1], [0], [0]>} : vector<2x8x64xf32>, vector<2x64x64xf32>, vector<2x8x64xf32> -> vector<2x8x64xf32>
    "tpu.trace_stop"() : () -> ()
    %72 = tpu.reciprocal %70 {approx = true} : vector<2x64xf32> -> vector<2x64xf32>
    %73 = vector.shape_cast %72 : vector<2x64xf32> to vector<2x1x64xf32>
    %74 = vector.broadcast %73 : vector<2x1x64xf32> to vector<2x8x64xf32>
    %75 = arith.mulf %71, %74 : vector<2x8x64xf32>
    %76 = vector.extract_strided_slice %55 {offsets = [2, 0, 0], sizes = [2, 8, 64], strides = [1, 1, 1]} : vector<4x8x64xf32> to vector<2x8x64xf32>
    %77 = tpu.transpose %76, [0, 2, 1] : vector<2x8x64xf32> -> vector<2x64x8xf32>
    %78 = vector.extract_strided_slice %57 {offsets = [2, 0, 0], sizes = [2, 8, 64], strides = [1, 1, 1]} : vector<4x8x64xf32> to vector<2x8x64xf32>
    %79 = vector.extract_strided_slice %59 {offsets = [2, 0, 0], sizes = [2, 8, 64], strides = [1, 1, 1]} : vector<4x8x64xf32> to vector<2x8x64xf32>
    "tpu.trace_start"() <{level = 10 : i32, message = "hsd,hdt->hst"}> : () -> ()
    %cst_21 = arith.constant dense<0.000000e+00> : vector<2x64x64xf32>
    %80 = tpu.matmul %77, %78, %cst_21 {dimension_numbers = #tpu.dot_dimension_numbers<[2], [1], [1], [2], [0, 0, 0, 1, 1, 2], [0], [0]>} : vector<2x64x8xf32>, vector<2x8x64xf32>, vector<2x64x64xf32> -> vector<2x64x64xf32>
    "tpu.trace_stop"() : () -> ()
    %cst_22 = arith.constant dense<0xFF800000> : vector<2x64xf32>
    %81 = vector.multi_reduction <maximumf>, %80, %cst_22 [2] : vector<2x64x64xf32> to vector<2x64xf32>
    %82 = vector.shape_cast %81 : vector<2x64xf32> to vector<2x64x1xf32>
    %83 = vector.broadcast %82 : vector<2x64x1xf32> to vector<2x64x64xf32>
    %84 = arith.subf %80, %83 : vector<2x64x64xf32>
    %85 = math.exp %84 : vector<2x64x64xf32>
    %cst_23 = arith.constant dense<0.000000e+00> : vector<2x64xf32>
    %86 = vector.multi_reduction <add>, %85, %cst_23 [2] : vector<2x64x64xf32> to vector<2x64xf32>
    "tpu.trace_start"() <{level = 10 : i32, message = "hdt,hst->hds"}> : () -> ()
    %cst_24 = arith.constant dense<0.000000e+00> : vector<2x8x64xf32>
    %87 = tpu.matmul %79, %85, %cst_24 {dimension_numbers = #tpu.dot_dimension_numbers<[2], [2], [1], [1], [0, 0, 0, 1, 1, 1], [0], [0]>} : vector<2x8x64xf32>, vector<2x64x64xf32>, vector<2x8x64xf32> -> vector<2x8x64xf32>
    "tpu.trace_stop"() : () -> ()
    %88 = tpu.reciprocal %86 {approx = true} : vector<2x64xf32> -> vector<2x64xf32>
    %89 = vector.shape_cast %88 : vector<2x64xf32> to vector<2x1x64xf32>
    %90 = vector.broadcast %89 : vector<2x1x64xf32> to vector<2x8x64xf32>
    %91 = arith.mulf %87, %90 : vector<2x8x64xf32>
    %92 = tpu.concatenate %75, %91 in 0 : vector<2x8x64xf32>, vector<2x8x64xf32> -> vector<4x8x64xf32>
    %93 = vector.shape_cast %92 : vector<4x8x64xf32> to vector<32x64xf32>
    %94 = vector.extract_strided_slice %53 {offsets = [0, 64], sizes = [32, 64], strides = [1, 1]} : vector<96x128xf32> to vector<32x64xf32>
    %95 = vector.shape_cast %94 : vector<32x64xf32> to vector<4x8x64xf32>
    %96 = vector.extract_strided_slice %53 {offsets = [32, 64], sizes = [32, 64], strides = [1, 1]} : vector<96x128xf32> to vector<32x64xf32>
    %97 = vector.shape_cast %96 : vector<32x64xf32> to vector<4x8x64xf32>
    %98 = vector.extract_strided_slice %53 {offsets = [64, 64], sizes = [32, 64], strides = [1, 1]} : vector<96x128xf32> to vector<32x64xf32>
    %99 = vector.shape_cast %98 : vector<32x64xf32> to vector<4x8x64xf32>
    %100 = vector.extract_strided_slice %95 {offsets = [0, 0, 0], sizes = [2, 8, 64], strides = [1, 1, 1]} : vector<4x8x64xf32> to vector<2x8x64xf32>
    %101 = tpu.transpose %100, [0, 2, 1] : vector<2x8x64xf32> -> vector<2x64x8xf32>
    %102 = vector.extract_strided_slice %97 {offsets = [0, 0, 0], sizes = [2, 8, 64], strides = [1, 1, 1]} : vector<4x8x64xf32> to vector<2x8x64xf32>
    %103 = vector.extract_strided_slice %99 {offsets = [0, 0, 0], sizes = [2, 8, 64], strides = [1, 1, 1]} : vector<4x8x64xf32> to vector<2x8x64xf32>
    "tpu.trace_start"() <{level = 10 : i32, message = "hsd,hdt->hst"}> : () -> ()
    %cst_25 = arith.constant dense<0.000000e+00> : vector<2x64x64xf32>
    %104 = tpu.matmul %101, %102, %cst_25 {dimension_numbers = #tpu.dot_dimension_numbers<[2], [1], [1], [2], [0, 0, 0, 1, 1, 2], [0], [0]>} : vector<2x64x8xf32>, vector<2x8x64xf32>, vector<2x64x64xf32> -> vector<2x64x64xf32>
    "tpu.trace_stop"() : () -> ()
    %cst_26 = arith.constant dense<0xFF800000> : vector<2x64xf32>
    %105 = vector.multi_reduction <maximumf>, %104, %cst_26 [2] : vector<2x64x64xf32> to vector<2x64xf32>
    %106 = vector.shape_cast %105 : vector<2x64xf32> to vector<2x64x1xf32>
    %107 = vector.broadcast %106 : vector<2x64x1xf32> to vector<2x64x64xf32>
    %108 = arith.subf %104, %107 : vector<2x64x64xf32>
    %109 = math.exp %108 : vector<2x64x64xf32>
    %cst_27 = arith.constant dense<0.000000e+00> : vector<2x64xf32>
    %110 = vector.multi_reduction <add>, %109, %cst_27 [2] : vector<2x64x64xf32> to vector<2x64xf32>
    "tpu.trace_start"() <{level = 10 : i32, message = "hdt,hst->hds"}> : () -> ()
    %cst_28 = arith.constant dense<0.000000e+00> : vector<2x8x64xf32>
    %111 = tpu.matmul %103, %109, %cst_28 {dimension_numbers = #tpu.dot_dimension_numbers<[2], [2], [1], [1], [0, 0, 0, 1, 1, 1], [0], [0]>} : vector<2x8x64xf32>, vector<2x64x64xf32>, vector<2x8x64xf32> -> vector<2x8x64xf32>
    "tpu.trace_stop"() : () -> ()
    %112 = tpu.reciprocal %110 {approx = true} : vector<2x64xf32> -> vector<2x64xf32>
    %113 = vector.shape_cast %112 : vector<2x64xf32> to vector<2x1x64xf32>
    %114 = vector.broadcast %113 : vector<2x1x64xf32> to vector<2x8x64xf32>
    %115 = arith.mulf %111, %114 : vector<2x8x64xf32>
    %116 = vector.extract_strided_slice %95 {offsets = [2, 0, 0], sizes = [2, 8, 64], strides = [1, 1, 1]} : vector<4x8x64xf32> to vector<2x8x64xf32>
    %117 = tpu.transpose %116, [0, 2, 1] : vector<2x8x64xf32> -> vector<2x64x8xf32>
    %118 = vector.extract_strided_slice %97 {offsets = [2, 0, 0], sizes = [2, 8, 64], strides = [1, 1, 1]} : vector<4x8x64xf32> to vector<2x8x64xf32>
    %119 = vector.extract_strided_slice %99 {offsets = [2, 0, 0], sizes = [2, 8, 64], strides = [1, 1, 1]} : vector<4x8x64xf32> to vector<2x8x64xf32>
    "tpu.trace_start"() <{level = 10 : i32, message = "hsd,hdt->hst"}> : () -> ()
    %cst_29 = arith.constant dense<0.000000e+00> : vector<2x64x64xf32>
    %120 = tpu.matmul %117, %118, %cst_29 {dimension_numbers = #tpu.dot_dimension_numbers<[2], [1], [1], [2], [0, 0, 0, 1, 1, 2], [0], [0]>} : vector<2x64x8xf32>, vector<2x8x64xf32>, vector<2x64x64xf32> -> vector<2x64x64xf32>
    "tpu.trace_stop"() : () -> ()
    %cst_30 = arith.constant dense<0xFF800000> : vector<2x64xf32>
    %121 = vector.multi_reduction <maximumf>, %120, %cst_30 [2] : vector<2x64x64xf32> to vector<2x64xf32>
    %122 = vector.shape_cast %121 : vector<2x64xf32> to vector<2x64x1xf32>
    %123 = vector.broadcast %122 : vector<2x64x1xf32> to vector<2x64x64xf32>
    %124 = arith.subf %120, %123 : vector<2x64x64xf32>
    %125 = math.exp %124 : vector<2x64x64xf32>
    %cst_31 = arith.constant dense<0.000000e+00> : vector<2x64xf32>
    %126 = vector.multi_reduction <add>, %125, %cst_31 [2] : vector<2x64x64xf32> to vector<2x64xf32>
    "tpu.trace_start"() <{level = 10 : i32, message = "hdt,hst->hds"}> : () -> ()
    %cst_32 = arith.constant dense<0.000000e+00> : vector<2x8x64xf32>
    %127 = tpu.matmul %119, %125, %cst_32 {dimension_numbers = #tpu.dot_dimension_numbers<[2], [2], [1], [1], [0, 0, 0, 1, 1, 1], [0], [0]>} : vector<2x8x64xf32>, vector<2x64x64xf32>, vector<2x8x64xf32> -> vector<2x8x64xf32>
    "tpu.trace_stop"() : () -> ()
    %128 = tpu.reciprocal %126 {approx = true} : vector<2x64xf32> -> vector<2x64xf32>
    %129 = vector.shape_cast %128 : vector<2x64xf32> to vector<2x1x64xf32>
    %130 = vector.broadcast %129 : vector<2x1x64xf32> to vector<2x8x64xf32>
    %131 = arith.mulf %127, %130 : vector<2x8x64xf32>
    %132 = tpu.concatenate %115, %131 in 0 : vector<2x8x64xf32>, vector<2x8x64xf32> -> vector<4x8x64xf32>
    %133 = vector.shape_cast %132 : vector<4x8x64xf32> to vector<32x64xf32>
    %134 = tpu.concatenate %93, %133 in 1 : vector<32x64xf32>, vector<32x64xf32> -> vector<32x128xf32>
    %c0_33 = arith.constant 0 : index
    %c0_34 = arith.constant 0 : index
    %135 = vector.load %arg3[%c0_33, %c0_34] : memref<32x32xf32, #tpu.memory_space<vmem>>, vector<32x32xf32>
    %cst_35 = arith.constant dense<0.000000e+00> : vector<32x128xf32>
    %136 = tpu.matmul %135, %134, %cst_35 {dimension_numbers = #tpu.dot_dimension_numbers<[1], [0], [0], [1], [0, 0, 1, 1], [], []>} : vector<32x32xf32>, vector<32x128xf32>, vector<32x128xf32> -> vector<32x128xf32>
    %c0_36 = arith.constant 0 : index
    %c0_37 = arith.constant 0 : index
    %137 = vector.load %arg4[%c0_36, %c0_37] : memref<32x1xf32, #tpu.memory_space<vmem>>, vector<32x1xf32>
    %138 = vector.broadcast %137 : vector<32x1xf32> to vector<32x128xf32>
    %139 = arith.addf %136, %138 : vector<32x128xf32>
    %140 = vector.extract_strided_slice %0 {offsets = [0, 0, 0], sizes = [1, 32, 64], strides = [1, 1, 1]} : vector<2x32x64xf32> to vector<1x32x64xf32>
    %141 = vector.shape_cast %140 : vector<1x32x64xf32> to vector<32x64xf32>
    %142 = vector.extract_strided_slice %0 {offsets = [1, 0, 0], sizes = [1, 32, 64], strides = [1, 1, 1]} : vector<2x32x64xf32> to vector<1x32x64xf32>
    %143 = vector.shape_cast %142 : vector<1x32x64xf32> to vector<32x64xf32>
    %144 = tpu.concatenate %141, %143 in 1 : vector<32x64xf32>, vector<32x64xf32> -> vector<32x128xf32>
    %145 = arith.addf %139, %144 : vector<32x128xf32>
    %146 = vector.extract_strided_slice %145 {offsets = [0, 0], sizes = [32, 64], strides = [1, 1]} : vector<32x128xf32> to vector<32x64xf32>
    %c0_38 = arith.constant 0 : index
    %c0_39 = arith.constant 0 : index
    %c0_40 = arith.constant 0 : index
    %147 = vector.load %arg6[%c0_38, %c0_39, %c0_40] : memref<2x32x64xf32, #tpu.memory_space<vmem>>, vector<1x32x64xf32>
    %148 = vector.shape_cast %147 : vector<1x32x64xf32> to vector<32x64xf32>
    %149 = vector.shape_cast %146 : vector<32x64xf32> to vector<1x32x64xf32>
    tpu.vector_store %arg6[%c0_38, %c0_39, %c0_40], %149 {strides = array<i32>} : memref<2x32x64xf32, #tpu.memory_space<vmem>>, vector<1x32x64xf32>,
    %150 = vector.extract_strided_slice %145 {offsets = [0, 64], sizes = [32, 64], strides = [1, 1]} : vector<32x128xf32> to vector<32x64xf32>
    %c1 = arith.constant 1 : index
    %c0_41 = arith.constant 0 : index
    %c0_42 = arith.constant 0 : index
    %151 = vector.load %arg6[%c1, %c0_41, %c0_42] : memref<2x32x64xf32, #tpu.memory_space<vmem>>, vector<1x32x64xf32>
    %152 = vector.shape_cast %151 : vector<1x32x64xf32> to vector<32x64xf32>
    %153 = vector.shape_cast %150 : vector<32x64xf32> to vector<1x32x64xf32>
    tpu.vector_store %arg6[%c1, %c0_41, %c0_42], %153 {strides = array<i32>} : memref<2x32x64xf32, #tpu.memory_space<vmem>>, vector<1x32x64xf32>,
    return
  }
}

</mosaic_0001>

<llo_original>
// kernel: attention_block.1
$region0: #{attention_block.1}
  #allocation0 [shape = 'u32[]', space=smem, size = 0x4, offset = 0x4, fixed_abs, tag = 'smem constant byte address 0x4 - core index']
  #allocation1 [shape = 'u32[144,128]{1,0:T(1,128)}', space=vmem, size = 0x12000, scoped, tag = 'internal scratch']
  %s0 = inlined_call_operand.vmem [shape: f32[2,32,64], index: 0, kind: input, shape index: {}, may-alias: {0,6}]
  %s1 = inlined_call_operand.vmem [shape: f32[96,32], index: 1, kind: input, shape index: {}]
  %s2 = inlined_call_operand.vmem [shape: f32[96,1], index: 2, kind: input, shape index: {}]
  %s3 = inlined_call_operand.vmem [shape: f32[32,32], index: 3, kind: input, shape index: {}]
  %s4 = inlined_call_operand.vmem [shape: f32[32,1], index: 4, kind: input, shape index: {}]
  %s5 = inlined_call_operand.vmem [shape: f32[32,32], index: 5, kind: input, shape index: {}]
  %s6 = inlined_call_operand.vmem [shape: f32[2,32,64], index: 6, kind: output, shape index: {}, may-alias: {0,6}]
  %s7 = sld [smem:[#allocation0]]
  $region34: #{attention_block.1} parent=0
    _
  %s9 = ssub.s32 1, %s7
  %s10 = scalar_select 0, %s9, %s7
  // Predicated region
  $region2: #{attention_block.1} parent=0 // pred_check
    _
  $region3: #{attention_block.1} parent=0 // pred_check_branch
    %12 = sbr.rel (0) target = $region5
  $region4: #{attention_block.1} parent=0 // pred_region
    _
  $region5: #{attention_block.1} parent=0 // pred_fallthru
    _
  // Predicated region
  $region6: #{attention_block.1} parent=0 // pred_check
    _
  $region7: #{attention_block.1} parent=0 // pred_check_branch
    %14 = sbr.rel (0) target = $region9
  $region8: #{attention_block.1} parent=0 // pred_region
    _
  $region9: #{attention_block.1} parent=0 // pred_fallthru
    _
  // Predicated region
  $region10: #{attention_block.1} parent=0 // pred_check
    _
  $region11: #{attention_block.1} parent=0 // pred_check_branch
    %16 = sbr.rel (0) target = $region13
  $region12: #{attention_block.1} parent=0 // pred_region
    _
  $region13: #{attention_block.1} parent=0 // pred_fallthru
    _
  // Predicated region
  $region14: #{attention_block.1} parent=0 // pred_check
    _
  $region15: #{attention_block.1} parent=0 // pred_check_branch
    %18 = sbr.rel (0) target = $region17
  $region16: #{attention_block.1} parent=0 // pred_region
    _
  $region17: #{attention_block.1} parent=0 // pred_fallthru
    _
  // Predicated region
  $region18: #{attention_block.1} parent=0 // pred_check
    _
  $region19: #{attention_block.1} parent=0 // pred_check_branch
    %20 = sbr.rel (0) target = $region21
  $region20: #{attention_block.1} parent=0 // pred_region
    _
  $region21: #{attention_block.1} parent=0 // pred_fallthru
    _
  // Predicated region
  $region22: #{attention_block.1} parent=0 // pred_check
    _
  $region23: #{attention_block.1} parent=0 // pred_check_branch
    %22 = sbr.rel (0) target = $region25
  $region24: #{attention_block.1} parent=0 // pred_region
    _
  $region25: #{attention_block.1} parent=0 // pred_fallthru
    _
  %v23 = vld [vmem:[%s0] sm:$0xff]
  %v24 = vld [vmem:[%s0 + $0x8] sm:$0xff]
  %v25 = vld [vmem:[%s0 + $0x10] sm:$0xff]
  %v26 = vld [vmem:[%s0 + $0x18] sm:$0xff]
  %v27 = vld [vmem:[%s0 + $0x20] sm:$0xff]
  %v28 = vld [vmem:[%s0 + $0x28] sm:$0xff]
  %v29 = vld [vmem:[%s0 + $0x30] sm:$0xff]
  %v30 = vld [vmem:[%s0 + $0x38] sm:$0xff]
  %vm31 = vcmask 523264
  %v32 = vsel %vm31, %v23, 0.0
  %33 = vadd.xlane.f32.xlu0 %v32
  %v34 = vpop.xlane.xlu0 %33
  %v35 = vsel %vm31, %v24, 0.0
  %36 = vadd.xlane.f32.xlu0 %v35
  %v37 = vpop.xlane.xlu0 %36
  %v38 = vsel %vm31, %v25, 0.0
  %39 = vadd.xlane.f32.xlu0 %v38
  %v40 = vpop.xlane.xlu0 %39
  %v41 = vsel %vm31, %v26, 0.0
  %42 = vadd.xlane.f32.xlu0 %v41
  %v43 = vpop.xlane.xlu0 %42
  %v44 = vmul.f32 %v23, %v23
  %v45 = vmul.f32 %v24, %v24
  %v46 = vmul.f32 %v25, %v25
  %v47 = vmul.f32 %v26, %v26
  %v48 = vsel %vm31, %v44, 0.0
  %49 = vadd.xlane.f32.xlu0 %v48
  %v50 = vpop.xlane.xlu0 %49
  %v51 = vsel %vm31, %v45, 0.0
  %52 = vadd.xlane.f32.xlu0 %v51
  %v53 = vpop.xlane.xlu0 %52
  %v54 = vsel %vm31, %v46, 0.0
  %55 = vadd.xlane.f32.xlu0 %v54
  %v56 = vpop.xlane.xlu0 %55
  %v57 = vsel %vm31, %v47, 0.0
  %58 = vadd.xlane.f32.xlu0 %v57
  %v59 = vpop.xlane.xlu0 %58
  %v60 = vsel %vm31, %v27, 0.0
  %61 = vadd.xlane.f32.xlu0 %v60
  %v62 = vpop.xlane.xlu0 %61
  %v63 = vsel %vm31, %v28, 0.0
  %64 = vadd.xlane.f32.xlu0 %v63
  %v65 = vpop.xlane.xlu0 %64
  %v66 = vsel %vm31, %v29, 0.0
  %67 = vadd.xlane.f32.xlu0 %v66
  %v68 = vpop.xlane.xlu0 %67
  %v69 = vsel %vm31, %v30, 0.0
  %70 = vadd.xlane.f32.xlu0 %v69
  %v71 = vpop.xlane.xlu0 %70
  %v72 = vmul.f32 %v27, %v27
  %v73 = vmul.f32 %v28, %v28
  %v74 = vmul.f32 %v29, %v29
  %v75 = vmul.f32 %v30, %v30
  %v76 = vsel %vm31, %v72, 0.0
  %77 = vadd.xlane.f32.xlu0 %v76
  %v78 = vpop.xlane.xlu0 %77
  %v79 = vsel %vm31, %v73, 0.0
  %80 = vadd.xlane.f32.xlu0 %v79
  %v81 = vpop.xlane.xlu0 %80
  %v82 = vsel %vm31, %v74, 0.0
  %83 = vadd.xlane.f32.xlu0 %v82
  %v84 = vpop.xlane.xlu0 %83
  %v85 = vsel %vm31, %v75, 0.0
  %86 = vadd.xlane.f32.xlu0 %v85
  %v87 = vpop.xlane.xlu0 %86
  %vm88 = vcmask 7168
  %v89 = vsel %vm88, %v34, %v50
  %v90 = vsel %vm88, %v37, %v53
  %v91 = vsel %vm88, %v40, %v56
  %v92 = vsel %vm88, %v43, %v59
  %vm93 = vcmask 15360
  %v94 = vsel %vm93, %v89, %v62
  %v95 = vsel %vm93, %v90, %v65
  %v96 = vsel %vm93, %v91, %v68
  %v97 = vsel %vm93, %v92, %v71
  %vm98 = vcmask 23552
  %v99 = vsel %vm98, %v94, %v78
  %v100 = vsel %vm98, %v95, %v81
  %v101 = vsel %vm98, %v96, %v84
  %v102 = vsel %vm98, %v97, %v87
  %v103 = vld [vmem:[%s5] sm:$0xff]
  %v104 = vld [vmem:[%s5 + $0x8] sm:$0xff]
  %v105 = vld [vmem:[%s5 + $0x10] sm:$0xff]
  %v106 = vld [vmem:[%s5 + $0x18] sm:$0xff]
  %vm107 = vcmask 261120
  %v109 = vsel %vm107, %v103, 0
  %v112 = vsel %vm107, %v104, 0
  %v115 = vsel %vm107, %v105, 0
  %v118 = vsel %vm107, %v106, 0
  %120 = vmatprep.subr.mxu0 0.0
  %121 = vmatpush1.msra.mxu0 %v99
  %122 = vmatprep.subr.mxu0 0.0
  %123 = vmatpush1.msra.mxu0 %v100
  %124 = vmatprep.subr.mxu0 0.0
  %125 = vmatpush1.msra.mxu0 %v101
  %126 = vmatprep.subr.mxu0 0.0
  %127 = vmatpush1.msra.mxu0 %v102
  %128 = vmatprep.subr.mxu0 0.0
  %129 = vmatpush1.msra.mxu0 0.0
  %130 = vmatprep.subr.mxu0 0.0
  %131 = vmatpush1.msra.mxu0 0.0
  %132 = vmatprep.subr.mxu0 0.0
  %133 = vmatpush1.msra.mxu0 0.0
  %134 = vmatprep.subr.mxu0 0.0
  %135 = vmatpush1.msra.mxu0 0.0
  %136 = vmatprep.subr.mxu0 0.0
  %137 = vmatpush1.msra.mxu0 0.0
  %138 = vmatprep.subr.mxu0 0.0
  %139 = vmatpush1.msra.mxu0 0.0
  %140 = vmatprep.subr.mxu0 0.0
  %141 = vmatpush1.msra.mxu0 0.0
  %142 = vmatprep.subr.mxu0 0.0
  %143 = vmatpush1.msra.mxu0 0.0
  %144 = vmatprep.subr.mxu0 0.0
  %145 = vmatpush1.msra.mxu0 0.0
  %146 = vmatprep.subr.mxu0 0.0
  %147 = vmatpush1.msra.mxu0 0.0
  %148 = vmatprep.subr.mxu0 0.0
  %149 = vmatpush1.msra.mxu0 0.0
  %150 = vmatprep.subr.mxu0 0.0
  %151 = vmatpush1.msra.mxu0 0.0
  %152 = vmatprep.subr.mxu0 0.0
  %153 = vmatpush1.msra.mxu0 0.0
  %154 = vmatprep.subr.mxu0 0.0
  %155 = vmatpush1.msra.mxu0 0.0
  %156 = vmatprep.subr.mxu0 0.0
  %157 = vmatpush1.msra.mxu0 0.0
  %158 = vmatprep.subr.mxu0 0.0
  %159 = vmatpush1.msra.mxu0 0.0
  %160 = vmatprep.subr.mxu0 0.0
  %161 = vmatpush1.msra.mxu0 0.0
  %162 = vmatprep.subr.mxu0 0.0
  %163 = vmatpush1.msra.mxu0 0.0
  %164 = vmatprep.subr.mxu0 0.0
  %165 = vmatpush1.msra.mxu0 0.0
  %166 = vmatprep.subr.mxu0 0.0
  %167 = vmatpush1.msra.mxu0 0.0
  %168 = vmatprep.subr.mxu0 0.0
  %169 = vmatpush1.msra.mxu0 0.0
  %170 = vmatprep.subr.mxu0 0.0
  %171 = vmatpush1.msra.mxu0 0.0
  %172 = vmatprep.subr.mxu0 0.0
  %173 = vmatpush1.msra.mxu0 0.0
  %174 = vmatprep.subr.mxu0 0.0
  %175 = vmatpush1.msra.mxu0 0.0
  %176 = vmatprep.subr.mxu0 0.0
  %177 = vmatpush1.msra.mxu0 0.0
  %178 = vmatprep.subr.mxu0 0.0
  %179 = vmatpush1.msra.mxu0 0.0
  %180 = vmatprep.subr.mxu0 0.0
  %181 = vmatpush1.msra.mxu0 0.0
  %182 = vmatprep.subr.mxu0 0.0
  %183 = vmatpush1.msra.mxu0 0.0
  %184 = vmatprep.mubr.f32.mxu0 0.0
  %185 = vmatmul.mubr.f32.gmra.mrb[0].mxu0 %v109
  %v186 = vpop.f32.mrb[0].mxu0
  %v187 = vadd.f32 0.0, %v186
  %v188 = vpop.f32.mrb[0].mxu0
  %189 = vmatprep.mubr.f32.mxu0 0.0
  %190 = vmatmul.mubr.f32.gmra.mrb[0].mxu0 %v112
  %v191 = vpop.f32.mrb[0].mxu0
  %v192 = vadd.f32 0.0, %v191
  %v193 = vpop.f32.mrb[0].mxu0
  %194 = vmatprep.mubr.f32.mxu0 0.0
  %195 = vmatmul.mubr.f32.gmra.mrb[0].mxu0 %v115
  %v196 = vpop.f32.mrb[0].mxu0
  %v197 = vadd.f32 0.0, %v196
  %v198 = vpop.f32.mrb[0].mxu0
  %199 = vmatprep.mubr.f32.mxu0 0.0
  %200 = vmatmul.mubr.f32.gmra.mrb[0].mxu0 %v118
  %v201 = vpop.f32.mrb[0].mxu0
  %v202 = vadd.f32 0.0, %v201
  %v203 = vpop.f32.mrb[0].mxu0
  %204 = vdwg.mxu0
  %v205 = vmul.f32 %v187, %v187
  %v206 = vmul.f32 %v192, %v192
  %v207 = vmul.f32 %v197, %v197
  %v208 = vmul.f32 %v202, %v202
  %213 = vrot.lane.b32.xlu0 %v205, 1
  %v214 = vpop.permute.xlu0 %213
  %215 = vrot.lane.b32.xlu0 %v206, 1
  %v216 = vpop.permute.xlu0 %215
  %217 = vrot.lane.b32.xlu0 %v207, 1
  %v218 = vpop.permute.xlu0 %217
  %219 = vrot.lane.b32.xlu0 %v208, 1
  %v220 = vpop.permute.xlu0 %219
  %v225 = vsub.f32 %v187, %v214
  %v226 = vsub.f32 %v192, %v216
  %v227 = vsub.f32 %v197, %v218
  %v228 = vsub.f32 %v202, %v220
  %v229 = vmax.f32 %v225, 0.0
  %v230 = vmax.f32 %v226, 0.0
  %v231 = vmax.f32 %v227, 0.0
  %v232 = vmax.f32 %v228, 0.0
  %v233 = vadd.f32 %v229, 1e-05
  %v234 = vadd.f32 %v230, 1e-05
  %v235 = vadd.f32 %v231, 1e-05
  %v236 = vadd.f32 %v232, 1e-05
  %v237 = vrsqrt.pop %v233
  %v238 = vrsqrt.pop %v234
  %v239 = vrsqrt.pop %v235
  %v240 = vrsqrt.pop %v236
  %242 = vset.pattern.permute.xlu0 0
  %243 = vperm.xlu0 %242, %v187
  %v244 = vpop.permute.xlu0 %243
  %247 = vset.pattern.permute.xlu0 0
  %248 = vperm.xlu0 %247, %v192
  %v249 = vpop.permute.xlu0 %248
  %252 = vset.pattern.permute.xlu0 0
  %253 = vperm.xlu0 %252, %v197
  %v254 = vpop.permute.xlu0 %253
  %257 = vset.pattern.permute.xlu0 0
  %258 = vperm.xlu0 %257, %v202
  %v259 = vpop.permute.xlu0 %258
  %v261 = vsub.f32 %v23, %v244
  %v262 = vsub.f32 %v24, %v249
  %v263 = vsub.f32 %v25, %v254
  %v264 = vsub.f32 %v26, %v259
  %266 = vset.pattern.permute.xlu0 1
  %267 = vperm.xlu0 %266, %v237
  %v268 = vpop.permute.xlu0 %267
  %271 = vset.pattern.permute.xlu0 1
  %272 = vperm.xlu0 %271, %v238
  %v273 = vpop.permute.xlu0 %272
  %276 = vset.pattern.permute.xlu0 1
  %277 = vperm.xlu0 %276, %v239
  %v278 = vpop.permute.xlu0 %277
  %281 = vset.pattern.permute.xlu0 1
  %282 = vperm.xlu0 %281, %v240
  %v283 = vpop.permute.xlu0 %282
  %v285 = vmul.f32 %v261, %v268
  %v286 = vmul.f32 %v262, %v273
  %v287 = vmul.f32 %v263, %v278
  %v288 = vmul.f32 %v264, %v283
  %289 = vset.pattern.permute.xlu0 2
  %290 = vperm.xlu0 %289, %v187
  %v291 = vpop.permute.xlu0 %290
  %293 = vset.pattern.permute.xlu0 2
  %294 = vperm.xlu0 %293, %v192
  %v295 = vpop.permute.xlu0 %294
  %297 = vset.pattern.permute.xlu0 2
  %298 = vperm.xlu0 %297, %v197
  %v299 = vpop.permute.xlu0 %298
  %301 = vset.pattern.permute.xlu0 2
  %302 = vperm.xlu0 %301, %v202
  %v303 = vpop.permute.xlu0 %302
  %v305 = vsub.f32 %v27, %v291
  %v306 = vsub.f32 %v28, %v295
  %v307 = vsub.f32 %v29, %v299
  %v308 = vsub.f32 %v30, %v303
  %309 = vset.pattern.permute.xlu0 3
  %310 = vperm.xlu0 %309, %v237
  %v311 = vpop.permute.xlu0 %310
  %313 = vset.pattern.permute.xlu0 3
  %314 = vperm.xlu0 %313, %v238
  %v315 = vpop.permute.xlu0 %314
  %317 = vset.pattern.permute.xlu0 3
  %318 = vperm.xlu0 %317, %v239
  %v319 = vpop.permute.xlu0 %318
  %321 = vset.pattern.permute.xlu0 3
  %322 = vperm.xlu0 %321, %v240
  %v323 = vpop.permute.xlu0 %322
  %v325 = vmul.f32 %v305, %v311
  %v326 = vmul.f32 %v306, %v315
  %v327 = vmul.f32 %v307, %v319
  %v328 = vmul.f32 %v308, %v323
  %333 = vrot.lane.b32.xlu0 %v325, 64
  %v334 = vpop.permute.xlu0 %333
  %335 = vrot.lane.b32.xlu0 %v326, 64
  %v336 = vpop.permute.xlu0 %335
  %337 = vrot.lane.b32.xlu0 %v327, 64
  %v338 = vpop.permute.xlu0 %337
  %339 = vrot.lane.b32.xlu0 %v328, 64
  %v340 = vpop.permute.xlu0 %339
  %v345 = vsel %vm31, %v285, %v334
  %v346 = vsel %vm31, %v286, %v336
  %v347 = vsel %vm31, %v287, %v338
  %v348 = vsel %vm31, %v288, %v340
  %v349 = vld [vmem:[%s1] sm:$0xff]
  %v350 = vld [vmem:[%s1 + $0x8] sm:$0xff]
  %v351 = vld [vmem:[%s1 + $0x10] sm:$0xff]
  %v352 = vld [vmem:[%s1 + $0x18] sm:$0xff]
  %v353 = vld [vmem:[%s1 + $0x20] sm:$0xff]
  %v354 = vld [vmem:[%s1 + $0x28] sm:$0xff]
  %v355 = vld [vmem:[%s1 + $0x30] sm:$0xff]
  %v356 = vld [vmem:[%s1 + $0x38] sm:$0xff]
  %v357 = vld [vmem:[%s1 + $0x40] sm:$0xff]
  %v358 = vld [vmem:[%s1 + $0x48] sm:$0xff]
  %v359 = vld [vmem:[%s1 + $0x50] sm:$0xff]
  %v360 = vld [vmem:[%s1 + $0x58] sm:$0xff]
  %v361 = vld [vmem:[%s2] sm:$0xff]
  %v362 = vld [vmem:[%s2 + $0x8] sm:$0xff]
  %v363 = vld [vmem:[%s2 + $0x10] sm:$0xff]
  %v364 = vld [vmem:[%s2 + $0x18] sm:$0xff]
  %v365 = vld [vmem:[%s2 + $0x20] sm:$0xff]
  %v366 = vld [vmem:[%s2 + $0x28] sm:$0xff]
  %v367 = vld [vmem:[%s2 + $0x30] sm:$0xff]
  %v368 = vld [vmem:[%s2 + $0x38] sm:$0xff]
  %v369 = vld [vmem:[%s2 + $0x40] sm:$0xff]
  %v370 = vld [vmem:[%s2 + $0x48] sm:$0xff]
  %v371 = vld [vmem:[%s2 + $0x50] sm:$0xff]
  %v372 = vld [vmem:[%s2 + $0x58] sm:$0xff]
  %374 = vset.pattern.permute.xlu0 0
  %375 = vperm.xlu0 %374, %v361
  %v376 = vpop.permute.xlu0 %375
  %379 = vset.pattern.permute.xlu0 0
  %380 = vperm.xlu0 %379, %v362
  %v381 = vpop.permute.xlu0 %380
  %384 = vset.pattern.permute.xlu0 0
  %385 = vperm.xlu0 %384, %v363
  %v386 = vpop.permute.xlu0 %385
  %389 = vset.pattern.permute.xlu0 0
  %390 = vperm.xlu0 %389, %v364
  %v391 = vpop.permute.xlu0 %390
  %394 = vset.pattern.permute.xlu0 0
  %395 = vperm.xlu0 %394, %v365
  %v396 = vpop.permute.xlu0 %395
  %399 = vset.pattern.permute.xlu0 0
  %400 = vperm.xlu0 %399, %v366
  %v401 = vpop.permute.xlu0 %400
  %404 = vset.pattern.permute.xlu0 0
  %405 = vperm.xlu0 %404, %v367
  %v406 = vpop.permute.xlu0 %405
  %409 = vset.pattern.permute.xlu0 0
  %410 = vperm.xlu0 %409, %v368
  %v411 = vpop.permute.xlu0 %410
  %414 = vset.pattern.permute.xlu0 0
  %415 = vperm.xlu0 %414, %v369
  %v416 = vpop.permute.xlu0 %415
  %419 = vset.pattern.permute.xlu0 0
  %420 = vperm.xlu0 %419, %v370
  %v421 = vpop.permute.xlu0 %420
  %424 = vset.pattern.permute.xlu0 0
  %425 = vperm.xlu0 %424, %v371
  %v426 = vpop.permute.xlu0 %425
  %429 = vset.pattern.permute.xlu0 0
  %430 = vperm.xlu0 %429, %v372
  %v431 = vpop.permute.xlu0 %430
  %v434 = vsel %vm107, %v349, 0
  %v437 = vsel %vm107, %v350, 0
  %v440 = vsel %vm107, %v351, 0
  %v443 = vsel %vm107, %v352, 0
  %v446 = vsel %vm107, %v353, 0
  %v449 = vsel %vm107, %v354, 0
  %v452 = vsel %vm107, %v355, 0
  %v455 = vsel %vm107, %v356, 0
  %v458 = vsel %vm107, %v357, 0
  %v461 = vsel %vm107, %v358, 0
  %v464 = vsel %vm107, %v359, 0
  %v467 = vsel %vm107, %v360, 0
  %469 = vmatprep.subr.mxu0 0.0
  %470 = vmatpush1.msra.mxu0 %v345
  %471 = vmatprep.subr.mxu0 0.0
  %472 = vmatpush1.msra.mxu0 %v346
  %473 = vmatprep.subr.mxu0 0.0
  %474 = vmatpush1.msra.mxu0 %v347
  %475 = vmatprep.subr.mxu0 0.0
  %476 = vmatpush1.msra.mxu0 %v348
  %477 = vmatprep.subr.mxu0 0.0
  %478 = vmatpush1.msra.mxu0 0.0
  %479 = vmatprep.subr.mxu0 0.0
  %480 = vmatpush1.msra.mxu0 0.0
  %481 = vmatprep.subr.mxu0 0.0
  %482 = vmatpush1.msra.mxu0 0.0
  %483 = vmatprep.subr.mxu0 0.0
  %484 = vmatpush1.msra.mxu0 0.0
  %485 = vmatprep.subr.mxu0 0.0
  %486 = vmatpush1.msra.mxu0 0.0
  %487 = vmatprep.subr.mxu0 0.0
  %488 = vmatpush1.msra.mxu0 0.0
  %489 = vmatprep.subr.mxu0 0.0
  %490 = vmatpush1.msra.mxu0 0.0
  %491 = vmatprep.subr.mxu0 0.0
  %492 = vmatpush1.msra.mxu0 0.0
  %493 = vmatprep.subr.mxu0 0.0
  %494 = vmatpush1.msra.mxu0 0.0
  %495 = vmatprep.subr.mxu0 0.0
  %496 = vmatpush1.msra.mxu0 0.0
  %497 = vmatprep.subr.mxu0 0.0
  %498 = vmatpush1.msra.mxu0 0.0
  %499 = vmatprep.subr.mxu0 0.0
  %500 = vmatpush1.msra.mxu0 0.0
  %501 = vmatprep.subr.mxu0 0.0
  %502 = vmatpush1.msra.mxu0 0.0
  %503 = vmatprep.subr.mxu0 0.0
  %504 = vmatpush1.msra.mxu0 0.0
  %505 = vmatprep.subr.mxu0 0.0
  %506 = vmatpush1.msra.mxu0 0.0
  %507 = vmatprep.subr.mxu0 0.0
  %508 = vmatpush1.msra.mxu0 0.0
  %509 = vmatprep.subr.mxu0 0.0
  %510 = vmatpush1.msra.mxu0 0.0
  %511 = vmatprep.subr.mxu0 0.0
  %512 = vmatpush1.msra.mxu0 0.0
  %513 = vmatprep.subr.mxu0 0.0
  %514 = vmatpush1.msra.mxu0 0.0
  %515 = vmatprep.subr.mxu0 0.0
  %516 = vmatpush1.msra.mxu0 0.0
  %517 = vmatprep.subr.mxu0 0.0
  %518 = vmatpush1.msra.mxu0 0.0
  %519 = vmatprep.subr.mxu0 0.0
  %520 = vmatpush1.msra.mxu0 0.0
  %521 = vmatprep.subr.mxu0 0.0
  %522 = vmatpush1.msra.mxu0 0.0
  %523 = vmatprep.subr.mxu0 0.0
  %524 = vmatpush1.msra.mxu0 0.0
  %525 = vmatprep.subr.mxu0 0.0
  %526 = vmatpush1.msra.mxu0 0.0
  %527 = vmatprep.subr.mxu0 0.0
  %528 = vmatpush1.msra.mxu0 0.0
  %529 = vmatprep.subr.mxu0 0.0
  %530 = vmatpush1.msra.mxu0 0.0
  %531 = vmatprep.subr.mxu0 0.0
  %532 = vmatpush1.msra.mxu0 0.0
  %533 = vmatprep.mubr.f32.mxu0 0.0
  %534 = vmatmul.mubr.f32.gmra.mrb[0].mxu0 %v434
  %v535 = vpop.f32.mrb[0].mxu0
  %v536 = vadd.f32 %v376, %v535
  %v537 = vpop.f32.mrb[0].mxu0
  %538 = vmatprep.mubr.f32.mxu0 0.0
  %539 = vmatmul.mubr.f32.gmra.mrb[0].mxu0 %v437
  %v540 = vpop.f32.mrb[0].mxu0
  %v541 = vadd.f32 %v381, %v540
  %v542 = vpop.f32.mrb[0].mxu0
  %543 = vmatprep.mubr.f32.mxu0 0.0
  %544 = vmatmul.mubr.f32.gmra.mrb[0].mxu0 %v440
  %v545 = vpop.f32.mrb[0].mxu0
  %v546 = vadd.f32 %v386, %v545
  %v547 = vpop.f32.mrb[0].mxu0
  %548 = vmatprep.mubr.f32.mxu0 0.0
  %549 = vmatmul.mubr.f32.gmra.mrb[0].mxu0 %v443
  %v550 = vpop.f32.mrb[0].mxu0
  %v551 = vadd.f32 %v391, %v550
  %v552 = vpop.f32.mrb[0].mxu0
  %553 = vmatprep.mubr.f32.mxu0 0.0
  %554 = vmatmul.mubr.f32.gmra.mrb[0].mxu0 %v446
  %v555 = vpop.f32.mrb[0].mxu0
  %v556 = vadd.f32 %v396, %v555
  %v557 = vpop.f32.mrb[0].mxu0
  %558 = vmatprep.mubr.f32.mxu0 0.0
  %559 = vmatmul.mubr.f32.gmra.mrb[0].mxu0 %v449
  %v560 = vpop.f32.mrb[0].mxu0
  %v561 = vadd.f32 %v401, %v560
  %v562 = vpop.f32.mrb[0].mxu0
  %563 = vmatprep.mubr.f32.mxu0 0.0
  %564 = vmatmul.mubr.f32.gmra.mrb[0].mxu0 %v452
  %v565 = vpop.f32.mrb[0].mxu0
  %v566 = vadd.f32 %v406, %v565
  %v567 = vpop.f32.mrb[0].mxu0
  %568 = vmatprep.mubr.f32.mxu0 0.0
  %569 = vmatmul.mubr.f32.gmra.mrb[0].mxu0 %v455
  %v570 = vpop.f32.mrb[0].mxu0
  %v571 = vadd.f32 %v411, %v570
  %v572 = vpop.f32.mrb[0].mxu0
  %573 = vmatprep.mubr.f32.mxu0 0.0
  %574 = vmatmul.mubr.f32.gmra.mrb[0].mxu0 %v458
  %v575 = vpop.f32.mrb[0].mxu0
  %v576 = vadd.f32 %v416, %v575
  %v577 = vpop.f32.mrb[0].mxu0
  %578 = vmatprep.mubr.f32.mxu0 0.0
  %579 = vmatmul.mubr.f32.gmra.mrb[0].mxu0 %v461
  %v580 = vpop.f32.mrb[0].mxu0
  %v581 = vadd.f32 %v421, %v580
  %v582 = vpop.f32.mrb[0].mxu0
  %583 = vmatprep.mubr.f32.mxu0 0.0
  %584 = vmatmul.mubr.f32.gmra.mrb[0].mxu0 %v464
  %v585 = vpop.f32.mrb[0].mxu0
  %v586 = vadd.f32 %v426, %v585
  %v587 = vpop.f32.mrb[0].mxu0
  %588 = vmatprep.mubr.f32.mxu0 0.0
  %589 = vmatmul.mubr.f32.gmra.mrb[0].mxu0 %v467
  %v590 = vpop.f32.mrb[0].mxu0
  %v591 = vadd.f32 %v431, %v590
  %v592 = vpop.f32.mrb[0].mxu0
  %593 = vdwg.mxu0
  %594 = vxpose.xlu0.b32.start [1/16] %v536, 128
  %595 = vxpose.xlu0.b32.cont [2/16] 0.0, 128
  %596 = vxpose.xlu0.b32.cont [3/16] 0.0, 128
  %597 = vxpose.xlu0.b32.cont [4/16] 0.0, 128
  %598 = vxpose.xlu0.b32.cont [5/16] 0.0, 128
  %599 = vxpose.xlu0.b32.cont [6/16] 0.0, 128
  %600 = vxpose.xlu0.b32.cont [7/16] 0.0, 128
  %601 = vxpose.xlu0.b32.cont [8/16] 0.0, 128
  %602 = vxpose.xlu0.b32.cont [9/16] 0.0, 128
  %603 = vxpose.xlu0.b32.cont [10/16] 0.0, 128
  %604 = vxpose.xlu0.b32.cont [11/16] 0.0, 128
  %605 = vxpose.xlu0.b32.cont [12/16] 0.0, 128
  %606 = vxpose.xlu0.b32.cont [13/16] 0.0, 128
  %607 = vxpose.xlu0.b32.cont [14/16] 0.0, 128
  %608 = vxpose.xlu0.b32.cont [15/16] 0.0, 128
  %609 = vxpose.xlu0.b32.end [16/16] 0.0, 128
  %v610 = vpop.trf.xlu0
  %v611 = vpop.trf.xlu0
  %v612 = vpop.trf.xlu0
  %v613 = vpop.trf.xlu0
  %v614 = vpop.trf.xlu0
  %v615 = vpop.trf.xlu0
  %v616 = vpop.trf.xlu0
  %v617 = vpop.trf.xlu0
  %v618 = vpop.trf.xlu0
  %v619 = vpop.trf.xlu0
  %v620 = vpop.trf.xlu0
  %v621 = vpop.trf.xlu0
  %v622 = vpop.trf.xlu0
  %v623 = vpop.trf.xlu0
  %v624 = vpop.trf.xlu0
  %v625 = vpop.trf.xlu0
  %626 = vxpose.xlu0.b32.start [1/16] %v541, 128
  %627 = vxpose.xlu0.b32.cont [2/16] 0.0, 128
  %628 = vxpose.xlu0.b32.cont [3/16] 0.0, 128
  %629 = vxpose.xlu0.b32.cont [4/16] 0.0, 128
  %630 = vxpose.xlu0.b32.cont [5/16] 0.0, 128
  %631 = vxpose.xlu0.b32.cont [6/16] 0.0, 128
  %632 = vxpose.xlu0.b32.cont [7/16] 0.0, 128
  %633 = vxpose.xlu0.b32.cont [8/16] 0.0, 128
  %634 = vxpose.xlu0.b32.cont [9/16] 0.0, 128
  %635 = vxpose.xlu0.b32.cont [10/16] 0.0, 128
  %636 = vxpose.xlu0.b32.cont [11/16] 0.0, 128
  %637 = vxpose.xlu0.b32.cont [12/16] 0.0, 128
  %638 = vxpose.xlu0.b32.cont [13/16] 0.0, 128
  %639 = vxpose.xlu0.b32.cont [14/16] 0.0, 128
  %640 = vxpose.xlu0.b32.cont [15/16] 0.0, 128
  %641 = vxpose.xlu0.b32.end [16/16] 0.0, 128
  %v642 = vpop.trf.xlu0
  %v643 = vpop.trf.xlu0
  %v644 = vpop.trf.xlu0
  %v645 = vpop.trf.xlu0
  %v646 = vpop.trf.xlu0
  %v647 = vpop.trf.xlu0
  %v648 = vpop.trf.xlu0
  %v649 = vpop.trf.xlu0
  %v650 = vpop.trf.xlu0
  %v651 = vpop.trf.xlu0
  %v652 = vpop.trf.xlu0
  %v653 = vpop.trf.xlu0
  %v654 = vpop.trf.xlu0
  %v655 = vpop.trf.xlu0
  %v656 = vpop.trf.xlu0
  %v657 = vpop.trf.xlu0
  %vm658 = vcmask 64512
  %v660 = vsel %vm658, %v610, 0
  %v663 = vsel %vm658, %v611, 0
  %v666 = vsel %vm658, %v612, 0
  %v669 = vsel %vm658, %v613, 0
  %v672 = vsel %vm658, %v614, 0
  %v675 = vsel %vm658, %v615, 0
  %v678 = vsel %vm658, %v616, 0
  %v681 = vsel %vm658, %v617, 0
  %683 = vmatprep.subr.mxu0 0.0
  %684 = vmatpush1.msra.mxu0 %v556
  %685 = vmatprep.subr.mxu0 0.0
  %686 = vmatpush1.msra.mxu0 0.0
  %687 = vmatprep.subr.mxu0 0.0
  %688 = vmatpush1.msra.mxu0 0.0
  %689 = vmatprep.subr.mxu0 0.0
  %690 = vmatpush1.msra.mxu0 0.0
  %691 = vmatprep.subr.mxu0 0.0
  %692 = vmatpush1.msra.mxu0 0.0
  %693 = vmatprep.subr.mxu0 0.0
  %694 = vmatpush1.msra.mxu0 0.0
  %695 = vmatprep.subr.mxu0 0.0
  %696 = vmatpush1.msra.mxu0 0.0
  %697 = vmatprep.subr.mxu0 0.0
  %698 = vmatpush1.msra.mxu0 0.0
  %699 = vmatprep.subr.mxu0 0.0
  %700 = vmatpush1.msra.mxu0 0.0
  %701 = vmatprep.subr.mxu0 0.0
  %702 = vmatpush1.msra.mxu0 0.0
  %703 = vmatprep.subr.mxu0 0.0
  %704 = vmatpush1.msra.mxu0 0.0
  %705 = vmatprep.subr.mxu0 0.0
  %706 = vmatpush1.msra.mxu0 0.0
  %707 = vmatprep.subr.mxu0 0.0
  %708 = vmatpush1.msra.mxu0 0.0
  %709 = vmatprep.subr.mxu0 0.0
  %710 = vmatpush1.msra.mxu0 0.0
  %711 = vmatprep.subr.mxu0 0.0
  %712 = vmatpush1.msra.mxu0 0.0
  %713 = vmatprep.subr.mxu0 0.0
  %714 = vmatpush1.msra.mxu0 0.0
  %715 = vmatprep.subr.mxu0 0.0
  %716 = vmatpush1.msra.mxu0 0.0
  %717 = vmatprep.subr.mxu0 0.0
  %718 = vmatpush1.msra.mxu0 0.0
  %719 = vmatprep.subr.mxu0 0.0
  %720 = vmatpush1.msra.mxu0 0.0
  %721 = vmatprep.subr.mxu0 0.0
  %722 = vmatpush1.msra.mxu0 0.0
  %723 = vmatprep.subr.mxu0 0.0
  %724 = vmatpush1.msra.mxu0 0.0
  %725 = vmatprep.subr.mxu0 0.0
  %726 = vmatpush1.msra.mxu0 0.0
  %727 = vmatprep.subr.mxu0 0.0
  %728 = vmatpush1.msra.mxu0 0.0
  %729 = vmatprep.subr.mxu0 0.0
  %730 = vmatpush1.msra.mxu0 0.0
  %731 = vmatprep.subr.mxu0 0.0
  %732 = vmatpush1.msra.mxu0 0.0
  %733 = vmatprep.subr.mxu0 0.0
  %734 = vmatpush1.msra.mxu0 0.0
  %735 = vmatprep.subr.mxu0 0.0
  %736 = vmatpush1.msra.mxu0 0.0
  %737 = vmatprep.subr.mxu0 0.0
  %738 = vmatpush1.msra.mxu0 0.0
  %739 = vmatprep.subr.mxu0 0.0
  %740 = vmatpush1.msra.mxu0 0.0
  %741 = vmatprep.subr.mxu0 0.0
  %742 = vmatpush1.msra.mxu0 0.0
  %743 = vmatprep.subr.mxu0 0.0
  %744 = vmatpush1.msra.mxu0 0.0
  %745 = vmatprep.subr.mxu0 0.0
  %746 = vmatpush1.msra.mxu0 0.0
  %747 = vmatprep.mubr.f32.mxu0 0.0
  %748 = vmatmul.mubr.f32.gmra.mrb[0].mxu0 %v660
  %v749 = vpop.f32.mrb[0].mxu0
  %v750 = vadd.f32 0.0, %v749
  %v751 = vpop.f32.mrb[0].mxu0
  %752 = vmatprep.mubr.f32.mxu0 0.0
  %753 = vmatmul.mubr.f32.gmra.mrb[0].mxu0 %v663
  %v754 = vpop.f32.mrb[0].mxu0
  %v755 = vadd.f32 0.0, %v754
  %v756 = vpop.f32.mrb[0].mxu0
  %757 = vmatprep.mubr.f32.mxu0 0.0
  %758 = vmatmul.mubr.f32.gmra.mrb[0].mxu0 %v666
  %v759 = vpop.f32.mrb[0].mxu0
  %v760 = vadd.f32 0.0, %v759
  %v761 = vpop.f32.mrb[0].mxu0
  %762 = vmatprep.mubr.f32.mxu0 0.0
  %763 = vmatmul.mubr.f32.gmra.mrb[0].mxu0 %v669
  %v764 = vpop.f32.mrb[0].mxu0
  %v765 = vadd.f32 0.0, %v764
  %v766 = vpop.f32.mrb[0].mxu0
  %767 = vmatprep.mubr.f32.mxu0 0.0
  %768 = vmatmul.mubr.f32.gmra.mrb[0].mxu0 %v672
  %v769 = vpop.f32.mrb[0].mxu0
  %v770 = vadd.f32 0.0, %v769
  %v771 = vpop.f32.mrb[0].mxu0
  %772 = vmatprep.mubr.f32.mxu0 0.0
  %773 = vmatmul.mubr.f32.gmra.mrb[0].mxu0 %v675
  %v774 = vpop.f32.mrb[0].mxu0
  %v775 = vadd.f32 0.0, %v774
  %v776 = vpop.f32.mrb[0].mxu0
  %777 = vmatprep.mubr.f32.mxu0 0.0
  %778 = vmatmul.mubr.f32.gmra.mrb[0].mxu0 %v678
  %v779 = vpop.f32.mrb[0].mxu0
  %v780 = vadd.f32 0.0, %v779
  %v781 = vpop.f32.mrb[0].mxu0
  %782 = vmatprep.mubr.f32.mxu0 0.0
  %783 = vmatmul.mubr.f32.gmra.mrb[0].mxu0 %v681
  %v784 = vpop.f32.mrb[0].mxu0
  %v785 = vadd.f32 0.0, %v784
  %v786 = vpop.f32.mrb[0].mxu0
  %787 = vdwg.mxu0
  %v789 = vsel %vm658, %v642, 0
  %v792 = vsel %vm658, %v643, 0
  %v795 = vsel %vm658, %v644, 0
  %v798 = vsel %vm658, %v645, 0
  %v801 = vsel %vm658, %v646, 0
  %v804 = vsel %vm658, %v647, 0
  %v807 = vsel %vm658, %v648, 0
  %v810 = vsel %vm658, %v649, 0
  %812 = vmatprep.subr.mxu0 0.0
  %813 = vmatpush1.msra.mxu0 %v561
  %814 = vmatprep.subr.mxu0 0.0
  %815 = vmatpush1.msra.mxu0 0.0
  %816 = vmatprep.subr.mxu0 0.0
  %817 = vmatpush1.msra.mxu0 0.0
  %818 = vmatprep.subr.mxu0 0.0
  %819 = vmatpush1.msra.mxu0 0.0
  %820 = vmatprep.subr.mxu0 0.0
  %821 = vmatpush1.msra.mxu0 0.0
  %822 = vmatprep.subr.mxu0 0.0
  %823 = vmatpush1.msra.mxu0 0.0
  %824 = vmatprep.subr.mxu0 0.0
  %825 = vmatpush1.msra.mxu0 0.0
  %826 = vmatprep.subr.mxu0 0.0
  %827 = vmatpush1.msra.mxu0 0.0
  %828 = vmatprep.subr.mxu0 0.0
  %829 = vmatpush1.msra.mxu0 0.0
  %830 = vmatprep.subr.mxu0 0.0
  %831 = vmatpush1.msra.mxu0 0.0
  %832 = vmatprep.subr.mxu0 0.0
  %833 = vmatpush1.msra.mxu0 0.0
  %834 = vmatprep.subr.mxu0 0.0
  %835 = vmatpush1.msra.mxu0 0.0
  %836 = vmatprep.subr.mxu0 0.0
  %837 = vmatpush1.msra.mxu0 0.0
  %838 = vmatprep.subr.mxu0 0.0
  %839 = vmatpush1.msra.mxu0 0.0
  %840 = vmatprep.subr.mxu0 0.0
  %841 = vmatpush1.msra.mxu0 0.0
  %842 = vmatprep.subr.mxu0 0.0
  %843 = vmatpush1.msra.mxu0 0.0
  %844 = vmatprep.subr.mxu0 0.0
  %845 = vmatpush1.msra.mxu0 0.0
  %846 = vmatprep.subr.mxu0 0.0
  %847 = vmatpush1.msra.mxu0 0.0
  %848 = vmatprep.subr.mxu0 0.0
  %849 = vmatpush1.msra.mxu0 0.0
  %850 = vmatprep.subr.mxu0 0.0
  %851 = vmatpush1.msra.mxu0 0.0
  %852 = vmatprep.subr.mxu0 0.0
  %853 = vmatpush1.msra.mxu0 0.0
  %854 = vmatprep.subr.mxu0 0.0
  %855 = vmatpush1.msra.mxu0 0.0
  %856 = vmatprep.subr.mxu0 0.0
  %857 = vmatpush1.msra.mxu0 0.0
  %858 = vmatprep.subr.mxu0 0.0
  %859 = vmatpush1.msra.mxu0 0.0
  %860 = vmatprep.subr.mxu0 0.0
  %861 = vmatpush1.msra.mxu0 0.0
  %862 = vmatprep.subr.mxu0 0.0
  %863 = vmatpush1.msra.mxu0 0.0
  %864 = vmatprep.subr.mxu0 0.0
  %865 = vmatpush1.msra.mxu0 0.0
  %866 = vmatprep.subr.mxu0 0.0
  %867 = vmatpush1.msra.mxu0 0.0
  %868 = vmatprep.subr.mxu0 0.0
  %869 = vmatpush1.msra.mxu0 0.0
  %870 = vmatprep.subr.mxu0 0.0
  %871 = vmatpush1.msra.mxu0 0.0
  %872 = vmatprep.subr.mxu0 0.0
  %873 = vmatpush1.msra.mxu0 0.0
  %874 = vmatprep.subr.mxu0 0.0
  %875 = vmatpush1.msra.mxu0 0.0
  %876 = vmatprep.mubr.f32.mxu0 0.0
  %877 = vmatmul.mubr.f32.gmra.mrb[0].mxu0 %v789
  %v878 = vpop.f32.mrb[0].mxu0
  %v879 = vadd.f32 0.0, %v878
  %v880 = vpop.f32.mrb[0].mxu0
  %881 = vmatprep.mubr.f32.mxu0 0.0
  %882 = vmatmul.mubr.f32.gmra.mrb[0].mxu0 %v792
  %v883 = vpop.f32.mrb[0].mxu0
  %v884 = vadd.f32 0.0, %v883
  %v885 = vpop.f32.mrb[0].mxu0
  %886 = vmatprep.mubr.f32.mxu0 0.0
  %887 = vmatmul.mubr.f32.gmra.mrb[0].mxu0 %v795
  %v888 = vpop.f32.mrb[0].mxu0
  %v889 = vadd.f32 0.0, %v888
  %v890 = vpop.f32.mrb[0].mxu0
  %891 = vmatprep.mubr.f32.mxu0 0.0
  %892 = vmatmul.mubr.f32.gmra.mrb[0].mxu0 %v798
  %v893 = vpop.f32.mrb[0].mxu0
  %v894 = vadd.f32 0.0, %v893
  %v895 = vpop.f32.mrb[0].mxu0
  %896 = vmatprep.mubr.f32.mxu0 0.0
  %897 = vmatmul.mubr.f32.gmra.mrb[0].mxu0 %v801
  %v898 = vpop.f32.mrb[0].mxu0
  %v899 = vadd.f32 0.0, %v898
  %v900 = vpop.f32.mrb[0].mxu0
  %901 = vmatprep.mubr.f32.mxu0 0.0
  %902 = vmatmul.mubr.f32.gmra.mrb[0].mxu0 %v804
  %v903 = vpop.f32.mrb[0].mxu0
  %v904 = vadd.f32 0.0, %v903
  %v905 = vpop.f32.mrb[0].mxu0
  %906 = vmatprep.mubr.f32.mxu0 0.0
  %907 = vmatmul.mubr.f32.gmra.mrb[0].mxu0 %v807
  %v908 = vpop.f32.mrb[0].mxu0
  %v909 = vadd.f32 0.0, %v908
  %v910 = vpop.f32.mrb[0].mxu0
  %911 = vmatprep.mubr.f32.mxu0 0.0
  %912 = vmatmul.mubr.f32.gmra.mrb[0].mxu0 %v810
  %v913 = vpop.f32.mrb[0].mxu0
  %v914 = vadd.f32 0.0, %v913
  %v915 = vpop.f32.mrb[0].mxu0
  %916 = vdwg.mxu0
  %v917 = vsel %vm31, %v750, -inf
  %918 = vmax.xlane.f32.xlu0 %v917
  %v919 = vpop.xlane.xlu0 %918
  %v920 = vsel %vm31, %v755, -inf
  %921 = vmax.xlane.f32.xlu0 %v920
  %v922 = vpop.xlane.xlu0 %921
  %v923 = vsel %vm31, %v760, -inf
  %924 = vmax.xlane.f32.xlu0 %v923
  %v925 = vpop.xlane.xlu0 %924
  %v926 = vsel %vm31, %v765, -inf
  %927 = vmax.xlane.f32.xlu0 %v926
  %v928 = vpop.xlane.xlu0 %927
  %v929 = vsel %vm31, %v770, -inf
  %930 = vmax.xlane.f32.xlu0 %v929
  %v931 = vpop.xlane.xlu0 %930
  %v932 = vsel %vm31, %v775, -inf
  %933 = vmax.xlane.f32.xlu0 %v932
  %v934 = vpop.xlane.xlu0 %933
  %v935 = vsel %vm31, %v780, -inf
  %936 = vmax.xlane.f32.xlu0 %v935
  %v937 = vpop.xlane.xlu0 %936
  %v938 = vsel %vm31, %v785, -inf
  %939 = vmax.xlane.f32.xlu0 %v938
  %v940 = vpop.xlane.xlu0 %939
  %v941 = vsel %vm31, %v879, -inf
  %942 = vmax.xlane.f32.xlu0 %v941
  %v943 = vpop.xlane.xlu0 %942
  %v944 = vsel %vm31, %v884, -inf
  %945 = vmax.xlane.f32.xlu0 %v944
  %v946 = vpop.xlane.xlu0 %945
  %v947 = vsel %vm31, %v889, -inf
  %948 = vmax.xlane.f32.xlu0 %v947
  %v949 = vpop.xlane.xlu0 %948
  %v950 = vsel %vm31, %v894, -inf
  %951 = vmax.xlane.f32.xlu0 %v950
  %v952 = vpop.xlane.xlu0 %951
  %v953 = vsel %vm31, %v899, -inf
  %954 = vmax.xlane.f32.xlu0 %v953
  %v955 = vpop.xlane.xlu0 %954
  %v956 = vsel %vm31, %v904, -inf
  %957 = vmax.xlane.f32.xlu0 %v956
  %v958 = vpop.xlane.xlu0 %957
  %v959 = vsel %vm31, %v909, -inf
  %960 = vmax.xlane.f32.xlu0 %v959
  %v961 = vpop.xlane.xlu0 %960
  %v962 = vsel %vm31, %v914, -inf
  %963 = vmax.xlane.f32.xlu0 %v962
  %v964 = vpop.xlane.xlu0 %963
  %v965 = vsub.f32 %v750, %v919
  %v966 = vsub.f32 %v755, %v922
  %v967 = vsub.f32 %v760, %v925
  %v968 = vsub.f32 %v765, %v928
  %v969 = vsub.f32 %v770, %v931
  %v970 = vsub.f32 %v775, %v934
  %v971 = vsub.f32 %v780, %v937
  %v972 = vsub.f32 %v785, %v940
  %v973 = vsub.f32 %v879, %v943
  %v974 = vsub.f32 %v884, %v946
  %v975 = vsub.f32 %v889, %v949
  %v976 = vsub.f32 %v894, %v952
  %v977 = vsub.f32 %v899, %v955
  %v978 = vsub.f32 %v904, %v958
  %v979 = vsub.f32 %v909, %v961
  %v980 = vsub.f32 %v914, %v964
  %v981 = vmul.f32 %v965, 1.442695
  %v982 = vpow.pop %v981
  %v983 = vmul.f32 %v966, 1.442695
  %v984 = vpow.pop %v983
  %v985 = vmul.f32 %v967, 1.442695
  %v986 = vpow.pop %v985
  %v987 = vmul.f32 %v968, 1.442695
  %v988 = vpow.pop %v987
  %v989 = vmul.f32 %v969, 1.442695
  %v990 = vpow.pop %v989
  %v991 = vmul.f32 %v970, 1.442695
  %v992 = vpow.pop %v991
  %v993 = vmul.f32 %v971, 1.442695
  %v994 = vpow.pop %v993
  %v995 = vmul.f32 %v972, 1.442695
  %v996 = vpow.pop %v995
  %v997 = vmul.f32 %v973, 1.442695
  %v998 = vpow.pop %v997
  %v999 = vmul.f32 %v974, 1.442695
  %v1000 = vpow.pop %v999
  %v1001 = vmul.f32 %v975, 1.442695
  %v1002 = vpow.pop %v1001
  %v1003 = vmul.f32 %v976, 1.442695
  %v1004 = vpow.pop %v1003
  %v1005 = vmul.f32 %v977, 1.442695
  %v1006 = vpow.pop %v1005
  %v1007 = vmul.f32 %v978, 1.442695
  %v1008 = vpow.pop %v1007
  %v1009 = vmul.f32 %v979, 1.442695
  %v1010 = vpow.pop %v1009
  %v1011 = vmul.f32 %v980, 1.442695
  %v1012 = vpow.pop %v1011
  %v1013 = vsel %vm31, %v982, 0.0
  %1014 = vadd.xlane.f32.xlu0 %v1013
  %v1015 = vpop.xlane.xlu0 %1014
  %v1016 = vsel %vm31, %v984, 0.0
  %1017 = vadd.xlane.f32.xlu0 %v1016
  %v1018 = vpop.xlane.xlu0 %1017
  %v1019 = vsel %vm31, %v986, 0.0
  %1020 = vadd.xlane.f32.xlu0 %v1019
  %v1021 = vpop.xlane.xlu0 %1020
  %v1022 = vsel %vm31, %v988, 0.0
  %1023 = vadd.xlane.f32.xlu0 %v1022
  %v1024 = vpop.xlane.xlu0 %1023
  %v1025 = vsel %vm31, %v990, 0.0
  %1026 = vadd.xlane.f32.xlu0 %v1025
  %v1027 = vpop.xlane.xlu0 %1026
  %v1028 = vsel %vm31, %v992, 0.0
  %1029 = vadd.xlane.f32.xlu0 %v1028
  %v1030 = vpop.xlane.xlu0 %1029
  %v1031 = vsel %vm31, %v994, 0.0
  %1032 = vadd.xlane.f32.xlu0 %v1031
  %v1033 = vpop.xlane.xlu0 %1032
  %v1034 = vsel %vm31, %v996, 0.0
  %1035 = vadd.xlane.f32.xlu0 %v1034
  %v1036 = vpop.xlane.xlu0 %1035
  %v1037 = vsel %vm31, %v998, 0.0
  %1038 = vadd.xlane.f32.xlu0 %v1037
  %v1039 = vpop.xlane.xlu0 %1038
  %v1040 = vsel %vm31, %v1000, 0.0
  %1041 = vadd.xlane.f32.xlu0 %v1040
  %v1042 = vpop.xlane.xlu0 %1041
  %v1043 = vsel %vm31, %v1002, 0.0
  %1044 = vadd.xlane.f32.xlu0 %v1043
  %v1045 = vpop.xlane.xlu0 %1044
  %v1046 = vsel %vm31, %v1004, 0.0
  %1047 = vadd.xlane.f32.xlu0 %v1046
  %v1048 = vpop.xlane.xlu0 %1047
  %v1049 = vsel %vm31, %v1006, 0.0
  %1050 = vadd.xlane.f32.xlu0 %v1049
  %v1051 = vpop.xlane.xlu0 %1050
  %v1052 = vsel %vm31, %v1008, 0.0
  %1053 = vadd.xlane.f32.xlu0 %v1052
  %v1054 = vpop.xlane.xlu0 %1053
  %v1055 = vsel %vm31, %v1010, 0.0
  %1056 = vadd.xlane.f32.xlu0 %v1055
  %v1057 = vpop.xlane.xlu0 %1056
  %v1058 = vsel %vm31, %v1012, 0.0
  %1059 = vadd.xlane.f32.xlu0 %v1058
  %v1060 = vpop.xlane.xlu0 %1059
  %v1062 = vsel %vm31, %v576, 0
  %v1065 = vsel %vm31, %v982, 0
  %v1068 = vsel %vm31, %v984, 0
  %v1071 = vsel %vm31, %v986, 0
  %v1074 = vsel %vm31, %v988, 0
  %v1077 = vsel %vm31, %v990, 0
  %v1080 = vsel %vm31, %v992, 0
  %v1083 = vsel %vm31, %v994, 0
  %v1086 = vsel %vm31, %v996, 0
  %1088 = vmatprep.subr.mxu0 0.0
  %1089 = vmatpush1.xpose.msra.mxu0 %v1065
  %1090 = vmatprep.subr.mxu0 0.0
  %1091 = vmatpush1.xpose.msra.mxu0 %v1068
  %1092 = vmatprep.subr.mxu0 0.0
  %1093 = vmatpush1.xpose.msra.mxu0 %v1071
  %1094 = vmatprep.subr.mxu0 0.0
  %1095 = vmatpush1.xpose.msra.mxu0 %v1074
  %1096 = vmatprep.subr.mxu0 0.0
  %1097 = vmatpush1.xpose.msra.mxu0 %v1077
  %1098 = vmatprep.subr.mxu0 0.0
  %1099 = vmatpush1.xpose.msra.mxu0 %v1080
  %1100 = vmatprep.subr.mxu0 0.0
  %1101 = vmatpush1.xpose.msra.mxu0 %v1083
  %1102 = vmatprep.subr.mxu0 0.0
  %1103 = vmatpush1.xpose.msra.mxu0 %v1086
  %1104 = vmatprep.subr.mxu0 0.0
  %1105 = vmatpush1.xpose.msra.mxu0 0.0
  %1106 = vmatprep.subr.mxu0 0.0
  %1107 = vmatpush1.xpose.msra.mxu0 0.0
  %1108 = vmatprep.subr.mxu0 0.0
  %1109 = vmatpush1.xpose.msra.mxu0 0.0
  %1110 = vmatprep.subr.mxu0 0.0
  %1111 = vmatpush1.xpose.msra.mxu0 0.0
  %1112 = vmatprep.subr.mxu0 0.0
  %1113 = vmatpush1.xpose.msra.mxu0 0.0
  %1114 = vmatprep.subr.mxu0 0.0
  %1115 = vmatpush1.xpose.msra.mxu0 0.0
  %1116 = vmatprep.subr.mxu0 0.0
  %1117 = vmatpush1.xpose.msra.mxu0 0.0
  %1118 = vmatprep.subr.mxu0 0.0
  %1119 = vmatpush1.xpose.msra.mxu0 0.0
  %1120 = vmatprep.subr.mxu0 0.0
  %1121 = vmatpush1.xpose.msra.mxu0 0.0
  %1122 = vmatprep.subr.mxu0 0.0
  %1123 = vmatpush1.xpose.msra.mxu0 0.0
  %1124 = vmatprep.subr.mxu0 0.0
  %1125 = vmatpush1.xpose.msra.mxu0 0.0
  %1126 = vmatprep.subr.mxu0 0.0
  %1127 = vmatpush1.xpose.msra.mxu0 0.0
  %1128 = vmatprep.subr.mxu0 0.0
  %1129 = vmatpush1.xpose.msra.mxu0 0.0
  %1130 = vmatprep.subr.mxu0 0.0
  %1131 = vmatpush1.xpose.msra.mxu0 0.0
  %1132 = vmatprep.subr.mxu0 0.0
  %1133 = vmatpush1.xpose.msra.mxu0 0.0
  %1134 = vmatprep.subr.mxu0 0.0
  %1135 = vmatpush1.xpose.msra.mxu0 0.0
  %1136 = vmatprep.subr.mxu0 0.0
  %1137 = vmatpush1.xpose.msra.mxu0 0.0
  %1138 = vmatprep.subr.mxu0 0.0
  %1139 = vmatpush1.xpose.msra.mxu0 0.0
  %1140 = vmatprep.subr.mxu0 0.0
  %1141 = vmatpush1.xpose.msra.mxu0 0.0
  %1142 = vmatprep.subr.mxu0 0.0
  %1143 = vmatpush1.xpose.msra.mxu0 0.0
  %1144 = vmatprep.subr.mxu0 0.0
  %1145 = vmatpush1.xpose.msra.mxu0 0.0
  %1146 = vmatprep.subr.mxu0 0.0
  %1147 = vmatpush1.xpose.msra.mxu0 0.0
  %1148 = vmatprep.subr.mxu0 0.0
  %1149 = vmatpush1.xpose.msra.mxu0 0.0
  %1150 = vmatprep.subr.mxu0 0.0
  %1151 = vmatpush1.xpose.msra.mxu0 0.0
  %1152 = vmatprep.mubr.f32.mxu0 0.0
  %1153 = vmatmul.mubr.f32.gmra.mrb[0].mxu0 %v1062
  %v1154 = vpop.f32.mrb[0].mxu0
  %v1155 = vadd.f32 0.0, %v1154
  %v1156 = vpop.f32.mrb[0].mxu0
  %1157 = vdwg.mxu0
  %v1159 = vsel %vm31, %v581, 0
  %v1162 = vsel %vm31, %v998, 0
  %v1165 = vsel %vm31, %v1000, 0
  %v1168 = vsel %vm31, %v1002, 0
  %v1171 = vsel %vm31, %v1004, 0
  %v1174 = vsel %vm31, %v1006, 0
  %v1177 = vsel %vm31, %v1008, 0
  %v1180 = vsel %vm31, %v1010, 0
  %v1183 = vsel %vm31, %v1012, 0
  %1185 = vmatprep.subr.mxu0 0.0
  %1186 = vmatpush1.xpose.msra.mxu0 %v1162
  %1187 = vmatprep.subr.mxu0 0.0
  %1188 = vmatpush1.xpose.msra.mxu0 %v1165
  %1189 = vmatprep.subr.mxu0 0.0
  %1190 = vmatpush1.xpose.msra.mxu0 %v1168
  %1191 = vmatprep.subr.mxu0 0.0
  %1192 = vmatpush1.xpose.msra.mxu0 %v1171
  %1193 = vmatprep.subr.mxu0 0.0
  %1194 = vmatpush1.xpose.msra.mxu0 %v1174
  %1195 = vmatprep.subr.mxu0 0.0
  %1196 = vmatpush1.xpose.msra.mxu0 %v1177
  %1197 = vmatprep.subr.mxu0 0.0
  %1198 = vmatpush1.xpose.msra.mxu0 %v1180
  %1199 = vmatprep.subr.mxu0 0.0
  %1200 = vmatpush1.xpose.msra.mxu0 %v1183
  %1201 = vmatprep.subr.mxu0 0.0
  %1202 = vmatpush1.xpose.msra.mxu0 0.0
  %1203 = vmatprep.subr.mxu0 0.0
  %1204 = vmatpush1.xpose.msra.mxu0 0.0
  %1205 = vmatprep.subr.mxu0 0.0
  %1206 = vmatpush1.xpose.msra.mxu0 0.0
  %1207 = vmatprep.subr.mxu0 0.0
  %1208 = vmatpush1.xpose.msra.mxu0 0.0
  %1209 = vmatprep.subr.mxu0 0.0
  %1210 = vmatpush1.xpose.msra.mxu0 0.0
  %1211 = vmatprep.subr.mxu0 0.0
  %1212 = vmatpush1.xpose.msra.mxu0 0.0
  %1213 = vmatprep.subr.mxu0 0.0
  %1214 = vmatpush1.xpose.msra.mxu0 0.0
  %1215 = vmatprep.subr.mxu0 0.0
  %1216 = vmatpush1.xpose.msra.mxu0 0.0
  %1217 = vmatprep.subr.mxu0 0.0
  %1218 = vmatpush1.xpose.msra.mxu0 0.0
  %1219 = vmatprep.subr.mxu0 0.0
  %1220 = vmatpush1.xpose.msra.mxu0 0.0
  %1221 = vmatprep.subr.mxu0 0.0
  %1222 = vmatpush1.xpose.msra.mxu0 0.0
  %1223 = vmatprep.subr.mxu0 0.0
  %1224 = vmatpush1.xpose.msra.mxu0 0.0
  %1225 = vmatprep.subr.mxu0 0.0
  %1226 = vmatpush1.xpose.msra.mxu0 0.0
  %1227 = vmatprep.subr.mxu0 0.0
  %1228 = vmatpush1.xpose.msra.mxu0 0.0
  %1229 = vmatprep.subr.mxu0 0.0
  %1230 = vmatpush1.xpose.msra.mxu0 0.0
  %1231 = vmatprep.subr.mxu0 0.0
  %1232 = vmatpush1.xpose.msra.mxu0 0.0
  %1233 = vmatprep.subr.mxu0 0.0
  %1234 = vmatpush1.xpose.msra.mxu0 0.0
  %1235 = vmatprep.subr.mxu0 0.0
  %1236 = vmatpush1.xpose.msra.mxu0 0.0
  %1237 = vmatprep.subr.mxu0 0.0
  %1238 = vmatpush1.xpose.msra.mxu0 0.0
  %1239 = vmatprep.subr.mxu0 0.0
  %1240 = vmatpush1.xpose.msra.mxu0 0.0
  %1241 = vmatprep.subr.mxu0 0.0
  %1242 = vmatpush1.xpose.msra.mxu0 0.0
  %1243 = vmatprep.subr.mxu0 0.0
  %1244 = vmatpush1.xpose.msra.mxu0 0.0
  %1245 = vmatprep.subr.mxu0 0.0
  %1246 = vmatpush1.xpose.msra.mxu0 0.0
  %1247 = vmatprep.subr.mxu0 0.0
  %1248 = vmatpush1.xpose.msra.mxu0 0.0
  %1249 = vmatprep.mubr.f32.mxu0 0.0
  %1250 = vmatmul.mubr.f32.gmra.mrb[0].mxu0 %v1159
  %v1251 = vpop.f32.mrb[0].mxu0
  %v1252 = vadd.f32 0.0, %v1251
  %v1253 = vpop.f32.mrb[0].mxu0
  %1254 = vdwg.mxu0
  %v1255 = vrcp.pop %v1015
  %v1256 = vrcp.pop %v1018
  %v1257 = vrcp.pop %v1021
  %v1258 = vrcp.pop %v1024
  %v1259 = vrcp.pop %v1027
  %v1260 = vrcp.pop %v1030
  %v1261 = vrcp.pop %v1033
  %v1262 = vrcp.pop %v1036
  %v1263 = vrcp.pop %v1039
  %v1264 = vrcp.pop %v1042
  %v1265 = vrcp.pop %v1045
  %v1266 = vrcp.pop %v1048
  %v1267 = vrcp.pop %v1051
  %v1268 = vrcp.pop %v1054
  %v1269 = vrcp.pop %v1057
  %v1270 = vrcp.pop %v1060
  %v1287 = vlaneseq
  %v1288 = vand.u32 %v1287, 127
  %v1289 = vlaneseq
  %v1290 = vshrl.u32 %v1289, 7
  %v1291 = vsub.s32 %v1288, %v1290
  %v1292 = vrot.slane %v1255, %v1291
  %v1293 = vadd.s32 %v1288, 4294967288
  %v1294 = vlaneseq
  %v1295 = vshrl.u32 %v1294, 7
  %v1296 = vsub.s32 %v1293, %v1295
  %v1297 = vrot.slane %v1256, %v1296
  %vm1298 = vcmask 130112
  %v1299 = vsel %vm1298, %v1297, %v1292
  %v1300 = vadd.s32 %v1288, 4294967280
  %v1301 = vlaneseq
  %v1302 = vshrl.u32 %v1301, 7
  %v1303 = vsub.s32 %v1300, %v1302
  %v1304 = vrot.slane %v1257, %v1303
  %vm1305 = vcmask 195712
  %v1306 = vsel %vm1305, %v1304, %v1299
  %v1307 = vadd.s32 %v1288, 4294967272
  %v1308 = vlaneseq
  %v1309 = vshrl.u32 %v1308, 7
  %v1310 = vsub.s32 %v1307, %v1309
  %v1311 = vrot.slane %v1258, %v1310
  %vm1312 = vcmask 261312
  %v1313 = vsel %vm1312, %v1311, %v1306
  %v1314 = vadd.s32 %v1288, 4294967264
  %v1315 = vlaneseq
  %v1316 = vshrl.u32 %v1315, 7
  %v1317 = vsub.s32 %v1314, %v1316
  %v1318 = vrot.slane %v1259, %v1317
  %vm1319 = vcmask 326912
  %v1320 = vsel %vm1319, %v1318, %v1313
  %v1321 = vadd.s32 %v1288, 4294967256
  %v1322 = vlaneseq
  %v1323 = vshrl.u32 %v1322, 7
  %v1324 = vsub.s32 %v1321, %v1323
  %v1325 = vrot.slane %v1260, %v1324
  %vm1326 = vcmask 392512
  %v1327 = vsel %vm1326, %v1325, %v1320
  %v1328 = vadd.s32 %v1288, 4294967248
  %v1329 = vlaneseq
  %v1330 = vshrl.u32 %v1329, 7
  %v1331 = vsub.s32 %v1328, %v1330
  %v1332 = vrot.slane %v1261, %v1331
  %vm1333 = vcmask 458112
  %v1334 = vsel %vm1333, %v1332, %v1327
  %v1335 = vadd.s32 %v1288, 4294967240
  %v1336 = vlaneseq
  %v1337 = vshrl.u32 %v1336, 7
  %v1338 = vsub.s32 %v1335, %v1337
  %v1339 = vrot.slane %v1262, %v1338
  %vm1340 = vcmask 523712
  %v1341 = vsel %vm1340, %v1339, %v1334
  %v1342 = vlaneseq
  %v1343 = vshrl.u32 %v1342, 7
  %v1344 = vsub.s32 %v1288, %v1343
  %v1345 = vrot.slane %v1263, %v1344
  %v1346 = vlaneseq
  %v1347 = vshrl.u32 %v1346, 7
  %v1348 = vsub.s32 %v1293, %v1347
  %v1349 = vrot.slane %v1264, %v1348
  %v1350 = vsel %vm1298, %v1349, %v1345
  %v1351 = vlaneseq
  %v1352 = vshrl.u32 %v1351, 7
  %v1353 = vsub.s32 %v1300, %v1352
  %v1354 = vrot.slane %v1265, %v1353
  %v1355 = vsel %vm1305, %v1354, %v1350
  %v1356 = vlaneseq
  %v1357 = vshrl.u32 %v1356, 7
  %v1358 = vsub.s32 %v1307, %v1357
  %v1359 = vrot.slane %v1266, %v1358
  %v1360 = vsel %vm1312, %v1359, %v1355
  %v1361 = vlaneseq
  %v1362 = vshrl.u32 %v1361, 7
  %v1363 = vsub.s32 %v1314, %v1362
  %v1364 = vrot.slane %v1267, %v1363
  %v1365 = vsel %vm1319, %v1364, %v1360
  %v1366 = vlaneseq
  %v1367 = vshrl.u32 %v1366, 7
  %v1368 = vsub.s32 %v1321, %v1367
  %v1369 = vrot.slane %v1268, %v1368
  %v1370 = vsel %vm1326, %v1369, %v1365
  %v1371 = vlaneseq
  %v1372 = vshrl.u32 %v1371, 7
  %v1373 = vsub.s32 %v1328, %v1372
  %v1374 = vrot.slane %v1269, %v1373
  %v1375 = vsel %vm1333, %v1374, %v1370
  %v1376 = vlaneseq
  %v1377 = vshrl.u32 %v1376, 7
  %v1378 = vsub.s32 %v1335, %v1377
  %v1379 = vrot.slane %v1270, %v1378
  %v1380 = vsel %vm1340, %v1379, %v1375
  %vm1381 = vcmask 1042434
  %v1382 = vsel %vm1381, %v1341, %v1341
  %vm1383 = vcmask 1043459
  %v1384 = vsel %vm1383, %v1341, %v1382
  %vm1385 = vcmask 1044484
  %v1386 = vsel %vm1385, %v1341, %v1384
  %vm1387 = vcmask 1045509
  %v1388 = vsel %vm1387, %v1341, %v1386
  %vm1389 = vcmask 1046534
  %v1390 = vsel %vm1389, %v1341, %v1388
  %vm1391 = vcmask 1047559
  %v1392 = vsel %vm1391, %v1341, %v1390
  %v1393 = vsel %vm1381, %v1380, %v1380
  %v1394 = vsel %vm1383, %v1380, %v1393
  %v1395 = vsel %vm1385, %v1380, %v1394
  %v1396 = vsel %vm1387, %v1380, %v1395
  %v1397 = vsel %vm1389, %v1380, %v1396
  %v1398 = vsel %vm1391, %v1380, %v1397
  %v1401 = vmul.f32 %v1155, %v1392
  %v1402 = vmul.f32 %v1252, %v1398
  %1403 = vxpose.xlu0.b32.start [1/16] %v546, 128
  %1404 = vxpose.xlu0.b32.cont [2/16] 0.0, 128
  %1405 = vxpose.xlu0.b32.cont [3/16] 0.0, 128
  %1406 = vxpose.xlu0.b32.cont [4/16] 0.0, 128
  %1407 = vxpose.xlu0.b32.cont [5/16] 0.0, 128
  %1408 = vxpose.xlu0.b32.cont [6/16] 0.0, 128
  %1409 = vxpose.xlu0.b32.cont [7/16] 0.0, 128
  %1410 = vxpose.xlu0.b32.cont [8/16] 0.0, 128
  %1411 = vxpose.xlu0.b32.cont [9/16] 0.0, 128
  %1412 = vxpose.xlu0.b32.cont [10/16] 0.0, 128
  %1413 = vxpose.xlu0.b32.cont [11/16] 0.0, 128
  %1414 = vxpose.xlu0.b32.cont [12/16] 0.0, 128
  %1415 = vxpose.xlu0.b32.cont [13/16] 0.0, 128
  %1416 = vxpose.xlu0.b32.cont [14/16] 0.0, 128
  %1417 = vxpose.xlu0.b32.cont [15/16] 0.0, 128
  %1418 = vxpose.xlu0.b32.end [16/16] 0.0, 128
  %v1419 = vpop.trf.xlu0
  %v1420 = vpop.trf.xlu0
  %v1421 = vpop.trf.xlu0
  %v1422 = vpop.trf.xlu0
  %v1423 = vpop.trf.xlu0
  %v1424 = vpop.trf.xlu0
  %v1425 = vpop.trf.xlu0
  %v1426 = vpop.trf.xlu0
  %v1427 = vpop.trf.xlu0
  %v1428 = vpop.trf.xlu0
  %v1429 = vpop.trf.xlu0
  %v1430 = vpop.trf.xlu0
  %v1431 = vpop.trf.xlu0
  %v1432 = vpop.trf.xlu0
  %v1433 = vpop.trf.xlu0
  %v1434 = vpop.trf.xlu0
  %1435 = vxpose.xlu0.b32.start [1/16] %v551, 128
  %1436 = vxpose.xlu0.b32.cont [2/16] 0.0, 128
  %1437 = vxpose.xlu0.b32.cont [3/16] 0.0, 128
  %1438 = vxpose.xlu0.b32.cont [4/16] 0.0, 128
  %1439 = vxpose.xlu0.b32.cont [5/16] 0.0, 128
  %1440 = vxpose.xlu0.b32.cont [6/16] 0.0, 128
  %1441 = vxpose.xlu0.b32.cont [7/16] 0.0, 128
  %1442 = vxpose.xlu0.b32.cont [8/16] 0.0, 128
  %1443 = vxpose.xlu0.b32.cont [9/16] 0.0, 128
  %1444 = vxpose.xlu0.b32.cont [10/16] 0.0, 128
  %1445 = vxpose.xlu0.b32.cont [11/16] 0.0, 128
  %1446 = vxpose.xlu0.b32.cont [12/16] 0.0, 128
  %1447 = vxpose.xlu0.b32.cont [13/16] 0.0, 128
  %1448 = vxpose.xlu0.b32.cont [14/16] 0.0, 128
  %1449 = vxpose.xlu0.b32.cont [15/16] 0.0, 128
  %1450 = vxpose.xlu0.b32.end [16/16] 0.0, 128
  %v1451 = vpop.trf.xlu0
  %v1452 = vpop.trf.xlu0
  %v1453 = vpop.trf.xlu0
  %v1454 = vpop.trf.xlu0
  %v1455 = vpop.trf.xlu0
  %v1456 = vpop.trf.xlu0
  %v1457 = vpop.trf.xlu0
  %v1458 = vpop.trf.xlu0
  %v1459 = vpop.trf.xlu0
  %v1460 = vpop.trf.xlu0
  %v1461 = vpop.trf.xlu0
  %v1462 = vpop.trf.xlu0
  %v1463 = vpop.trf.xlu0
  %v1464 = vpop.trf.xlu0
  %v1465 = vpop.trf.xlu0
  %v1466 = vpop.trf.xlu0
  %v1468 = vsel %vm658, %v1419, 0
  %v1471 = vsel %vm658, %v1420, 0
  %v1474 = vsel %vm658, %v1421, 0
  %v1477 = vsel %vm658, %v1422, 0
  %v1480 = vsel %vm658, %v1423, 0
  %v1483 = vsel %vm658, %v1424, 0
  %v1486 = vsel %vm658, %v1425, 0
  %v1489 = vsel %vm658, %v1426, 0
  %1491 = vmatprep.subr.mxu0 0.0
  %1492 = vmatpush1.msra.mxu0 %v566
  %1493 = vmatprep.subr.mxu0 0.0
  %1494 = vmatpush1.msra.mxu0 0.0
  %1495 = vmatprep.subr.mxu0 0.0
  %1496 = vmatpush1.msra.mxu0 0.0
  %1497 = vmatprep.subr.mxu0 0.0
  %1498 = vmatpush1.msra.mxu0 0.0
  %1499 = vmatprep.subr.mxu0 0.0
  %1500 = vmatpush1.msra.mxu0 0.0
  %1501 = vmatprep.subr.mxu0 0.0
  %1502 = vmatpush1.msra.mxu0 0.0
  %1503 = vmatprep.subr.mxu0 0.0
  %1504 = vmatpush1.msra.mxu0 0.0
  %1505 = vmatprep.subr.mxu0 0.0
  %1506 = vmatpush1.msra.mxu0 0.0
  %1507 = vmatprep.subr.mxu0 0.0
  %1508 = vmatpush1.msra.mxu0 0.0
  %1509 = vmatprep.subr.mxu0 0.0
  %1510 = vmatpush1.msra.mxu0 0.0
  %1511 = vmatprep.subr.mxu0 0.0
  %1512 = vmatpush1.msra.mxu0 0.0
  %1513 = vmatprep.subr.mxu0 0.0
  %1514 = vmatpush1.msra.mxu0 0.0
  %1515 = vmatprep.subr.mxu0 0.0
  %1516 = vmatpush1.msra.mxu0 0.0
  %1517 = vmatprep.subr.mxu0 0.0
  %1518 = vmatpush1.msra.mxu0 0.0
  %1519 = vmatprep.subr.mxu0 0.0
  %1520 = vmatpush1.msra.mxu0 0.0
  %1521 = vmatprep.subr.mxu0 0.0
  %1522 = vmatpush1.msra.mxu0 0.0
  %1523 = vmatprep.subr.mxu0 0.0
  %1524 = vmatpush1.msra.mxu0 0.0
  %1525 = vmatprep.subr.mxu0 0.0
  %1526 = vmatpush1.msra.mxu0 0.0
  %1527 = vmatprep.subr.mxu0 0.0
  %1528 = vmatpush1.msra.mxu0 0.0
  %1529 = vmatprep.subr.mxu0 0.0
  %1530 = vmatpush1.msra.mxu0 0.0
  %1531 = vmatprep.subr.mxu0 0.0
  %1532 = vmatpush1.msra.mxu0 0.0
  %1533 = vmatprep.subr.mxu0 0.0
  %1534 = vmatpush1.msra.mxu0 0.0
  %1535 = vmatprep.subr.mxu0 0.0
  %1536 = vmatpush1.msra.mxu0 0.0
  %1537 = vmatprep.subr.mxu0 0.0
  %1538 = vmatpush1.msra.mxu0 0.0
  %1539 = vmatprep.subr.mxu0 0.0
  %1540 = vmatpush1.msra.mxu0 0.0
  %1541 = vmatprep.subr.mxu0 0.0
  %1542 = vmatpush1.msra.mxu0 0.0
  %1543 = vmatprep.subr.mxu0 0.0
  %1544 = vmatpush1.msra.mxu0 0.0
  %1545 = vmatprep.subr.mxu0 0.0
  %1546 = vmatpush1.msra.mxu0 0.0
  %1547 = vmatprep.subr.mxu0 0.0
  %1548 = vmatpush1.msra.mxu0 0.0
  %1549 = vmatprep.subr.mxu0 0.0
  %1550 = vmatpush1.msra.mxu0 0.0
  %1551 = vmatprep.subr.mxu0 0.0
  %1552 = vmatpush1.msra.mxu0 0.0
  %1553 = vmatprep.subr.mxu0 0.0
  %1554 = vmatpush1.msra.mxu0 0.0
  %1555 = vmatprep.mubr.f32.mxu0 0.0
  %1556 = vmatmul.mubr.f32.gmra.mrb[0].mxu0 %v1468
  %v1557 = vpop.f32.mrb[0].mxu0
  %v1558 = vadd.f32 0.0, %v1557
  %v1559 = vpop.f32.mrb[0].mxu0
  %1560 = vmatprep.mubr.f32.mxu0 0.0
  %1561 = vmatmul.mubr.f32.gmra.mrb[0].mxu0 %v1471
  %v1562 = vpop.f32.mrb[0].mxu0
  %v1563 = vadd.f32 0.0, %v1562
  %v1564 = vpop.f32.mrb[0].mxu0
  %1565 = vmatprep.mubr.f32.mxu0 0.0
  %1566 = vmatmul.mubr.f32.gmra.mrb[0].mxu0 %v1474
  %v1567 = vpop.f32.mrb[0].mxu0
  %v1568 = vadd.f32 0.0, %v1567
  %v1569 = vpop.f32.mrb[0].mxu0
  %1570 = vmatprep.mubr.f32.mxu0 0.0
  %1571 = vmatmul.mubr.f32.gmra.mrb[0].mxu0 %v1477
  %v1572 = vpop.f32.mrb[0].mxu0
  %v1573 = vadd.f32 0.0, %v1572
  %v1574 = vpop.f32.mrb[0].mxu0
  %1575 = vmatprep.mubr.f32.mxu0 0.0
  %1576 = vmatmul.mubr.f32.gmra.mrb[0].mxu0 %v1480
  %v1577 = vpop.f32.mrb[0].mxu0
  %v1578 = vadd.f32 0.0, %v1577
  %v1579 = vpop.f32.mrb[0].mxu0
  %1580 = vmatprep.mubr.f32.mxu0 0.0
  %1581 = vmatmul.mubr.f32.gmra.mrb[0].mxu0 %v1483
  %v1582 = vpop.f32.mrb[0].mxu0
  %v1583 = vadd.f32 0.0, %v1582
  %v1584 = vpop.f32.mrb[0].mxu0
  %1585 = vmatprep.mubr.f32.mxu0 0.0
  %1586 = vmatmul.mubr.f32.gmra.mrb[0].mxu0 %v1486
  %v1587 = vpop.f32.mrb[0].mxu0
  %v1588 = vadd.f32 0.0, %v1587
  %v1589 = vpop.f32.mrb[0].mxu0
  %1590 = vmatprep.mubr.f32.mxu0 0.0
  %1591 = vmatmul.mubr.f32.gmra.mrb[0].mxu0 %v1489
  %v1592 = vpop.f32.mrb[0].mxu0
  %v1593 = vadd.f32 0.0, %v1592
  %v1594 = vpop.f32.mrb[0].mxu0
  %1595 = vdwg.mxu0
  %v1597 = vsel %vm658, %v1451, 0
  %v1600 = vsel %vm658, %v1452, 0
  %v1603 = vsel %vm658, %v1453, 0
  %v1606 = vsel %vm658, %v1454, 0
  %v1609 = vsel %vm658, %v1455, 0
  %v1612 = vsel %vm658, %v1456, 0
  %v1615 = vsel %vm658, %v1457, 0
  %v1618 = vsel %vm658, %v1458, 0
  %1620 = vmatprep.subr.mxu0 0.0
  %1621 = vmatpush1.msra.mxu0 %v571
  %1622 = vmatprep.subr.mxu0 0.0
  %1623 = vmatpush1.msra.mxu0 0.0
  %1624 = vmatprep.subr.mxu0 0.0
  %1625 = vmatpush1.msra.mxu0 0.0
  %1626 = vmatprep.subr.mxu0 0.0
  %1627 = vmatpush1.msra.mxu0 0.0
  %1628 = vmatprep.subr.mxu0 0.0
  %1629 = vmatpush1.msra.mxu0 0.0
  %1630 = vmatprep.subr.mxu0 0.0
  %1631 = vmatpush1.msra.mxu0 0.0
  %1632 = vmatprep.subr.mxu0 0.0
  %1633 = vmatpush1.msra.mxu0 0.0
  %1634 = vmatprep.subr.mxu0 0.0
  %1635 = vmatpush1.msra.mxu0 0.0
  %1636 = vmatprep.subr.mxu0 0.0
  %1637 = vmatpush1.msra.mxu0 0.0
  %1638 = vmatprep.subr.mxu0 0.0
  %1639 = vmatpush1.msra.mxu0 0.0
  %1640 = vmatprep.subr.mxu0 0.0
  %1641 = vmatpush1.msra.mxu0 0.0
  %1642 = vmatprep.subr.mxu0 0.0
  %1643 = vmatpush1.msra.mxu0 0.0
  %1644 = vmatprep.subr.mxu0 0.0
  %1645 = vmatpush1.msra.mxu0 0.0
  %1646 = vmatprep.subr.mxu0 0.0
  %1647 = vmatpush1.msra.mxu0 0.0
  %1648 = vmatprep.subr.mxu0 0.0
  %1649 = vmatpush1.msra.mxu0 0.0
  %1650 = vmatprep.subr.mxu0 0.0
  %1651 = vmatpush1.msra.mxu0 0.0
  %1652 = vmatprep.subr.mxu0 0.0
  %1653 = vmatpush1.msra.mxu0 0.0
  %1654 = vmatprep.subr.mxu0 0.0
  %1655 = vmatpush1.msra.mxu0 0.0
  %1656 = vmatprep.subr.mxu0 0.0
  %1657 = vmatpush1.msra.mxu0 0.0
  %1658 = vmatprep.subr.mxu0 0.0
  %1659 = vmatpush1.msra.mxu0 0.0
  %1660 = vmatprep.subr.mxu0 0.0
  %1661 = vmatpush1.msra.mxu0 0.0
  %1662 = vmatprep.subr.mxu0 0.0
  %1663 = vmatpush1.msra.mxu0 0.0
  %1664 = vmatprep.subr.mxu0 0.0
  %1665 = vmatpush1.msra.mxu0 0.0
  %1666 = vmatprep.subr.mxu0 0.0
  %1667 = vmatpush1.msra.mxu0 0.0
  %1668 = vmatprep.subr.mxu0 0.0
  %1669 = vmatpush1.msra.mxu0 0.0
  %1670 = vmatprep.subr.mxu0 0.0
  %1671 = vmatpush1.msra.mxu0 0.0
  %1672 = vmatprep.subr.mxu0 0.0
  %1673 = vmatpush1.msra.mxu0 0.0
  %1674 = vmatprep.subr.mxu0 0.0
  %1675 = vmatpush1.msra.mxu0 0.0
  %1676 = vmatprep.subr.mxu0 0.0
  %1677 = vmatpush1.msra.mxu0 0.0
  %1678 = vmatprep.subr.mxu0 0.0
  %1679 = vmatpush1.msra.mxu0 0.0
  %1680 = vmatprep.subr.mxu0 0.0
  %1681 = vmatpush1.msra.mxu0 0.0
  %1682 = vmatprep.subr.mxu0 0.0
  %1683 = vmatpush1.msra.mxu0 0.0
  %1684 = vmatprep.mubr.f32.mxu0 0.0
  %1685 = vmatmul.mubr.f32.gmra.mrb[0].mxu0 %v1597
  %v1686 = vpop.f32.mrb[0].mxu0
  %v1687 = vadd.f32 0.0, %v1686
  %v1688 = vpop.f32.mrb[0].mxu0
  %1689 = vmatprep.mubr.f32.mxu0 0.0
  %1690 = vmatmul.mubr.f32.gmra.mrb[0].mxu0 %v1600
  %v1691 = vpop.f32.mrb[0].mxu0
  %v1692 = vadd.f32 0.0, %v1691
  %v1693 = vpop.f32.mrb[0].mxu0
  %1694 = vmatprep.mubr.f32.mxu0 0.0
  %1695 = vmatmul.mubr.f32.gmra.mrb[0].mxu0 %v1603
  %v1696 = vpop.f32.mrb[0].mxu0
  %v1697 = vadd.f32 0.0, %v1696
  %v1698 = vpop.f32.mrb[0].mxu0
  %1699 = vmatprep.mubr.f32.mxu0 0.0
  %1700 = vmatmul.mubr.f32.gmra.mrb[0].mxu0 %v1606
  %v1701 = vpop.f32.mrb[0].mxu0
  %v1702 = vadd.f32 0.0, %v1701
  %v1703 = vpop.f32.mrb[0].mxu0
  %1704 = vmatprep.mubr.f32.mxu0 0.0
  %1705 = vmatmul.mubr.f32.gmra.mrb[0].mxu0 %v1609
  %v1706 = vpop.f32.mrb[0].mxu0
  %v1707 = vadd.f32 0.0, %v1706
  %v1708 = vpop.f32.mrb[0].mxu0
  %1709 = vmatprep.mubr.f32.mxu0 0.0
  %1710 = vmatmul.mubr.f32.gmra.mrb[0].mxu0 %v1612
  %v1711 = vpop.f32.mrb[0].mxu0
  %v1712 = vadd.f32 0.0, %v1711
  %v1713 = vpop.f32.mrb[0].mxu0
  %1714 = vmatprep.mubr.f32.mxu0 0.0
  %1715 = vmatmul.mubr.f32.gmra.mrb[0].mxu0 %v1615
  %v1716 = vpop.f32.mrb[0].mxu0
  %v1717 = vadd.f32 0.0, %v1716
  %v1718 = vpop.f32.mrb[0].mxu0
  %1719 = vmatprep.mubr.f32.mxu0 0.0
  %1720 = vmatmul.mubr.f32.gmra.mrb[0].mxu0 %v1618
  %v1721 = vpop.f32.mrb[0].mxu0
  %v1722 = vadd.f32 0.0, %v1721
  %v1723 = vpop.f32.mrb[0].mxu0
  %1724 = vdwg.mxu0
  %v1725 = vsel %vm31, %v1558, -inf
  %1726 = vmax.xlane.f32.xlu0 %v1725
  %v1727 = vpop.xlane.xlu0 %1726
  %v1728 = vsel %vm31, %v1563, -inf
  %1729 = vmax.xlane.f32.xlu0 %v1728
  %v1730 = vpop.xlane.xlu0 %1729
  %v1731 = vsel %vm31, %v1568, -inf
  %1732 = vmax.xlane.f32.xlu0 %v1731
  %v1733 = vpop.xlane.xlu0 %1732
  %v1734 = vsel %vm31, %v1573, -inf
  %1735 = vmax.xlane.f32.xlu0 %v1734
  %v1736 = vpop.xlane.xlu0 %1735
  %v1737 = vsel %vm31, %v1578, -inf
  %1738 = vmax.xlane.f32.xlu0 %v1737
  %v1739 = vpop.xlane.xlu0 %1738
  %v1740 = vsel %vm31, %v1583, -inf
  %1741 = vmax.xlane.f32.xlu0 %v1740
  %v1742 = vpop.xlane.xlu0 %1741
  %v1743 = vsel %vm31, %v1588, -inf
  %1744 = vmax.xlane.f32.xlu0 %v1743
  %v1745 = vpop.xlane.xlu0 %1744
  %v1746 = vsel %vm31, %v1593, -inf
  %1747 = vmax.xlane.f32.xlu0 %v1746
  %v1748 = vpop.xlane.xlu0 %1747
  %v1749 = vsel %vm31, %v1687, -inf
  %1750 = vmax.xlane.f32.xlu0 %v1749
  %v1751 = vpop.xlane.xlu0 %1750
  %v1752 = vsel %vm31, %v1692, -inf
  %1753 = vmax.xlane.f32.xlu0 %v1752
  %v1754 = vpop.xlane.xlu0 %1753
  %v1755 = vsel %vm31, %v1697, -inf
  %1756 = vmax.xlane.f32.xlu0 %v1755
  %v1757 = vpop.xlane.xlu0 %1756
  %v1758 = vsel %vm31, %v1702, -inf
  %1759 = vmax.xlane.f32.xlu0 %v1758
  %v1760 = vpop.xlane.xlu0 %1759
  %v1761 = vsel %vm31, %v1707, -inf
  %1762 = vmax.xlane.f32.xlu0 %v1761
  %v1763 = vpop.xlane.xlu0 %1762
  %v1764 = vsel %vm31, %v1712, -inf
  %1765 = vmax.xlane.f32.xlu0 %v1764
  %v1766 = vpop.xlane.xlu0 %1765
  %v1767 = vsel %vm31, %v1717, -inf
  %1768 = vmax.xlane.f32.xlu0 %v1767
  %v1769 = vpop.xlane.xlu0 %1768
  %v1770 = vsel %vm31, %v1722, -inf
  %1771 = vmax.xlane.f32.xlu0 %v1770
  %v1772 = vpop.xlane.xlu0 %1771
  %v1773 = vsub.f32 %v1558, %v1727
  %v1774 = vsub.f32 %v1563, %v1730
  %v1775 = vsub.f32 %v1568, %v1733
  %v1776 = vsub.f32 %v1573, %v1736
  %v1777 = vsub.f32 %v1578, %v1739
  %v1778 = vsub.f32 %v1583, %v1742
  %v1779 = vsub.f32 %v1588, %v1745
  %v1780 = vsub.f32 %v1593, %v1748
  %v1781 = vsub.f32 %v1687, %v1751
  %v1782 = vsub.f32 %v1692, %v1754
  %v1783 = vsub.f32 %v1697, %v1757
  %v1784 = vsub.f32 %v1702, %v1760
  %v1785 = vsub.f32 %v1707, %v1763
  %v1786 = vsub.f32 %v1712, %v1766
  %v1787 = vsub.f32 %v1717, %v1769
  %v1788 = vsub.f32 %v1722, %v1772
  %v1789 = vmul.f32 %v1773, 1.442695
  %v1790 = vpow.pop %v1789
  %v1791 = vmul.f32 %v1774, 1.442695
  %v1792 = vpow.pop %v1791
  %v1793 = vmul.f32 %v1775, 1.442695
  %v1794 = vpow.pop %v1793
  %v1795 = vmul.f32 %v1776, 1.442695
  %v1796 = vpow.pop %v1795
  %v1797 = vmul.f32 %v1777, 1.442695
  %v1798 = vpow.pop %v1797
  %v1799 = vmul.f32 %v1778, 1.442695
  %v1800 = vpow.pop %v1799
  %v1801 = vmul.f32 %v1779, 1.442695
  %v1802 = vpow.pop %v1801
  %v1803 = vmul.f32 %v1780, 1.442695
  %v1804 = vpow.pop %v1803
  %v1805 = vmul.f32 %v1781, 1.442695
  %v1806 = vpow.pop %v1805
  %v1807 = vmul.f32 %v1782, 1.442695
  %v1808 = vpow.pop %v1807
  %v1809 = vmul.f32 %v1783, 1.442695
  %v1810 = vpow.pop %v1809
  %v1811 = vmul.f32 %v1784, 1.442695
  %v1812 = vpow.pop %v1811
  %v1813 = vmul.f32 %v1785, 1.442695
  %v1814 = vpow.pop %v1813
  %v1815 = vmul.f32 %v1786, 1.442695
  %v1816 = vpow.pop %v1815
  %v1817 = vmul.f32 %v1787, 1.442695
  %v1818 = vpow.pop %v1817
  %v1819 = vmul.f32 %v1788, 1.442695
  %v1820 = vpow.pop %v1819
  %v1821 = vsel %vm31, %v1790, 0.0
  %1822 = vadd.xlane.f32.xlu0 %v1821
  %v1823 = vpop.xlane.xlu0 %1822
  %v1824 = vsel %vm31, %v1792, 0.0
  %1825 = vadd.xlane.f32.xlu0 %v1824
  %v1826 = vpop.xlane.xlu0 %1825
  %v1827 = vsel %vm31, %v1794, 0.0
  %1828 = vadd.xlane.f32.xlu0 %v1827
  %v1829 = vpop.xlane.xlu0 %1828
  %v1830 = vsel %vm31, %v1796, 0.0
  %1831 = vadd.xlane.f32.xlu0 %v1830
  %v1832 = vpop.xlane.xlu0 %1831
  %v1833 = vsel %vm31, %v1798, 0.0
  %1834 = vadd.xlane.f32.xlu0 %v1833
  %v1835 = vpop.xlane.xlu0 %1834
  %v1836 = vsel %vm31, %v1800, 0.0
  %1837 = vadd.xlane.f32.xlu0 %v1836
  %v1838 = vpop.xlane.xlu0 %1837
  %v1839 = vsel %vm31, %v1802, 0.0
  %1840 = vadd.xlane.f32.xlu0 %v1839
  %v1841 = vpop.xlane.xlu0 %1840
  %v1842 = vsel %vm31, %v1804, 0.0
  %1843 = vadd.xlane.f32.xlu0 %v1842
  %v1844 = vpop.xlane.xlu0 %1843
  %v1845 = vsel %vm31, %v1806, 0.0
  %1846 = vadd.xlane.f32.xlu0 %v1845
  %v1847 = vpop.xlane.xlu0 %1846
  %v1848 = vsel %vm31, %v1808, 0.0
  %1849 = vadd.xlane.f32.xlu0 %v1848
  %v1850 = vpop.xlane.xlu0 %1849
  %v1851 = vsel %vm31, %v1810, 0.0
  %1852 = vadd.xlane.f32.xlu0 %v1851
  %v1853 = vpop.xlane.xlu0 %1852
  %v1854 = vsel %vm31, %v1812, 0.0
  %1855 = vadd.xlane.f32.xlu0 %v1854
  %v1856 = vpop.xlane.xlu0 %1855
  %v1857 = vsel %vm31, %v1814, 0.0
  %1858 = vadd.xlane.f32.xlu0 %v1857
  %v1859 = vpop.xlane.xlu0 %1858
  %v1860 = vsel %vm31, %v1816, 0.0
  %1861 = vadd.xlane.f32.xlu0 %v1860
  %v1862 = vpop.xlane.xlu0 %1861
  %v1863 = vsel %vm31, %v1818, 0.0
  %1864 = vadd.xlane.f32.xlu0 %v1863
  %v1865 = vpop.xlane.xlu0 %1864
  %v1866 = vsel %vm31, %v1820, 0.0
  %1867 = vadd.xlane.f32.xlu0 %v1866
  %v1868 = vpop.xlane.xlu0 %1867
  %v1870 = vsel %vm31, %v586, 0
  %v1873 = vsel %vm31, %v1790, 0
  %v1876 = vsel %vm31, %v1792, 0
  %v1879 = vsel %vm31, %v1794, 0
  %v1882 = vsel %vm31, %v1796, 0
  %v1885 = vsel %vm31, %v1798, 0
  %v1888 = vsel %vm31, %v1800, 0
  %v1891 = vsel %vm31, %v1802, 0
  %v1894 = vsel %vm31, %v1804, 0
  %1896 = vmatprep.subr.mxu0 0.0
  %1897 = vmatpush1.xpose.msra.mxu0 %v1873
  %1898 = vmatprep.subr.mxu0 0.0
  %1899 = vmatpush1.xpose.msra.mxu0 %v1876
  %1900 = vmatprep.subr.mxu0 0.0
  %1901 = vmatpush1.xpose.msra.mxu0 %v1879
  %1902 = vmatprep.subr.mxu0 0.0
  %1903 = vmatpush1.xpose.msra.mxu0 %v1882
  %1904 = vmatprep.subr.mxu0 0.0
  %1905 = vmatpush1.xpose.msra.mxu0 %v1885
  %1906 = vmatprep.subr.mxu0 0.0
  %1907 = vmatpush1.xpose.msra.mxu0 %v1888
  %1908 = vmatprep.subr.mxu0 0.0
  %1909 = vmatpush1.xpose.msra.mxu0 %v1891
  %1910 = vmatprep.subr.mxu0 0.0
  %1911 = vmatpush1.xpose.msra.mxu0 %v1894
  %1912 = vmatprep.subr.mxu0 0.0
  %1913 = vmatpush1.xpose.msra.mxu0 0.0
  %1914 = vmatprep.subr.mxu0 0.0
  %1915 = vmatpush1.xpose.msra.mxu0 0.0
  %1916 = vmatprep.subr.mxu0 0.0
  %1917 = vmatpush1.xpose.msra.mxu0 0.0
  %1918 = vmatprep.subr.mxu0 0.0
  %1919 = vmatpush1.xpose.msra.mxu0 0.0
  %1920 = vmatprep.subr.mxu0 0.0
  %1921 = vmatpush1.xpose.msra.mxu0 0.0
  %1922 = vmatprep.subr.mxu0 0.0
  %1923 = vmatpush1.xpose.msra.mxu0 0.0
  %1924 = vmatprep.subr.mxu0 0.0
  %1925 = vmatpush1.xpose.msra.mxu0 0.0
  %1926 = vmatprep.subr.mxu0 0.0
  %1927 = vmatpush1.xpose.msra.mxu0 0.0
  %1928 = vmatprep.subr.mxu0 0.0
  %1929 = vmatpush1.xpose.msra.mxu0 0.0
  %1930 = vmatprep.subr.mxu0 0.0
  %1931 = vmatpush1.xpose.msra.mxu0 0.0
  %1932 = vmatprep.subr.mxu0 0.0
  %1933 = vmatpush1.xpose.msra.mxu0 0.0
  %1934 = vmatprep.subr.mxu0 0.0
  %1935 = vmatpush1.xpose.msra.mxu0 0.0
  %1936 = vmatprep.subr.mxu0 0.0
  %1937 = vmatpush1.xpose.msra.mxu0 0.0
  %1938 = vmatprep.subr.mxu0 0.0
  %1939 = vmatpush1.xpose.msra.mxu0 0.0
  %1940 = vmatprep.subr.mxu0 0.0
  %1941 = vmatpush1.xpose.msra.mxu0 0.0
  %1942 = vmatprep.subr.mxu0 0.0
  %1943 = vmatpush1.xpose.msra.mxu0 0.0
  %1944 = vmatprep.subr.mxu0 0.0
  %1945 = vmatpush1.xpose.msra.mxu0 0.0
  %1946 = vmatprep.subr.mxu0 0.0
  %1947 = vmatpush1.xpose.msra.mxu0 0.0
  %1948 = vmatprep.subr.mxu0 0.0
  %1949 = vmatpush1.xpose.msra.mxu0 0.0
  %1950 = vmatprep.subr.mxu0 0.0
  %1951 = vmatpush1.xpose.msra.mxu0 0.0
  %1952 = vmatprep.subr.mxu0 0.0
  %1953 = vmatpush1.xpose.msra.mxu0 0.0
  %1954 = vmatprep.subr.mxu0 0.0
  %1955 = vmatpush1.xpose.msra.mxu0 0.0
  %1956 = vmatprep.subr.mxu0 0.0
  %1957 = vmatpush1.xpose.msra.mxu0 0.0
  %1958 = vmatprep.subr.mxu0 0.0
  %1959 = vmatpush1.xpose.msra.mxu0 0.0
  %1960 = vmatprep.mubr.f32.mxu0 0.0
  %1961 = vmatmul.mubr.f32.gmra.mrb[0].mxu0 %v1870
  %v1962 = vpop.f32.mrb[0].mxu0
  %v1963 = vadd.f32 0.0, %v1962
  %v1964 = vpop.f32.mrb[0].mxu0
  %1965 = vdwg.mxu0
  %v1967 = vsel %vm31, %v591, 0
  %v1970 = vsel %vm31, %v1806, 0
  %v1973 = vsel %vm31, %v1808, 0
  %v1976 = vsel %vm31, %v1810, 0
  %v1979 = vsel %vm31, %v1812, 0
  %v1982 = vsel %vm31, %v1814, 0
  %v1985 = vsel %vm31, %v1816, 0
  %v1988 = vsel %vm31, %v1818, 0
  %v1991 = vsel %vm31, %v1820, 0
  %1993 = vmatprep.subr.mxu0 0.0
  %1994 = vmatpush1.xpose.msra.mxu0 %v1970
  %1995 = vmatprep.subr.mxu0 0.0
  %1996 = vmatpush1.xpose.msra.mxu0 %v1973
  %1997 = vmatprep.subr.mxu0 0.0
  %1998 = vmatpush1.xpose.msra.mxu0 %v1976
  %1999 = vmatprep.subr.mxu0 0.0
  %2000 = vmatpush1.xpose.msra.mxu0 %v1979
  %2001 = vmatprep.subr.mxu0 0.0
  %2002 = vmatpush1.xpose.msra.mxu0 %v1982
  %2003 = vmatprep.subr.mxu0 0.0
  %2004 = vmatpush1.xpose.msra.mxu0 %v1985
  %2005 = vmatprep.subr.mxu0 0.0
  %2006 = vmatpush1.xpose.msra.mxu0 %v1988
  %2007 = vmatprep.subr.mxu0 0.0
  %2008 = vmatpush1.xpose.msra.mxu0 %v1991
  %2009 = vmatprep.subr.mxu0 0.0
  %2010 = vmatpush1.xpose.msra.mxu0 0.0
  %2011 = vmatprep.subr.mxu0 0.0
  %2012 = vmatpush1.xpose.msra.mxu0 0.0
  %2013 = vmatprep.subr.mxu0 0.0
  %2014 = vmatpush1.xpose.msra.mxu0 0.0
  %2015 = vmatprep.subr.mxu0 0.0
  %2016 = vmatpush1.xpose.msra.mxu0 0.0
  %2017 = vmatprep.subr.mxu0 0.0
  %2018 = vmatpush1.xpose.msra.mxu0 0.0
  %2019 = vmatprep.subr.mxu0 0.0
  %2020 = vmatpush1.xpose.msra.mxu0 0.0
  %2021 = vmatprep.subr.mxu0 0.0
  %2022 = vmatpush1.xpose.msra.mxu0 0.0
  %2023 = vmatprep.subr.mxu0 0.0
  %2024 = vmatpush1.xpose.msra.mxu0 0.0
  %2025 = vmatprep.subr.mxu0 0.0
  %2026 = vmatpush1.xpose.msra.mxu0 0.0
  %2027 = vmatprep.subr.mxu0 0.0
  %2028 = vmatpush1.xpose.msra.mxu0 0.0
  %2029 = vmatprep.subr.mxu0 0.0
  %2030 = vmatpush1.xpose.msra.mxu0 0.0
  %2031 = vmatprep.subr.mxu0 0.0
  %2032 = vmatpush1.xpose.msra.mxu0 0.0
  %2033 = vmatprep.subr.mxu0 0.0
  %2034 = vmatpush1.xpose.msra.mxu0 0.0
  %2035 = vmatprep.subr.mxu0 0.0
  %2036 = vmatpush1.xpose.msra.mxu0 0.0
  %2037 = vmatprep.subr.mxu0 0.0
  %2038 = vmatpush1.xpose.msra.mxu0 0.0
  %2039 = vmatprep.subr.mxu0 0.0
  %2040 = vmatpush1.xpose.msra.mxu0 0.0
  %2041 = vmatprep.subr.mxu0 0.0
  %2042 = vmatpush1.xpose.msra.mxu0 0.0
  %2043 = vmatprep.subr.mxu0 0.0
  %2044 = vmatpush1.xpose.msra.mxu0 0.0
  %2045 = vmatprep.subr.mxu0 0.0
  %2046 = vmatpush1.xpose.msra.mxu0 0.0
  %2047 = vmatprep.subr.mxu0 0.0
  %2048 = vmatpush1.xpose.msra.mxu0 0.0
  %2049 = vmatprep.subr.mxu0 0.0
  %2050 = vmatpush1.xpose.msra.mxu0 0.0
  %2051 = vmatprep.subr.mxu0 0.0
  %2052 = vmatpush1.xpose.msra.mxu0 0.0
  %2053 = vmatprep.subr.mxu0 0.0
  %2054 = vmatpush1.xpose.msra.mxu0 0.0
  %2055 = vmatprep.subr.mxu0 0.0
  %2056 = vmatpush1.xpose.msra.mxu0 0.0
  %2057 = vmatprep.mubr.f32.mxu0 0.0
  %2058 = vmatmul.mubr.f32.gmra.mrb[0].mxu0 %v1967
  %v2059 = vpop.f32.mrb[0].mxu0
  %v2060 = vadd.f32 0.0, %v2059
  %v2061 = vpop.f32.mrb[0].mxu0
  %2062 = vdwg.mxu0
  %v2063 = vrcp.pop %v1823
  %v2064 = vrcp.pop %v1826
  %v2065 = vrcp.pop %v1829
  %v2066 = vrcp.pop %v1832
  %v2067 = vrcp.pop %v1835
  %v2068 = vrcp.pop %v1838
  %v2069 = vrcp.pop %v1841
  %v2070 = vrcp.pop %v1844
  %v2071 = vrcp.pop %v1847
  %v2072 = vrcp.pop %v1850
  %v2073 = vrcp.pop %v1853
  %v2074 = vrcp.pop %v1856
  %v2075 = vrcp.pop %v1859
  %v2076 = vrcp.pop %v1862
  %v2077 = vrcp.pop %v1865
  %v2078 = vrcp.pop %v1868
  %v2095 = vlaneseq
  %v2096 = vshrl.u32 %v2095, 7
  %v2097 = vsub.s32 %v1288, %v2096
  %v2098 = vrot.slane %v2063, %v2097
  %v2099 = vlaneseq
  %v2100 = vshrl.u32 %v2099, 7
  %v2101 = vsub.s32 %v1293, %v2100
  %v2102 = vrot.slane %v2064, %v2101
  %v2103 = vsel %vm1298, %v2102, %v2098
  %v2104 = vlaneseq
  %v2105 = vshrl.u32 %v2104, 7
  %v2106 = vsub.s32 %v1300, %v2105
  %v2107 = vrot.slane %v2065, %v2106
  %v2108 = vsel %vm1305, %v2107, %v2103
  %v2109 = vlaneseq
  %v2110 = vshrl.u32 %v2109, 7
  %v2111 = vsub.s32 %v1307, %v2110
  %v2112 = vrot.slane %v2066, %v2111
  %v2113 = vsel %vm1312, %v2112, %v2108
  %v2114 = vlaneseq
  %v2115 = vshrl.u32 %v2114, 7
  %v2116 = vsub.s32 %v1314, %v2115
  %v2117 = vrot.slane %v2067, %v2116
  %v2118 = vsel %vm1319, %v2117, %v2113
  %v2119 = vlaneseq
  %v2120 = vshrl.u32 %v2119, 7
  %v2121 = vsub.s32 %v1321, %v2120
  %v2122 = vrot.slane %v2068, %v2121
  %v2123 = vsel %vm1326, %v2122, %v2118
  %v2124 = vlaneseq
  %v2125 = vshrl.u32 %v2124, 7
  %v2126 = vsub.s32 %v1328, %v2125
  %v2127 = vrot.slane %v2069, %v2126
  %v2128 = vsel %vm1333, %v2127, %v2123
  %v2129 = vlaneseq
  %v2130 = vshrl.u32 %v2129, 7
  %v2131 = vsub.s32 %v1335, %v2130
  %v2132 = vrot.slane %v2070, %v2131
  %v2133 = vsel %vm1340, %v2132, %v2128
  %v2134 = vlaneseq
  %v2135 = vshrl.u32 %v2134, 7
  %v2136 = vsub.s32 %v1288, %v2135
  %v2137 = vrot.slane %v2071, %v2136
  %v2138 = vlaneseq
  %v2139 = vshrl.u32 %v2138, 7
  %v2140 = vsub.s32 %v1293, %v2139
  %v2141 = vrot.slane %v2072, %v2140
  %v2142 = vsel %vm1298, %v2141, %v2137
  %v2143 = vlaneseq
  %v2144 = vshrl.u32 %v2143, 7
  %v2145 = vsub.s32 %v1300, %v2144
  %v2146 = vrot.slane %v2073, %v2145
  %v2147 = vsel %vm1305, %v2146, %v2142
  %v2148 = vlaneseq
  %v2149 = vshrl.u32 %v2148, 7
  %v2150 = vsub.s32 %v1307, %v2149
  %v2151 = vrot.slane %v2074, %v2150
  %v2152 = vsel %vm1312, %v2151, %v2147
  %v2153 = vlaneseq
  %v2154 = vshrl.u32 %v2153, 7
  %v2155 = vsub.s32 %v1314, %v2154
  %v2156 = vrot.slane %v2075, %v2155
  %v2157 = vsel %vm1319, %v2156, %v2152
  %v2158 = vlaneseq
  %v2159 = vshrl.u32 %v2158, 7
  %v2160 = vsub.s32 %v1321, %v2159
  %v2161 = vrot.slane %v2076, %v2160
  %v2162 = vsel %vm1326, %v2161, %v2157
  %v2163 = vlaneseq
  %v2164 = vshrl.u32 %v2163, 7
  %v2165 = vsub.s32 %v1328, %v2164
  %v2166 = vrot.slane %v2077, %v2165
  %v2167 = vsel %vm1333, %v2166, %v2162
  %v2168 = vlaneseq
  %v2169 = vshrl.u32 %v2168, 7
  %v2170 = vsub.s32 %v1335, %v2169
  %v2171 = vrot.slane %v2078, %v2170
  %v2172 = vsel %vm1340, %v2171, %v2167
  %v2173 = vsel %vm1381, %v2133, %v2133
  %v2174 = vsel %vm1383, %v2133, %v2173
  %v2175 = vsel %vm1385, %v2133, %v2174
  %v2176 = vsel %vm1387, %v2133, %v2175
  %v2177 = vsel %vm1389, %v2133, %v2176
  %v2178 = vsel %vm1391, %v2133, %v2177
  %v2179 = vsel %vm1381, %v2172, %v2172
  %v2180 = vsel %vm1383, %v2172, %v2179
  %v2181 = vsel %vm1385, %v2172, %v2180
  %v2182 = vsel %vm1387, %v2172, %v2181
  %v2183 = vsel %vm1389, %v2172, %v2182
  %v2184 = vsel %vm1391, %v2172, %v2183
  %v2187 = vmul.f32 %v1963, %v2178
  %v2188 = vmul.f32 %v2060, %v2184
  %2191 = vrot.lane.b32.xlu0 %v536, 64
  %v2192 = vpop.permute.xlu0 %2191
  %2193 = vrot.lane.b32.xlu0 %v541, 64
  %v2194 = vpop.permute.xlu0 %2193
  %2197 = vxpose.xlu0.b32.start [1/16] %v2192, 128
  %2198 = vxpose.xlu0.b32.cont [2/16] 0.0, 128
  %2199 = vxpose.xlu0.b32.cont [3/16] 0.0, 128
  %2200 = vxpose.xlu0.b32.cont [4/16] 0.0, 128
  %2201 = vxpose.xlu0.b32.cont [5/16] 0.0, 128
  %2202 = vxpose.xlu0.b32.cont [6/16] 0.0, 128
  %2203 = vxpose.xlu0.b32.cont [7/16] 0.0, 128
  %2204 = vxpose.xlu0.b32.cont [8/16] 0.0, 128
  %2205 = vxpose.xlu0.b32.cont [9/16] 0.0, 128
  %2206 = vxpose.xlu0.b32.cont [10/16] 0.0, 128
  %2207 = vxpose.xlu0.b32.cont [11/16] 0.0, 128
  %2208 = vxpose.xlu0.b32.cont [12/16] 0.0, 128
  %2209 = vxpose.xlu0.b32.cont [13/16] 0.0, 128
  %2210 = vxpose.xlu0.b32.cont [14/16] 0.0, 128
  %2211 = vxpose.xlu0.b32.cont [15/16] 0.0, 128
  %2212 = vxpose.xlu0.b32.end [16/16] 0.0, 128
  %v2213 = vpop.trf.xlu0
  %v2214 = vpop.trf.xlu0
  %v2215 = vpop.trf.xlu0
  %v2216 = vpop.trf.xlu0
  %v2217 = vpop.trf.xlu0
  %v2218 = vpop.trf.xlu0
  %v2219 = vpop.trf.xlu0
  %v2220 = vpop.trf.xlu0
  %v2221 = vpop.trf.xlu0
  %v2222 = vpop.trf.xlu0
  %v2223 = vpop.trf.xlu0
  %v2224 = vpop.trf.xlu0
  %v2225 = vpop.trf.xlu0
  %v2226 = vpop.trf.xlu0
  %v2227 = vpop.trf.xlu0
  %v2228 = vpop.trf.xlu0
  %2229 = vxpose.xlu0.b32.start [1/16] %v2194, 128
  %2230 = vxpose.xlu0.b32.cont [2/16] 0.0, 128
  %2231 = vxpose.xlu0.b32.cont [3/16] 0.0, 128
  %2232 = vxpose.xlu0.b32.cont [4/16] 0.0, 128
  %2233 = vxpose.xlu0.b32.cont [5/16] 0.0, 128
  %2234 = vxpose.xlu0.b32.cont [6/16] 0.0, 128
  %2235 = vxpose.xlu0.b32.cont [7/16] 0.0, 128
  %2236 = vxpose.xlu0.b32.cont [8/16] 0.0, 128
  %2237 = vxpose.xlu0.b32.cont [9/16] 0.0, 128
  %2238 = vxpose.xlu0.b32.cont [10/16] 0.0, 128
  %2239 = vxpose.xlu0.b32.cont [11/16] 0.0, 128
  %2240 = vxpose.xlu0.b32.cont [12/16] 0.0, 128
  %2241 = vxpose.xlu0.b32.cont [13/16] 0.0, 128
  %2242 = vxpose.xlu0.b32.cont [14/16] 0.0, 128
  %2243 = vxpose.xlu0.b32.cont [15/16] 0.0, 128
  %2244 = vxpose.xlu0.b32.end [16/16] 0.0, 128
  %v2245 = vpop.trf.xlu0
  %v2246 = vpop.trf.xlu0
  %v2247 = vpop.trf.xlu0
  %v2248 = vpop.trf.xlu0
  %v2249 = vpop.trf.xlu0
  %v2250 = vpop.trf.xlu0
  %v2251 = vpop.trf.xlu0
  %v2252 = vpop.trf.xlu0
  %v2253 = vpop.trf.xlu0
  %v2254 = vpop.trf.xlu0
  %v2255 = vpop.trf.xlu0
  %v2256 = vpop.trf.xlu0
  %v2257 = vpop.trf.xlu0
  %v2258 = vpop.trf.xlu0
  %v2259 = vpop.trf.xlu0
  %v2260 = vpop.trf.xlu0
  %2262 = vrot.lane.b32.xlu0 %v556, 64
  %v2263 = vpop.permute.xlu0 %2262
  %v2266 = vsel %vm658, %v2213, 0
  %v2269 = vsel %vm658, %v2214, 0
  %v2272 = vsel %vm658, %v2215, 0
  %v2275 = vsel %vm658, %v2216, 0
  %v2278 = vsel %vm658, %v2217, 0
  %v2281 = vsel %vm658, %v2218, 0
  %v2284 = vsel %vm658, %v2219, 0
  %v2287 = vsel %vm658, %v2220, 0
  %2289 = vmatprep.subr.mxu0 0.0
  %2290 = vmatpush1.msra.mxu0 %v2263
  %2291 = vmatprep.subr.mxu0 0.0
  %2292 = vmatpush1.msra.mxu0 0.0
  %2293 = vmatprep.subr.mxu0 0.0
  %2294 = vmatpush1.msra.mxu0 0.0
  %2295 = vmatprep.subr.mxu0 0.0
  %2296 = vmatpush1.msra.mxu0 0.0
  %2297 = vmatprep.subr.mxu0 0.0
  %2298 = vmatpush1.msra.mxu0 0.0
  %2299 = vmatprep.subr.mxu0 0.0
  %2300 = vmatpush1.msra.mxu0 0.0
  %2301 = vmatprep.subr.mxu0 0.0
  %2302 = vmatpush1.msra.mxu0 0.0
  %2303 = vmatprep.subr.mxu0 0.0
  %2304 = vmatpush1.msra.mxu0 0.0
  %2305 = vmatprep.subr.mxu0 0.0
  %2306 = vmatpush1.msra.mxu0 0.0
  %2307 = vmatprep.subr.mxu0 0.0
  %2308 = vmatpush1.msra.mxu0 0.0
  %2309 = vmatprep.subr.mxu0 0.0
  %2310 = vmatpush1.msra.mxu0 0.0
  %2311 = vmatprep.subr.mxu0 0.0
  %2312 = vmatpush1.msra.mxu0 0.0
  %2313 = vmatprep.subr.mxu0 0.0
  %2314 = vmatpush1.msra.mxu0 0.0
  %2315 = vmatprep.subr.mxu0 0.0
  %2316 = vmatpush1.msra.mxu0 0.0
  %2317 = vmatprep.subr.mxu0 0.0
  %2318 = vmatpush1.msra.mxu0 0.0
  %2319 = vmatprep.subr.mxu0 0.0
  %2320 = vmatpush1.msra.mxu0 0.0
  %2321 = vmatprep.subr.mxu0 0.0
  %2322 = vmatpush1.msra.mxu0 0.0
  %2323 = vmatprep.subr.mxu0 0.0
  %2324 = vmatpush1.msra.mxu0 0.0
  %2325 = vmatprep.subr.mxu0 0.0
  %2326 = vmatpush1.msra.mxu0 0.0
  %2327 = vmatprep.subr.mxu0 0.0
  %2328 = vmatpush1.msra.mxu0 0.0
  %2329 = vmatprep.subr.mxu0 0.0
  %2330 = vmatpush1.msra.mxu0 0.0
  %2331 = vmatprep.subr.mxu0 0.0
  %2332 = vmatpush1.msra.mxu0 0.0
  %2333 = vmatprep.subr.mxu0 0.0
  %2334 = vmatpush1.msra.mxu0 0.0
  %2335 = vmatprep.subr.mxu0 0.0
  %2336 = vmatpush1.msra.mxu0 0.0
  %2337 = vmatprep.subr.mxu0 0.0
  %2338 = vmatpush1.msra.mxu0 0.0
  %2339 = vmatprep.subr.mxu0 0.0
  %2340 = vmatpush1.msra.mxu0 0.0
  %2341 = vmatprep.subr.mxu0 0.0
  %2342 = vmatpush1.msra.mxu0 0.0
  %2343 = vmatprep.subr.mxu0 0.0
  %2344 = vmatpush1.msra.mxu0 0.0
  %2345 = vmatprep.subr.mxu0 0.0
  %2346 = vmatpush1.msra.mxu0 0.0
  %2347 = vmatprep.subr.mxu0 0.0
  %2348 = vmatpush1.msra.mxu0 0.0
  %2349 = vmatprep.subr.mxu0 0.0
  %2350 = vmatpush1.msra.mxu0 0.0
  %2351 = vmatprep.subr.mxu0 0.0
  %2352 = vmatpush1.msra.mxu0 0.0
  %2353 = vmatprep.mubr.f32.mxu0 0.0
  %2354 = vmatmul.mubr.f32.gmra.mrb[0].mxu0 %v2266
  %v2355 = vpop.f32.mrb[0].mxu0
  %v2356 = vadd.f32 0.0, %v2355
  %v2357 = vpop.f32.mrb[0].mxu0
  %2358 = vmatprep.mubr.f32.mxu0 0.0
  %2359 = vmatmul.mubr.f32.gmra.mrb[0].mxu0 %v2269
  %v2360 = vpop.f32.mrb[0].mxu0
  %v2361 = vadd.f32 0.0, %v2360
  %v2362 = vpop.f32.mrb[0].mxu0
  %2363 = vmatprep.mubr.f32.mxu0 0.0
  %2364 = vmatmul.mubr.f32.gmra.mrb[0].mxu0 %v2272
  %v2365 = vpop.f32.mrb[0].mxu0
  %v2366 = vadd.f32 0.0, %v2365
  %v2367 = vpop.f32.mrb[0].mxu0
  %2368 = vmatprep.mubr.f32.mxu0 0.0
  %2369 = vmatmul.mubr.f32.gmra.mrb[0].mxu0 %v2275
  %v2370 = vpop.f32.mrb[0].mxu0
  %v2371 = vadd.f32 0.0, %v2370
  %v2372 = vpop.f32.mrb[0].mxu0
  %2373 = vmatprep.mubr.f32.mxu0 0.0
  %2374 = vmatmul.mubr.f32.gmra.mrb[0].mxu0 %v2278
  %v2375 = vpop.f32.mrb[0].mxu0
  %v2376 = vadd.f32 0.0, %v2375
  %v2377 = vpop.f32.mrb[0].mxu0
  %2378 = vmatprep.mubr.f32.mxu0 0.0
  %2379 = vmatmul.mubr.f32.gmra.mrb[0].mxu0 %v2281
  %v2380 = vpop.f32.mrb[0].mxu0
  %v2381 = vadd.f32 0.0, %v2380
  %v2382 = vpop.f32.mrb[0].mxu0
  %2383 = vmatprep.mubr.f32.mxu0 0.0
  %2384 = vmatmul.mubr.f32.gmra.mrb[0].mxu0 %v2284
  %v2385 = vpop.f32.mrb[0].mxu0
  %v2386 = vadd.f32 0.0, %v2385
  %v2387 = vpop.f32.mrb[0].mxu0
  %2388 = vmatprep.mubr.f32.mxu0 0.0
  %2389 = vmatmul.mubr.f32.gmra.mrb[0].mxu0 %v2287
  %v2390 = vpop.f32.mrb[0].mxu0
  %v2391 = vadd.f32 0.0, %v2390
  %v2392 = vpop.f32.mrb[0].mxu0
  %2393 = vdwg.mxu0
  %2395 = vrot.lane.b32.xlu0 %v561, 64
  %v2396 = vpop.permute.xlu0 %2395
  %v2399 = vsel %vm658, %v2245, 0
  %v2402 = vsel %vm658, %v2246, 0
  %v2405 = vsel %vm658, %v2247, 0
  %v2408 = vsel %vm658, %v2248, 0
  %v2411 = vsel %vm658, %v2249, 0
  %v2414 = vsel %vm658, %v2250, 0
  %v2417 = vsel %vm658, %v2251, 0
  %v2420 = vsel %vm658, %v2252, 0
  %2422 = vmatprep.subr.mxu0 0.0
  %2423 = vmatpush1.msra.mxu0 %v2396
  %2424 = vmatprep.subr.mxu0 0.0
  %2425 = vmatpush1.msra.mxu0 0.0
  %2426 = vmatprep.subr.mxu0 0.0
  %2427 = vmatpush1.msra.mxu0 0.0
  %2428 = vmatprep.subr.mxu0 0.0
  %2429 = vmatpush1.msra.mxu0 0.0
  %2430 = vmatprep.subr.mxu0 0.0
  %2431 = vmatpush1.msra.mxu0 0.0
  %2432 = vmatprep.subr.mxu0 0.0
  %2433 = vmatpush1.msra.mxu0 0.0
  %2434 = vmatprep.subr.mxu0 0.0
  %2435 = vmatpush1.msra.mxu0 0.0
  %2436 = vmatprep.subr.mxu0 0.0
  %2437 = vmatpush1.msra.mxu0 0.0
  %2438 = vmatprep.subr.mxu0 0.0
  %2439 = vmatpush1.msra.mxu0 0.0
  %2440 = vmatprep.subr.mxu0 0.0
  %2441 = vmatpush1.msra.mxu0 0.0
  %2442 = vmatprep.subr.mxu0 0.0
  %2443 = vmatpush1.msra.mxu0 0.0
  %2444 = vmatprep.subr.mxu0 0.0
  %2445 = vmatpush1.msra.mxu0 0.0
  %2446 = vmatprep.subr.mxu0 0.0
  %2447 = vmatpush1.msra.mxu0 0.0
  %2448 = vmatprep.subr.mxu0 0.0
  %2449 = vmatpush1.msra.mxu0 0.0
  %2450 = vmatprep.subr.mxu0 0.0
  %2451 = vmatpush1.msra.mxu0 0.0
  %2452 = vmatprep.subr.mxu0 0.0
  %2453 = vmatpush1.msra.mxu0 0.0
  %2454 = vmatprep.subr.mxu0 0.0
  %2455 = vmatpush1.msra.mxu0 0.0
  %2456 = vmatprep.subr.mxu0 0.0
  %2457 = vmatpush1.msra.mxu0 0.0
  %2458 = vmatprep.subr.mxu0 0.0
  %2459 = vmatpush1.msra.mxu0 0.0
  %2460 = vmatprep.subr.mxu0 0.0
  %2461 = vmatpush1.msra.mxu0 0.0
  %2462 = vmatprep.subr.mxu0 0.0
  %2463 = vmatpush1.msra.mxu0 0.0
  %2464 = vmatprep.subr.mxu0 0.0
  %2465 = vmatpush1.msra.mxu0 0.0
  %2466 = vmatprep.subr.mxu0 0.0
  %2467 = vmatpush1.msra.mxu0 0.0
  %2468 = vmatprep.subr.mxu0 0.0
  %2469 = vmatpush1.msra.mxu0 0.0
  %2470 = vmatprep.subr.mxu0 0.0
  %2471 = vmatpush1.msra.mxu0 0.0
  %2472 = vmatprep.subr.mxu0 0.0
  %2473 = vmatpush1.msra.mxu0 0.0
  %2474 = vmatprep.subr.mxu0 0.0
  %2475 = vmatpush1.msra.mxu0 0.0
  %2476 = vmatprep.subr.mxu0 0.0
  %2477 = vmatpush1.msra.mxu0 0.0
  %2478 = vmatprep.subr.mxu0 0.0
  %2479 = vmatpush1.msra.mxu0 0.0
  %2480 = vmatprep.subr.mxu0 0.0
  %2481 = vmatpush1.msra.mxu0 0.0
  %2482 = vmatprep.subr.mxu0 0.0
  %2483 = vmatpush1.msra.mxu0 0.0
  %2484 = vmatprep.subr.mxu0 0.0
  %2485 = vmatpush1.msra.mxu0 0.0
  %2486 = vmatprep.mubr.f32.mxu0 0.0
  %2487 = vmatmul.mubr.f32.gmra.mrb[0].mxu0 %v2399
  %v2488 = vpop.f32.mrb[0].mxu0
  %v2489 = vadd.f32 0.0, %v2488
  %v2490 = vpop.f32.mrb[0].mxu0
  %2491 = vmatprep.mubr.f32.mxu0 0.0
  %2492 = vmatmul.mubr.f32.gmra.mrb[0].mxu0 %v2402
  %v2493 = vpop.f32.mrb[0].mxu0
  %v2494 = vadd.f32 0.0, %v2493
  %v2495 = vpop.f32.mrb[0].mxu0
  %2496 = vmatprep.mubr.f32.mxu0 0.0
  %2497 = vmatmul.mubr.f32.gmra.mrb[0].mxu0 %v2405
  %v2498 = vpop.f32.mrb[0].mxu0
  %v2499 = vadd.f32 0.0, %v2498
  %v2500 = vpop.f32.mrb[0].mxu0
  %2501 = vmatprep.mubr.f32.mxu0 0.0
  %2502 = vmatmul.mubr.f32.gmra.mrb[0].mxu0 %v2408
  %v2503 = vpop.f32.mrb[0].mxu0
  %v2504 = vadd.f32 0.0, %v2503
  %v2505 = vpop.f32.mrb[0].mxu0
  %2506 = vmatprep.mubr.f32.mxu0 0.0
  %2507 = vmatmul.mubr.f32.gmra.mrb[0].mxu0 %v2411
  %v2508 = vpop.f32.mrb[0].mxu0
  %v2509 = vadd.f32 0.0, %v2508
  %v2510 = vpop.f32.mrb[0].mxu0
  %2511 = vmatprep.mubr.f32.mxu0 0.0
  %2512 = vmatmul.mubr.f32.gmra.mrb[0].mxu0 %v2414
  %v2513 = vpop.f32.mrb[0].mxu0
  %v2514 = vadd.f32 0.0, %v2513
  %v2515 = vpop.f32.mrb[0].mxu0
  %2516 = vmatprep.mubr.f32.mxu0 0.0
  %2517 = vmatmul.mubr.f32.gmra.mrb[0].mxu0 %v2417
  %v2518 = vpop.f32.mrb[0].mxu0
  %v2519 = vadd.f32 0.0, %v2518
  %v2520 = vpop.f32.mrb[0].mxu0
  %2521 = vmatprep.mubr.f32.mxu0 0.0
  %2522 = vmatmul.mubr.f32.gmra.mrb[0].mxu0 %v2420
  %v2523 = vpop.f32.mrb[0].mxu0
  %v2524 = vadd.f32 0.0, %v2523
  %v2525 = vpop.f32.mrb[0].mxu0
  %2526 = vdwg.mxu0
  %v2527 = vsel %vm31, %v2356, -inf
  %2528 = vmax.xlane.f32.xlu0 %v2527
  %v2529 = vpop.xlane.xlu0 %2528
  %v2530 = vsel %vm31, %v2361, -inf
  %2531 = vmax.xlane.f32.xlu0 %v2530
  %v2532 = vpop.xlane.xlu0 %2531
  %v2533 = vsel %vm31, %v2366, -inf
  %2534 = vmax.xlane.f32.xlu0 %v2533
  %v2535 = vpop.xlane.xlu0 %2534
  %v2536 = vsel %vm31, %v2371, -inf
  %2537 = vmax.xlane.f32.xlu0 %v2536
  %v2538 = vpop.xlane.xlu0 %2537
  %v2539 = vsel %vm31, %v2376, -inf
  %2540 = vmax.xlane.f32.xlu0 %v2539
  %v2541 = vpop.xlane.xlu0 %2540
  %v2542 = vsel %vm31, %v2381, -inf
  %2543 = vmax.xlane.f32.xlu0 %v2542
  %v2544 = vpop.xlane.xlu0 %2543
  %v2545 = vsel %vm31, %v2386, -inf
  %2546 = vmax.xlane.f32.xlu0 %v2545
  %v2547 = vpop.xlane.xlu0 %2546
  %v2548 = vsel %vm31, %v2391, -inf
  %2549 = vmax.xlane.f32.xlu0 %v2548
  %v2550 = vpop.xlane.xlu0 %2549
  %v2551 = vsel %vm31, %v2489, -inf
  %2552 = vmax.xlane.f32.xlu0 %v2551
  %v2553 = vpop.xlane.xlu0 %2552
  %v2554 = vsel %vm31, %v2494, -inf
  %2555 = vmax.xlane.f32.xlu0 %v2554
  %v2556 = vpop.xlane.xlu0 %2555
  %v2557 = vsel %vm31, %v2499, -inf
  %2558 = vmax.xlane.f32.xlu0 %v2557
  %v2559 = vpop.xlane.xlu0 %2558
  %v2560 = vsel %vm31, %v2504, -inf
  %2561 = vmax.xlane.f32.xlu0 %v2560
  %v2562 = vpop.xlane.xlu0 %2561
  %v2563 = vsel %vm31, %v2509, -inf
  %2564 = vmax.xlane.f32.xlu0 %v2563
  %v2565 = vpop.xlane.xlu0 %2564
  %v2566 = vsel %vm31, %v2514, -inf
  %2567 = vmax.xlane.f32.xlu0 %v2566
  %v2568 = vpop.xlane.xlu0 %2567
  %v2569 = vsel %vm31, %v2519, -inf
  %2570 = vmax.xlane.f32.xlu0 %v2569
  %v2571 = vpop.xlane.xlu0 %2570
  %v2572 = vsel %vm31, %v2524, -inf
  %2573 = vmax.xlane.f32.xlu0 %v2572
  %v2574 = vpop.xlane.xlu0 %2573
  %v2575 = vsub.f32 %v2356, %v2529
  %v2576 = vsub.f32 %v2361, %v2532
  %v2577 = vsub.f32 %v2366, %v2535
  %v2578 = vsub.f32 %v2371, %v2538
  %v2579 = vsub.f32 %v2376, %v2541
  %v2580 = vsub.f32 %v2381, %v2544
  %v2581 = vsub.f32 %v2386, %v2547
  %v2582 = vsub.f32 %v2391, %v2550
  %v2583 = vsub.f32 %v2489, %v2553
  %v2584 = vsub.f32 %v2494, %v2556
  %v2585 = vsub.f32 %v2499, %v2559
  %v2586 = vsub.f32 %v2504, %v2562
  %v2587 = vsub.f32 %v2509, %v2565
  %v2588 = vsub.f32 %v2514, %v2568
  %v2589 = vsub.f32 %v2519, %v2571
  %v2590 = vsub.f32 %v2524, %v2574
  %v2591 = vmul.f32 %v2575, 1.442695
  %v2592 = vpow.pop %v2591
  %v2593 = vmul.f32 %v2576, 1.442695
  %v2594 = vpow.pop %v2593
  %v2595 = vmul.f32 %v2577, 1.442695
  %v2596 = vpow.pop %v2595
  %v2597 = vmul.f32 %v2578, 1.442695
  %v2598 = vpow.pop %v2597
  %v2599 = vmul.f32 %v2579, 1.442695
  %v2600 = vpow.pop %v2599
  %v2601 = vmul.f32 %v2580, 1.442695
  %v2602 = vpow.pop %v2601
  %v2603 = vmul.f32 %v2581, 1.442695
  %v2604 = vpow.pop %v2603
  %v2605 = vmul.f32 %v2582, 1.442695
  %v2606 = vpow.pop %v2605
  %v2607 = vmul.f32 %v2583, 1.442695
  %v2608 = vpow.pop %v2607
  %v2609 = vmul.f32 %v2584, 1.442695
  %v2610 = vpow.pop %v2609
  %v2611 = vmul.f32 %v2585, 1.442695
  %v2612 = vpow.pop %v2611
  %v2613 = vmul.f32 %v2586, 1.442695
  %v2614 = vpow.pop %v2613
  %v2615 = vmul.f32 %v2587, 1.442695
  %v2616 = vpow.pop %v2615
  %v2617 = vmul.f32 %v2588, 1.442695
  %v2618 = vpow.pop %v2617
  %v2619 = vmul.f32 %v2589, 1.442695
  %v2620 = vpow.pop %v2619
  %v2621 = vmul.f32 %v2590, 1.442695
  %v2622 = vpow.pop %v2621
  %v2623 = vsel %vm31, %v2592, 0.0
  %2624 = vadd.xlane.f32.xlu0 %v2623
  %v2625 = vpop.xlane.xlu0 %2624
  %v2626 = vsel %vm31, %v2594, 0.0
  %2627 = vadd.xlane.f32.xlu0 %v2626
  %v2628 = vpop.xlane.xlu0 %2627
  %v2629 = vsel %vm31, %v2596, 0.0
  %2630 = vadd.xlane.f32.xlu0 %v2629
  %v2631 = vpop.xlane.xlu0 %2630
  %v2632 = vsel %vm31, %v2598, 0.0
  %2633 = vadd.xlane.f32.xlu0 %v2632
  %v2634 = vpop.xlane.xlu0 %2633
  %v2635 = vsel %vm31, %v2600, 0.0
  %2636 = vadd.xlane.f32.xlu0 %v2635
  %v2637 = vpop.xlane.xlu0 %2636
  %v2638 = vsel %vm31, %v2602, 0.0
  %2639 = vadd.xlane.f32.xlu0 %v2638
  %v2640 = vpop.xlane.xlu0 %2639
  %v2641 = vsel %vm31, %v2604, 0.0
  %2642 = vadd.xlane.f32.xlu0 %v2641
  %v2643 = vpop.xlane.xlu0 %2642
  %v2644 = vsel %vm31, %v2606, 0.0
  %2645 = vadd.xlane.f32.xlu0 %v2644
  %v2646 = vpop.xlane.xlu0 %2645
  %v2647 = vsel %vm31, %v2608, 0.0
  %2648 = vadd.xlane.f32.xlu0 %v2647
  %v2649 = vpop.xlane.xlu0 %2648
  %v2650 = vsel %vm31, %v2610, 0.0
  %2651 = vadd.xlane.f32.xlu0 %v2650
  %v2652 = vpop.xlane.xlu0 %2651
  %v2653 = vsel %vm31, %v2612, 0.0
  %2654 = vadd.xlane.f32.xlu0 %v2653
  %v2655 = vpop.xlane.xlu0 %2654
  %v2656 = vsel %vm31, %v2614, 0.0
  %2657 = vadd.xlane.f32.xlu0 %v2656
  %v2658 = vpop.xlane.xlu0 %2657
  %v2659 = vsel %vm31, %v2616, 0.0
  %2660 = vadd.xlane.f32.xlu0 %v2659
  %v2661 = vpop.xlane.xlu0 %2660
  %v2662 = vsel %vm31, %v2618, 0.0
  %2663 = vadd.xlane.f32.xlu0 %v2662
  %v2664 = vpop.xlane.xlu0 %2663
  %v2665 = vsel %vm31, %v2620, 0.0
  %2666 = vadd.xlane.f32.xlu0 %v2665
  %v2667 = vpop.xlane.xlu0 %2666
  %v2668 = vsel %vm31, %v2622, 0.0
  %2669 = vadd.xlane.f32.xlu0 %v2668
  %v2670 = vpop.xlane.xlu0 %2669
  %2671 = vrot.lane.b32.xlu0 %v576, 64
  %v2672 = vpop.permute.xlu0 %2671
  %v2673 = vsel %vm31, %v2672, 0
  %v2676 = vsel %vm31, %v2592, 0
  %v2679 = vsel %vm31, %v2594, 0
  %v2682 = vsel %vm31, %v2596, 0
  %v2685 = vsel %vm31, %v2598, 0
  %v2688 = vsel %vm31, %v2600, 0
  %v2691 = vsel %vm31, %v2602, 0
  %v2694 = vsel %vm31, %v2604, 0
  %v2697 = vsel %vm31, %v2606, 0
  %2699 = vmatprep.subr.mxu0 0.0
  %2700 = vmatpush1.xpose.msra.mxu0 %v2676
  %2701 = vmatprep.subr.mxu0 0.0
  %2702 = vmatpush1.xpose.msra.mxu0 %v2679
  %2703 = vmatprep.subr.mxu0 0.0
  %2704 = vmatpush1.xpose.msra.mxu0 %v2682
  %2705 = vmatprep.subr.mxu0 0.0
  %2706 = vmatpush1.xpose.msra.mxu0 %v2685
  %2707 = vmatprep.subr.mxu0 0.0
  %2708 = vmatpush1.xpose.msra.mxu0 %v2688
  %2709 = vmatprep.subr.mxu0 0.0
  %2710 = vmatpush1.xpose.msra.mxu0 %v2691
  %2711 = vmatprep.subr.mxu0 0.0
  %2712 = vmatpush1.xpose.msra.mxu0 %v2694
  %2713 = vmatprep.subr.mxu0 0.0
  %2714 = vmatpush1.xpose.msra.mxu0 %v2697
  %2715 = vmatprep.subr.mxu0 0.0
  %2716 = vmatpush1.xpose.msra.mxu0 0.0
  %2717 = vmatprep.subr.mxu0 0.0
  %2718 = vmatpush1.xpose.msra.mxu0 0.0
  %2719 = vmatprep.subr.mxu0 0.0
  %2720 = vmatpush1.xpose.msra.mxu0 0.0
  %2721 = vmatprep.subr.mxu0 0.0
  %2722 = vmatpush1.xpose.msra.mxu0 0.0
  %2723 = vmatprep.subr.mxu0 0.0
  %2724 = vmatpush1.xpose.msra.mxu0 0.0
  %2725 = vmatprep.subr.mxu0 0.0
  %2726 = vmatpush1.xpose.msra.mxu0 0.0
  %2727 = vmatprep.subr.mxu0 0.0
  %2728 = vmatpush1.xpose.msra.mxu0 0.0
  %2729 = vmatprep.subr.mxu0 0.0
  %2730 = vmatpush1.xpose.msra.mxu0 0.0
  %2731 = vmatprep.subr.mxu0 0.0
  %2732 = vmatpush1.xpose.msra.mxu0 0.0
  %2733 = vmatprep.subr.mxu0 0.0
  %2734 = vmatpush1.xpose.msra.mxu0 0.0
  %2735 = vmatprep.subr.mxu0 0.0
  %2736 = vmatpush1.xpose.msra.mxu0 0.0
  %2737 = vmatprep.subr.mxu0 0.0
  %2738 = vmatpush1.xpose.msra.mxu0 0.0
  %2739 = vmatprep.subr.mxu0 0.0
  %2740 = vmatpush1.xpose.msra.mxu0 0.0
  %2741 = vmatprep.subr.mxu0 0.0
  %2742 = vmatpush1.xpose.msra.mxu0 0.0
  %2743 = vmatprep.subr.mxu0 0.0
  %2744 = vmatpush1.xpose.msra.mxu0 0.0
  %2745 = vmatprep.subr.mxu0 0.0
  %2746 = vmatpush1.xpose.msra.mxu0 0.0
  %2747 = vmatprep.subr.mxu0 0.0
  %2748 = vmatpush1.xpose.msra.mxu0 0.0
  %2749 = vmatprep.subr.mxu0 0.0
  %2750 = vmatpush1.xpose.msra.mxu0 0.0
  %2751 = vmatprep.subr.mxu0 0.0
  %2752 = vmatpush1.xpose.msra.mxu0 0.0
  %2753 = vmatprep.subr.mxu0 0.0
  %2754 = vmatpush1.xpose.msra.mxu0 0.0
  %2755 = vmatprep.subr.mxu0 0.0
  %2756 = vmatpush1.xpose.msra.mxu0 0.0
  %2757 = vmatprep.subr.mxu0 0.0
  %2758 = vmatpush1.xpose.msra.mxu0 0.0
  %2759 = vmatprep.subr.mxu0 0.0
  %2760 = vmatpush1.xpose.msra.mxu0 0.0
  %2761 = vmatprep.subr.mxu0 0.0
  %2762 = vmatpush1.xpose.msra.mxu0 0.0
  %2763 = vmatprep.mubr.f32.mxu0 0.0
  %2764 = vmatmul.mubr.f32.gmra.mrb[0].mxu0 %v2673
  %v2765 = vpop.f32.mrb[0].mxu0
  %v2766 = vadd.f32 0.0, %v2765
  %v2767 = vpop.f32.mrb[0].mxu0
  %2768 = vdwg.mxu0
  %2769 = vrot.lane.b32.xlu0 %v581, 64
  %v2770 = vpop.permute.xlu0 %2769
  %v2771 = vsel %vm31, %v2770, 0
  %v2774 = vsel %vm31, %v2608, 0
  %v2777 = vsel %vm31, %v2610, 0
  %v2780 = vsel %vm31, %v2612, 0
  %v2783 = vsel %vm31, %v2614, 0
  %v2786 = vsel %vm31, %v2616, 0
  %v2789 = vsel %vm31, %v2618, 0
  %v2792 = vsel %vm31, %v2620, 0
  %v2795 = vsel %vm31, %v2622, 0
  %2797 = vmatprep.subr.mxu0 0.0
  %2798 = vmatpush1.xpose.msra.mxu0 %v2774
  %2799 = vmatprep.subr.mxu0 0.0
  %2800 = vmatpush1.xpose.msra.mxu0 %v2777
  %2801 = vmatprep.subr.mxu0 0.0
  %2802 = vmatpush1.xpose.msra.mxu0 %v2780
  %2803 = vmatprep.subr.mxu0 0.0
  %2804 = vmatpush1.xpose.msra.mxu0 %v2783
  %2805 = vmatprep.subr.mxu0 0.0
  %2806 = vmatpush1.xpose.msra.mxu0 %v2786
  %2807 = vmatprep.subr.mxu0 0.0
  %2808 = vmatpush1.xpose.msra.mxu0 %v2789
  %2809 = vmatprep.subr.mxu0 0.0
  %2810 = vmatpush1.xpose.msra.mxu0 %v2792
  %2811 = vmatprep.subr.mxu0 0.0
  %2812 = vmatpush1.xpose.msra.mxu0 %v2795
  %2813 = vmatprep.subr.mxu0 0.0
  %2814 = vmatpush1.xpose.msra.mxu0 0.0
  %2815 = vmatprep.subr.mxu0 0.0
  %2816 = vmatpush1.xpose.msra.mxu0 0.0
  %2817 = vmatprep.subr.mxu0 0.0
  %2818 = vmatpush1.xpose.msra.mxu0 0.0
  %2819 = vmatprep.subr.mxu0 0.0
  %2820 = vmatpush1.xpose.msra.mxu0 0.0
  %2821 = vmatprep.subr.mxu0 0.0
  %2822 = vmatpush1.xpose.msra.mxu0 0.0
  %2823 = vmatprep.subr.mxu0 0.0
  %2824 = vmatpush1.xpose.msra.mxu0 0.0
  %2825 = vmatprep.subr.mxu0 0.0
  %2826 = vmatpush1.xpose.msra.mxu0 0.0
  %2827 = vmatprep.subr.mxu0 0.0
  %2828 = vmatpush1.xpose.msra.mxu0 0.0
  %2829 = vmatprep.subr.mxu0 0.0
  %2830 = vmatpush1.xpose.msra.mxu0 0.0
  %2831 = vmatprep.subr.mxu0 0.0
  %2832 = vmatpush1.xpose.msra.mxu0 0.0
  %2833 = vmatprep.subr.mxu0 0.0
  %2834 = vmatpush1.xpose.msra.mxu0 0.0
  %2835 = vmatprep.subr.mxu0 0.0
  %2836 = vmatpush1.xpose.msra.mxu0 0.0
  %2837 = vmatprep.subr.mxu0 0.0
  %2838 = vmatpush1.xpose.msra.mxu0 0.0
  %2839 = vmatprep.subr.mxu0 0.0
  %2840 = vmatpush1.xpose.msra.mxu0 0.0
  %2841 = vmatprep.subr.mxu0 0.0
  %2842 = vmatpush1.xpose.msra.mxu0 0.0
  %2843 = vmatprep.subr.mxu0 0.0
  %2844 = vmatpush1.xpose.msra.mxu0 0.0
  %2845 = vmatprep.subr.mxu0 0.0
  %2846 = vmatpush1.xpose.msra.mxu0 0.0
  %2847 = vmatprep.subr.mxu0 0.0
  %2848 = vmatpush1.xpose.msra.mxu0 0.0
  %2849 = vmatprep.subr.mxu0 0.0
  %2850 = vmatpush1.xpose.msra.mxu0 0.0
  %2851 = vmatprep.subr.mxu0 0.0
  %2852 = vmatpush1.xpose.msra.mxu0 0.0
  %2853 = vmatprep.subr.mxu0 0.0
  %2854 = vmatpush1.xpose.msra.mxu0 0.0
  %2855 = vmatprep.subr.mxu0 0.0
  %2856 = vmatpush1.xpose.msra.mxu0 0.0
  %2857 = vmatprep.subr.mxu0 0.0
  %2858 = vmatpush1.xpose.msra.mxu0 0.0
  %2859 = vmatprep.subr.mxu0 0.0
  %2860 = vmatpush1.xpose.msra.mxu0 0.0
  %2861 = vmatprep.mubr.f32.mxu0 0.0
  %2862 = vmatmul.mubr.f32.gmra.mrb[0].mxu0 %v2771
  %v2863 = vpop.f32.mrb[0].mxu0
  %v2864 = vadd.f32 0.0, %v2863
  %v2865 = vpop.f32.mrb[0].mxu0
  %2866 = vdwg.mxu0
  %v2867 = vrcp.pop %v2625
  %v2868 = vrcp.pop %v2628
  %v2869 = vrcp.pop %v2631
  %v2870 = vrcp.pop %v2634
  %v2871 = vrcp.pop %v2637
  %v2872 = vrcp.pop %v2640
  %v2873 = vrcp.pop %v2643
  %v2874 = vrcp.pop %v2646
  %v2875 = vrcp.pop %v2649
  %v2876 = vrcp.pop %v2652
  %v2877 = vrcp.pop %v2655
  %v2878 = vrcp.pop %v2658
  %v2879 = vrcp.pop %v2661
  %v2880 = vrcp.pop %v2664
  %v2881 = vrcp.pop %v2667
  %v2882 = vrcp.pop %v2670
  %v2899 = vlaneseq
  %v2900 = vshrl.u32 %v2899, 7
  %v2901 = vsub.s32 %v1288, %v2900
  %v2902 = vrot.slane %v2867, %v2901
  %v2903 = vlaneseq
  %v2904 = vshrl.u32 %v2903, 7
  %v2905 = vsub.s32 %v1293, %v2904
  %v2906 = vrot.slane %v2868, %v2905
  %v2907 = vsel %vm1298, %v2906, %v2902
  %v2908 = vlaneseq
  %v2909 = vshrl.u32 %v2908, 7
  %v2910 = vsub.s32 %v1300, %v2909
  %v2911 = vrot.slane %v2869, %v2910
  %v2912 = vsel %vm1305, %v2911, %v2907
  %v2913 = vlaneseq
  %v2914 = vshrl.u32 %v2913, 7
  %v2915 = vsub.s32 %v1307, %v2914
  %v2916 = vrot.slane %v2870, %v2915
  %v2917 = vsel %vm1312, %v2916, %v2912
  %v2918 = vlaneseq
  %v2919 = vshrl.u32 %v2918, 7
  %v2920 = vsub.s32 %v1314, %v2919
  %v2921 = vrot.slane %v2871, %v2920
  %v2922 = vsel %vm1319, %v2921, %v2917
  %v2923 = vlaneseq
  %v2924 = vshrl.u32 %v2923, 7
  %v2925 = vsub.s32 %v1321, %v2924
  %v2926 = vrot.slane %v2872, %v2925
  %v2927 = vsel %vm1326, %v2926, %v2922
  %v2928 = vlaneseq
  %v2929 = vshrl.u32 %v2928, 7
  %v2930 = vsub.s32 %v1328, %v2929
  %v2931 = vrot.slane %v2873, %v2930
  %v2932 = vsel %vm1333, %v2931, %v2927
  %v2933 = vlaneseq
  %v2934 = vshrl.u32 %v2933, 7
  %v2935 = vsub.s32 %v1335, %v2934
  %v2936 = vrot.slane %v2874, %v2935
  %v2937 = vsel %vm1340, %v2936, %v2932
  %v2938 = vlaneseq
  %v2939 = vshrl.u32 %v2938, 7
  %v2940 = vsub.s32 %v1288, %v2939
  %v2941 = vrot.slane %v2875, %v2940
  %v2942 = vlaneseq
  %v2943 = vshrl.u32 %v2942, 7
  %v2944 = vsub.s32 %v1293, %v2943
  %v2945 = vrot.slane %v2876, %v2944
  %v2946 = vsel %vm1298, %v2945, %v2941
  %v2947 = vlaneseq
  %v2948 = vshrl.u32 %v2947, 7
  %v2949 = vsub.s32 %v1300, %v2948
  %v2950 = vrot.slane %v2877, %v2949
  %v2951 = vsel %vm1305, %v2950, %v2946
  %v2952 = vlaneseq
  %v2953 = vshrl.u32 %v2952, 7
  %v2954 = vsub.s32 %v1307, %v2953
  %v2955 = vrot.slane %v2878, %v2954
  %v2956 = vsel %vm1312, %v2955, %v2951
  %v2957 = vlaneseq
  %v2958 = vshrl.u32 %v2957, 7
  %v2959 = vsub.s32 %v1314, %v2958
  %v2960 = vrot.slane %v2879, %v2959
  %v2961 = vsel %vm1319, %v2960, %v2956
  %v2962 = vlaneseq
  %v2963 = vshrl.u32 %v2962, 7
  %v2964 = vsub.s32 %v1321, %v2963
  %v2965 = vrot.slane %v2880, %v2964
  %v2966 = vsel %vm1326, %v2965, %v2961
  %v2967 = vlaneseq
  %v2968 = vshrl.u32 %v2967, 7
  %v2969 = vsub.s32 %v1328, %v2968
  %v2970 = vrot.slane %v2881, %v2969
  %v2971 = vsel %vm1333, %v2970, %v2966
  %v2972 = vlaneseq
  %v2973 = vshrl.u32 %v2972, 7
  %v2974 = vsub.s32 %v1335, %v2973
  %v2975 = vrot.slane %v2882, %v2974
  %v2976 = vsel %vm1340, %v2975, %v2971
  %v2977 = vsel %vm1381, %v2937, %v2937
  %v2978 = vsel %vm1383, %v2937, %v2977
  %v2979 = vsel %vm1385, %v2937, %v2978
  %v2980 = vsel %vm1387, %v2937, %v2979
  %v2981 = vsel %vm1389, %v2937, %v2980
  %v2982 = vsel %vm1391, %v2937, %v2981
  %v2983 = vsel %vm1381, %v2976, %v2976
  %v2984 = vsel %vm1383, %v2976, %v2983
  %v2985 = vsel %vm1385, %v2976, %v2984
  %v2986 = vsel %vm1387, %v2976, %v2985
  %v2987 = vsel %vm1389, %v2976, %v2986
  %v2988 = vsel %vm1391, %v2976, %v2987
  %v2991 = vmul.f32 %v2766, %v2982
  %v2992 = vmul.f32 %v2864, %v2988
  %2995 = vrot.lane.b32.xlu0 %v546, 64
  %v2996 = vpop.permute.xlu0 %2995
  %2997 = vrot.lane.b32.xlu0 %v551, 64
  %v2998 = vpop.permute.xlu0 %2997
  %3001 = vxpose.xlu0.b32.start [1/16] %v2996, 128
  %3002 = vxpose.xlu0.b32.cont [2/16] 0.0, 128
  %3003 = vxpose.xlu0.b32.cont [3/16] 0.0, 128
  %3004 = vxpose.xlu0.b32.cont [4/16] 0.0, 128
  %3005 = vxpose.xlu0.b32.cont [5/16] 0.0, 128
  %3006 = vxpose.xlu0.b32.cont [6/16] 0.0, 128
  %3007 = vxpose.xlu0.b32.cont [7/16] 0.0, 128
  %3008 = vxpose.xlu0.b32.cont [8/16] 0.0, 128
  %3009 = vxpose.xlu0.b32.cont [9/16] 0.0, 128
  %3010 = vxpose.xlu0.b32.cont [10/16] 0.0, 128
  %3011 = vxpose.xlu0.b32.cont [11/16] 0.0, 128
  %3012 = vxpose.xlu0.b32.cont [12/16] 0.0, 128
  %3013 = vxpose.xlu0.b32.cont [13/16] 0.0, 128
  %3014 = vxpose.xlu0.b32.cont [14/16] 0.0, 128
  %3015 = vxpose.xlu0.b32.cont [15/16] 0.0, 128
  %3016 = vxpose.xlu0.b32.end [16/16] 0.0, 128
  %v3017 = vpop.trf.xlu0
  %v3018 = vpop.trf.xlu0
  %v3019 = vpop.trf.xlu0
  %v3020 = vpop.trf.xlu0
  %v3021 = vpop.trf.xlu0
  %v3022 = vpop.trf.xlu0
  %v3023 = vpop.trf.xlu0
  %v3024 = vpop.trf.xlu0
  %v3025 = vpop.trf.xlu0
  %v3026 = vpop.trf.xlu0
  %v3027 = vpop.trf.xlu0
  %v3028 = vpop.trf.xlu0
  %v3029 = vpop.trf.xlu0
  %v3030 = vpop.trf.xlu0
  %v3031 = vpop.trf.xlu0
  %v3032 = vpop.trf.xlu0
  %3033 = vxpose.xlu0.b32.start [1/16] %v2998, 128
  %3034 = vxpose.xlu0.b32.cont [2/16] 0.0, 128
  %3035 = vxpose.xlu0.b32.cont [3/16] 0.0, 128
  %3036 = vxpose.xlu0.b32.cont [4/16] 0.0, 128
  %3037 = vxpose.xlu0.b32.cont [5/16] 0.0, 128
  %3038 = vxpose.xlu0.b32.cont [6/16] 0.0, 128
  %3039 = vxpose.xlu0.b32.cont [7/16] 0.0, 128
  %3040 = vxpose.xlu0.b32.cont [8/16] 0.0, 128
  %3041 = vxpose.xlu0.b32.cont [9/16] 0.0, 128
  %3042 = vxpose.xlu0.b32.cont [10/16] 0.0, 128
  %3043 = vxpose.xlu0.b32.cont [11/16] 0.0, 128
  %3044 = vxpose.xlu0.b32.cont [12/16] 0.0, 128
  %3045 = vxpose.xlu0.b32.cont [13/16] 0.0, 128
  %3046 = vxpose.xlu0.b32.cont [14/16] 0.0, 128
  %3047 = vxpose.xlu0.b32.cont [15/16] 0.0, 128
  %3048 = vxpose.xlu0.b32.end [16/16] 0.0, 128
  %v3049 = vpop.trf.xlu0
  %v3050 = vpop.trf.xlu0
  %v3051 = vpop.trf.xlu0
  %v3052 = vpop.trf.xlu0
  %v3053 = vpop.trf.xlu0
  %v3054 = vpop.trf.xlu0
  %v3055 = vpop.trf.xlu0
  %v3056 = vpop.trf.xlu0
  %v3057 = vpop.trf.xlu0
  %v3058 = vpop.trf.xlu0
  %v3059 = vpop.trf.xlu0
  %v3060 = vpop.trf.xlu0
  %v3061 = vpop.trf.xlu0
  %v3062 = vpop.trf.xlu0
  %v3063 = vpop.trf.xlu0
  %v3064 = vpop.trf.xlu0
  %3066 = vrot.lane.b32.xlu0 %v566, 64
  %v3067 = vpop.permute.xlu0 %3066
  %v3070 = vsel %vm658, %v3017, 0
  %v3073 = vsel %vm658, %v3018, 0
  %v3076 = vsel %vm658, %v3019, 0
  %v3079 = vsel %vm658, %v3020, 0
  %v3082 = vsel %vm658, %v3021, 0
  %v3085 = vsel %vm658, %v3022, 0
  %v3088 = vsel %vm658, %v3023, 0
  %v3091 = vsel %vm658, %v3024, 0
  %3093 = vmatprep.subr.mxu0 0.0
  %3094 = vmatpush1.msra.mxu0 %v3067
  %3095 = vmatprep.subr.mxu0 0.0
  %3096 = vmatpush1.msra.mxu0 0.0
  %3097 = vmatprep.subr.mxu0 0.0
  %3098 = vmatpush1.msra.mxu0 0.0
  %3099 = vmatprep.subr.mxu0 0.0
  %3100 = vmatpush1.msra.mxu0 0.0
  %3101 = vmatprep.subr.mxu0 0.0
  %3102 = vmatpush1.msra.mxu0 0.0
  %3103 = vmatprep.subr.mxu0 0.0
  %3104 = vmatpush1.msra.mxu0 0.0
  %3105 = vmatprep.subr.mxu0 0.0
  %3106 = vmatpush1.msra.mxu0 0.0
  %3107 = vmatprep.subr.mxu0 0.0
  %3108 = vmatpush1.msra.mxu0 0.0
  %3109 = vmatprep.subr.mxu0 0.0
  %3110 = vmatpush1.msra.mxu0 0.0
  %3111 = vmatprep.subr.mxu0 0.0
  %3112 = vmatpush1.msra.mxu0 0.0
  %3113 = vmatprep.subr.mxu0 0.0
  %3114 = vmatpush1.msra.mxu0 0.0
  %3115 = vmatprep.subr.mxu0 0.0
  %3116 = vmatpush1.msra.mxu0 0.0
  %3117 = vmatprep.subr.mxu0 0.0
  %3118 = vmatpush1.msra.mxu0 0.0
  %3119 = vmatprep.subr.mxu0 0.0
  %3120 = vmatpush1.msra.mxu0 0.0
  %3121 = vmatprep.subr.mxu0 0.0
  %3122 = vmatpush1.msra.mxu0 0.0
  %3123 = vmatprep.subr.mxu0 0.0
  %3124 = vmatpush1.msra.mxu0 0.0
  %3125 = vmatprep.subr.mxu0 0.0
  %3126 = vmatpush1.msra.mxu0 0.0
  %3127 = vmatprep.subr.mxu0 0.0
  %3128 = vmatpush1.msra.mxu0 0.0
  %3129 = vmatprep.subr.mxu0 0.0
  %3130 = vmatpush1.msra.mxu0 0.0
  %3131 = vmatprep.subr.mxu0 0.0
  %3132 = vmatpush1.msra.mxu0 0.0
  %3133 = vmatprep.subr.mxu0 0.0
  %3134 = vmatpush1.msra.mxu0 0.0
  %3135 = vmatprep.subr.mxu0 0.0
  %3136 = vmatpush1.msra.mxu0 0.0
  %3137 = vmatprep.subr.mxu0 0.0
  %3138 = vmatpush1.msra.mxu0 0.0
  %3139 = vmatprep.subr.mxu0 0.0
  %3140 = vmatpush1.msra.mxu0 0.0
  %3141 = vmatprep.subr.mxu0 0.0
  %3142 = vmatpush1.msra.mxu0 0.0
  %3143 = vmatprep.subr.mxu0 0.0
  %3144 = vmatpush1.msra.mxu0 0.0
  %3145 = vmatprep.subr.mxu0 0.0
  %3146 = vmatpush1.msra.mxu0 0.0
  %3147 = vmatprep.subr.mxu0 0.0
  %3148 = vmatpush1.msra.mxu0 0.0
  %3149 = vmatprep.subr.mxu0 0.0
  %3150 = vmatpush1.msra.mxu0 0.0
  %3151 = vmatprep.subr.mxu0 0.0
  %3152 = vmatpush1.msra.mxu0 0.0
  %3153 = vmatprep.subr.mxu0 0.0
  %3154 = vmatpush1.msra.mxu0 0.0
  %3155 = vmatprep.subr.mxu0 0.0
  %3156 = vmatpush1.msra.mxu0 0.0
  %3157 = vmatprep.mubr.f32.mxu0 0.0
  %3158 = vmatmul.mubr.f32.gmra.mrb[0].mxu0 %v3070
  %v3159 = vpop.f32.mrb[0].mxu0
  %v3160 = vadd.f32 0.0, %v3159
  %v3161 = vpop.f32.mrb[0].mxu0
  %3162 = vmatprep.mubr.f32.mxu0 0.0
  %3163 = vmatmul.mubr.f32.gmra.mrb[0].mxu0 %v3073
  %v3164 = vpop.f32.mrb[0].mxu0
  %v3165 = vadd.f32 0.0, %v3164
  %v3166 = vpop.f32.mrb[0].mxu0
  %3167 = vmatprep.mubr.f32.mxu0 0.0
  %3168 = vmatmul.mubr.f32.gmra.mrb[0].mxu0 %v3076
  %v3169 = vpop.f32.mrb[0].mxu0
  %v3170 = vadd.f32 0.0, %v3169
  %v3171 = vpop.f32.mrb[0].mxu0
  %3172 = vmatprep.mubr.f32.mxu0 0.0
  %3173 = vmatmul.mubr.f32.gmra.mrb[0].mxu0 %v3079
  %v3174 = vpop.f32.mrb[0].mxu0
  %v3175 = vadd.f32 0.0, %v3174
  %v3176 = vpop.f32.mrb[0].mxu0
  %3177 = vmatprep.mubr.f32.mxu0 0.0
  %3178 = vmatmul.mubr.f32.gmra.mrb[0].mxu0 %v3082
  %v3179 = vpop.f32.mrb[0].mxu0
  %v3180 = vadd.f32 0.0, %v3179
  %v3181 = vpop.f32.mrb[0].mxu0
  %3182 = vmatprep.mubr.f32.mxu0 0.0
  %3183 = vmatmul.mubr.f32.gmra.mrb[0].mxu0 %v3085
  %v3184 = vpop.f32.mrb[0].mxu0
  %v3185 = vadd.f32 0.0, %v3184
  %v3186 = vpop.f32.mrb[0].mxu0
  %3187 = vmatprep.mubr.f32.mxu0 0.0
  %3188 = vmatmul.mubr.f32.gmra.mrb[0].mxu0 %v3088
  %v3189 = vpop.f32.mrb[0].mxu0
  %v3190 = vadd.f32 0.0, %v3189
  %v3191 = vpop.f32.mrb[0].mxu0
  %3192 = vmatprep.mubr.f32.mxu0 0.0
  %3193 = vmatmul.mubr.f32.gmra.mrb[0].mxu0 %v3091
  %v3194 = vpop.f32.mrb[0].mxu0
  %v3195 = vadd.f32 0.0, %v3194
  %v3196 = vpop.f32.mrb[0].mxu0
  %3197 = vdwg.mxu0
  %3199 = vrot.lane.b32.xlu0 %v571, 64
  %v3200 = vpop.permute.xlu0 %3199
  %v3203 = vsel %vm658, %v3049, 0
  %v3206 = vsel %vm658, %v3050, 0
  %v3209 = vsel %vm658, %v3051, 0
  %v3212 = vsel %vm658, %v3052, 0
  %v3215 = vsel %vm658, %v3053, 0
  %v3218 = vsel %vm658, %v3054, 0
  %v3221 = vsel %vm658, %v3055, 0
  %v3224 = vsel %vm658, %v3056, 0
  %3226 = vmatprep.subr.mxu0 0.0
  %3227 = vmatpush1.msra.mxu0 %v3200
  %3228 = vmatprep.subr.mxu0 0.0
  %3229 = vmatpush1.msra.mxu0 0.0
  %3230 = vmatprep.subr.mxu0 0.0
  %3231 = vmatpush1.msra.mxu0 0.0
  %3232 = vmatprep.subr.mxu0 0.0
  %3233 = vmatpush1.msra.mxu0 0.0
  %3234 = vmatprep.subr.mxu0 0.0
  %3235 = vmatpush1.msra.mxu0 0.0
  %3236 = vmatprep.subr.mxu0 0.0
  %3237 = vmatpush1.msra.mxu0 0.0
  %3238 = vmatprep.subr.mxu0 0.0
  %3239 = vmatpush1.msra.mxu0 0.0
  %3240 = vmatprep.subr.mxu0 0.0
  %3241 = vmatpush1.msra.mxu0 0.0
  %3242 = vmatprep.subr.mxu0 0.0
  %3243 = vmatpush1.msra.mxu0 0.0
  %3244 = vmatprep.subr.mxu0 0.0
  %3245 = vmatpush1.msra.mxu0 0.0
  %3246 = vmatprep.subr.mxu0 0.0
  %3247 = vmatpush1.msra.mxu0 0.0
  %3248 = vmatprep.subr.mxu0 0.0
  %3249 = vmatpush1.msra.mxu0 0.0
  %3250 = vmatprep.subr.mxu0 0.0
  %3251 = vmatpush1.msra.mxu0 0.0
  %3252 = vmatprep.subr.mxu0 0.0
  %3253 = vmatpush1.msra.mxu0 0.0
  %3254 = vmatprep.subr.mxu0 0.0
  %3255 = vmatpush1.msra.mxu0 0.0
  %3256 = vmatprep.subr.mxu0 0.0
  %3257 = vmatpush1.msra.mxu0 0.0
  %3258 = vmatprep.subr.mxu0 0.0
  %3259 = vmatpush1.msra.mxu0 0.0
  %3260 = vmatprep.subr.mxu0 0.0
  %3261 = vmatpush1.msra.mxu0 0.0
  %3262 = vmatprep.subr.mxu0 0.0
  %3263 = vmatpush1.msra.mxu0 0.0
  %3264 = vmatprep.subr.mxu0 0.0
  %3265 = vmatpush1.msra.mxu0 0.0
  %3266 = vmatprep.subr.mxu0 0.0
  %3267 = vmatpush1.msra.mxu0 0.0
  %3268 = vmatprep.subr.mxu0 0.0
  %3269 = vmatpush1.msra.mxu0 0.0
  %3270 = vmatprep.subr.mxu0 0.0
  %3271 = vmatpush1.msra.mxu0 0.0
  %3272 = vmatprep.subr.mxu0 0.0
  %3273 = vmatpush1.msra.mxu0 0.0
  %3274 = vmatprep.subr.mxu0 0.0
  %3275 = vmatpush1.msra.mxu0 0.0
  %3276 = vmatprep.subr.mxu0 0.0
  %3277 = vmatpush1.msra.mxu0 0.0
  %3278 = vmatprep.subr.mxu0 0.0
  %3279 = vmatpush1.msra.mxu0 0.0
  %3280 = vmatprep.subr.mxu0 0.0
  %3281 = vmatpush1.msra.mxu0 0.0
  %3282 = vmatprep.subr.mxu0 0.0
  %3283 = vmatpush1.msra.mxu0 0.0
  %3284 = vmatprep.subr.mxu0 0.0
  %3285 = vmatpush1.msra.mxu0 0.0
  %3286 = vmatprep.subr.mxu0 0.0
  %3287 = vmatpush1.msra.mxu0 0.0
  %3288 = vmatprep.subr.mxu0 0.0
  %3289 = vmatpush1.msra.mxu0 0.0
  %3290 = vmatprep.mubr.f32.mxu0 0.0
  %3291 = vmatmul.mubr.f32.gmra.mrb[0].mxu0 %v3203
  %v3292 = vpop.f32.mrb[0].mxu0
  %v3293 = vadd.f32 0.0, %v3292
  %v3294 = vpop.f32.mrb[0].mxu0
  %3295 = vmatprep.mubr.f32.mxu0 0.0
  %3296 = vmatmul.mubr.f32.gmra.mrb[0].mxu0 %v3206
  %v3297 = vpop.f32.mrb[0].mxu0
  %v3298 = vadd.f32 0.0, %v3297
  %v3299 = vpop.f32.mrb[0].mxu0
  %3300 = vmatprep.mubr.f32.mxu0 0.0
  %3301 = vmatmul.mubr.f32.gmra.mrb[0].mxu0 %v3209
  %v3302 = vpop.f32.mrb[0].mxu0
  %v3303 = vadd.f32 0.0, %v3302
  %v3304 = vpop.f32.mrb[0].mxu0
  %3305 = vmatprep.mubr.f32.mxu0 0.0
  %3306 = vmatmul.mubr.f32.gmra.mrb[0].mxu0 %v3212
  %v3307 = vpop.f32.mrb[0].mxu0
  %v3308 = vadd.f32 0.0, %v3307
  %v3309 = vpop.f32.mrb[0].mxu0
  %3310 = vmatprep.mubr.f32.mxu0 0.0
  %3311 = vmatmul.mubr.f32.gmra.mrb[0].mxu0 %v3215
  %v3312 = vpop.f32.mrb[0].mxu0
  %v3313 = vadd.f32 0.0, %v3312
  %v3314 = vpop.f32.mrb[0].mxu0
  %3315 = vmatprep.mubr.f32.mxu0 0.0
  %3316 = vmatmul.mubr.f32.gmra.mrb[0].mxu0 %v3218
  %v3317 = vpop.f32.mrb[0].mxu0
  %v3318 = vadd.f32 0.0, %v3317
  %v3319 = vpop.f32.mrb[0].mxu0
  %3320 = vmatprep.mubr.f32.mxu0 0.0
  %3321 = vmatmul.mubr.f32.gmra.mrb[0].mxu0 %v3221
  %v3322 = vpop.f32.mrb[0].mxu0
  %v3323 = vadd.f32 0.0, %v3322
  %v3324 = vpop.f32.mrb[0].mxu0
  %3325 = vmatprep.mubr.f32.mxu0 0.0
  %3326 = vmatmul.mubr.f32.gmra.mrb[0].mxu0 %v3224
  %v3327 = vpop.f32.mrb[0].mxu0
  %v3328 = vadd.f32 0.0, %v3327
  %v3329 = vpop.f32.mrb[0].mxu0
  %3330 = vdwg.mxu0
  %v3331 = vsel %vm31, %v3160, -inf
  %3332 = vmax.xlane.f32.xlu0 %v3331
  %v3333 = vpop.xlane.xlu0 %3332
  %v3334 = vsel %vm31, %v3165, -inf
  %3335 = vmax.xlane.f32.xlu0 %v3334
  %v3336 = vpop.xlane.xlu0 %3335
  %v3337 = vsel %vm31, %v3170, -inf
  %3338 = vmax.xlane.f32.xlu0 %v3337
  %v3339 = vpop.xlane.xlu0 %3338
  %v3340 = vsel %vm31, %v3175, -inf
  %3341 = vmax.xlane.f32.xlu0 %v3340
  %v3342 = vpop.xlane.xlu0 %3341
  %v3343 = vsel %vm31, %v3180, -inf
  %3344 = vmax.xlane.f32.xlu0 %v3343
  %v3345 = vpop.xlane.xlu0 %3344
  %v3346 = vsel %vm31, %v3185, -inf
  %3347 = vmax.xlane.f32.xlu0 %v3346
  %v3348 = vpop.xlane.xlu0 %3347
  %v3349 = vsel %vm31, %v3190, -inf
  %3350 = vmax.xlane.f32.xlu0 %v3349
  %v3351 = vpop.xlane.xlu0 %3350
  %v3352 = vsel %vm31, %v3195, -inf
  %3353 = vmax.xlane.f32.xlu0 %v3352
  %v3354 = vpop.xlane.xlu0 %3353
  %v3355 = vsel %vm31, %v3293, -inf
  %3356 = vmax.xlane.f32.xlu0 %v3355
  %v3357 = vpop.xlane.xlu0 %3356
  %v3358 = vsel %vm31, %v3298, -inf
  %3359 = vmax.xlane.f32.xlu0 %v3358
  %v3360 = vpop.xlane.xlu0 %3359
  %v3361 = vsel %vm31, %v3303, -inf
  %3362 = vmax.xlane.f32.xlu0 %v3361
  %v3363 = vpop.xlane.xlu0 %3362
  %v3364 = vsel %vm31, %v3308, -inf
  %3365 = vmax.xlane.f32.xlu0 %v3364
  %v3366 = vpop.xlane.xlu0 %3365
  %v3367 = vsel %vm31, %v3313, -inf
  %3368 = vmax.xlane.f32.xlu0 %v3367
  %v3369 = vpop.xlane.xlu0 %3368
  %v3370 = vsel %vm31, %v3318, -inf
  %3371 = vmax.xlane.f32.xlu0 %v3370
  %v3372 = vpop.xlane.xlu0 %3371
  %v3373 = vsel %vm31, %v3323, -inf
  %3374 = vmax.xlane.f32.xlu0 %v3373
  %v3375 = vpop.xlane.xlu0 %3374
  %v3376 = vsel %vm31, %v3328, -inf
  %3377 = vmax.xlane.f32.xlu0 %v3376
  %v3378 = vpop.xlane.xlu0 %3377
  %v3379 = vsub.f32 %v3160, %v3333
  %v3380 = vsub.f32 %v3165, %v3336
  %v3381 = vsub.f32 %v3170, %v3339
  %v3382 = vsub.f32 %v3175, %v3342
  %v3383 = vsub.f32 %v3180, %v3345
  %v3384 = vsub.f32 %v3185, %v3348
  %v3385 = vsub.f32 %v3190, %v3351
  %v3386 = vsub.f32 %v3195, %v3354
  %v3387 = vsub.f32 %v3293, %v3357
  %v3388 = vsub.f32 %v3298, %v3360
  %v3389 = vsub.f32 %v3303, %v3363
  %v3390 = vsub.f32 %v3308, %v3366
  %v3391 = vsub.f32 %v3313, %v3369
  %v3392 = vsub.f32 %v3318, %v3372
  %v3393 = vsub.f32 %v3323, %v3375
  %v3394 = vsub.f32 %v3328, %v3378
  %v3395 = vmul.f32 %v3379, 1.442695
  %v3396 = vpow.pop %v3395
  %v3397 = vmul.f32 %v3380, 1.442695
  %v3398 = vpow.pop %v3397
  %v3399 = vmul.f32 %v3381, 1.442695
  %v3400 = vpow.pop %v3399
  %v3401 = vmul.f32 %v3382, 1.442695
  %v3402 = vpow.pop %v3401
  %v3403 = vmul.f32 %v3383, 1.442695
  %v3404 = vpow.pop %v3403
  %v3405 = vmul.f32 %v3384, 1.442695
  %v3406 = vpow.pop %v3405
  %v3407 = vmul.f32 %v3385, 1.442695
  %v3408 = vpow.pop %v3407
  %v3409 = vmul.f32 %v3386, 1.442695
  %v3410 = vpow.pop %v3409
  %v3411 = vmul.f32 %v3387, 1.442695
  %v3412 = vpow.pop %v3411
  %v3413 = vmul.f32 %v3388, 1.442695
  %v3414 = vpow.pop %v3413
  %v3415 = vmul.f32 %v3389, 1.442695
  %v3416 = vpow.pop %v3415
  %v3417 = vmul.f32 %v3390, 1.442695
  %v3418 = vpow.pop %v3417
  %v3419 = vmul.f32 %v3391, 1.442695
  %v3420 = vpow.pop %v3419
  %v3421 = vmul.f32 %v3392, 1.442695
  %v3422 = vpow.pop %v3421
  %v3423 = vmul.f32 %v3393, 1.442695
  %v3424 = vpow.pop %v3423
  %v3425 = vmul.f32 %v3394, 1.442695
  %v3426 = vpow.pop %v3425
  %v3427 = vsel %vm31, %v3396, 0.0
  %3428 = vadd.xlane.f32.xlu0 %v3427
  %v3429 = vpop.xlane.xlu0 %3428
  %v3430 = vsel %vm31, %v3398, 0.0
  %3431 = vadd.xlane.f32.xlu0 %v3430
  %v3432 = vpop.xlane.xlu0 %3431
  %v3433 = vsel %vm31, %v3400, 0.0
  %3434 = vadd.xlane.f32.xlu0 %v3433
  %v3435 = vpop.xlane.xlu0 %3434
  %v3436 = vsel %vm31, %v3402, 0.0
  %3437 = vadd.xlane.f32.xlu0 %v3436
  %v3438 = vpop.xlane.xlu0 %3437
  %v3439 = vsel %vm31, %v3404, 0.0
  %3440 = vadd.xlane.f32.xlu0 %v3439
  %v3441 = vpop.xlane.xlu0 %3440
  %v3442 = vsel %vm31, %v3406, 0.0
  %3443 = vadd.xlane.f32.xlu0 %v3442
  %v3444 = vpop.xlane.xlu0 %3443
  %v3445 = vsel %vm31, %v3408, 0.0
  %3446 = vadd.xlane.f32.xlu0 %v3445
  %v3447 = vpop.xlane.xlu0 %3446
  %v3448 = vsel %vm31, %v3410, 0.0
  %3449 = vadd.xlane.f32.xlu0 %v3448
  %v3450 = vpop.xlane.xlu0 %3449
  %v3451 = vsel %vm31, %v3412, 0.0
  %3452 = vadd.xlane.f32.xlu0 %v3451
  %v3453 = vpop.xlane.xlu0 %3452
  %v3454 = vsel %vm31, %v3414, 0.0
  %3455 = vadd.xlane.f32.xlu0 %v3454
  %v3456 = vpop.xlane.xlu0 %3455
  %v3457 = vsel %vm31, %v3416, 0.0
  %3458 = vadd.xlane.f32.xlu0 %v3457
  %v3459 = vpop.xlane.xlu0 %3458
  %v3460 = vsel %vm31, %v3418, 0.0
  %3461 = vadd.xlane.f32.xlu0 %v3460
  %v3462 = vpop.xlane.xlu0 %3461
  %v3463 = vsel %vm31, %v3420, 0.0
  %3464 = vadd.xlane.f32.xlu0 %v3463
  %v3465 = vpop.xlane.xlu0 %3464
  %v3466 = vsel %vm31, %v3422, 0.0
  %3467 = vadd.xlane.f32.xlu0 %v3466
  %v3468 = vpop.xlane.xlu0 %3467
  %v3469 = vsel %vm31, %v3424, 0.0
  %3470 = vadd.xlane.f32.xlu0 %v3469
  %v3471 = vpop.xlane.xlu0 %3470
  %v3472 = vsel %vm31, %v3426, 0.0
  %3473 = vadd.xlane.f32.xlu0 %v3472
  %v3474 = vpop.xlane.xlu0 %3473
  %3475 = vrot.lane.b32.xlu0 %v586, 64
  %v3476 = vpop.permute.xlu0 %3475
  %v3477 = vsel %vm31, %v3476, 0
  %v3480 = vsel %vm31, %v3396, 0
  %v3483 = vsel %vm31, %v3398, 0
  %v3486 = vsel %vm31, %v3400, 0
  %v3489 = vsel %vm31, %v3402, 0
  %v3492 = vsel %vm31, %v3404, 0
  %v3495 = vsel %vm31, %v3406, 0
  %v3498 = vsel %vm31, %v3408, 0
  %v3501 = vsel %vm31, %v3410, 0
  %3503 = vmatprep.subr.mxu0 0.0
  %3504 = vmatpush1.xpose.msra.mxu0 %v3480
  %3505 = vmatprep.subr.mxu0 0.0
  %3506 = vmatpush1.xpose.msra.mxu0 %v3483
  %3507 = vmatprep.subr.mxu0 0.0
  %3508 = vmatpush1.xpose.msra.mxu0 %v3486
  %3509 = vmatprep.subr.mxu0 0.0
  %3510 = vmatpush1.xpose.msra.mxu0 %v3489
  %3511 = vmatprep.subr.mxu0 0.0
  %3512 = vmatpush1.xpose.msra.mxu0 %v3492
  %3513 = vmatprep.subr.mxu0 0.0
  %3514 = vmatpush1.xpose.msra.mxu0 %v3495
  %3515 = vmatprep.subr.mxu0 0.0
  %3516 = vmatpush1.xpose.msra.mxu0 %v3498
  %3517 = vmatprep.subr.mxu0 0.0
  %3518 = vmatpush1.xpose.msra.mxu0 %v3501
  %3519 = vmatprep.subr.mxu0 0.0
  %3520 = vmatpush1.xpose.msra.mxu0 0.0
  %3521 = vmatprep.subr.mxu0 0.0
  %3522 = vmatpush1.xpose.msra.mxu0 0.0
  %3523 = vmatprep.subr.mxu0 0.0
  %3524 = vmatpush1.xpose.msra.mxu0 0.0
  %3525 = vmatprep.subr.mxu0 0.0
  %3526 = vmatpush1.xpose.msra.mxu0 0.0
  %3527 = vmatprep.subr.mxu0 0.0
  %3528 = vmatpush1.xpose.msra.mxu0 0.0
  %3529 = vmatprep.subr.mxu0 0.0
  %3530 = vmatpush1.xpose.msra.mxu0 0.0
  %3531 = vmatprep.subr.mxu0 0.0
  %3532 = vmatpush1.xpose.msra.mxu0 0.0
  %3533 = vmatprep.subr.mxu0 0.0
  %3534 = vmatpush1.xpose.msra.mxu0 0.0
  %3535 = vmatprep.subr.mxu0 0.0
  %3536 = vmatpush1.xpose.msra.mxu0 0.0
  %3537 = vmatprep.subr.mxu0 0.0
  %3538 = vmatpush1.xpose.msra.mxu0 0.0
  %3539 = vmatprep.subr.mxu0 0.0
  %3540 = vmatpush1.xpose.msra.mxu0 0.0
  %3541 = vmatprep.subr.mxu0 0.0
  %3542 = vmatpush1.xpose.msra.mxu0 0.0
  %3543 = vmatprep.subr.mxu0 0.0
  %3544 = vmatpush1.xpose.msra.mxu0 0.0
  %3545 = vmatprep.subr.mxu0 0.0
  %3546 = vmatpush1.xpose.msra.mxu0 0.0
  %3547 = vmatprep.subr.mxu0 0.0
  %3548 = vmatpush1.xpose.msra.mxu0 0.0
  %3549 = vmatprep.subr.mxu0 0.0
  %3550 = vmatpush1.xpose.msra.mxu0 0.0
  %3551 = vmatprep.subr.mxu0 0.0
  %3552 = vmatpush1.xpose.msra.mxu0 0.0
  %3553 = vmatprep.subr.mxu0 0.0
  %3554 = vmatpush1.xpose.msra.mxu0 0.0
  %3555 = vmatprep.subr.mxu0 0.0
  %3556 = vmatpush1.xpose.msra.mxu0 0.0
  %3557 = vmatprep.subr.mxu0 0.0
  %3558 = vmatpush1.xpose.msra.mxu0 0.0
  %3559 = vmatprep.subr.mxu0 0.0
  %3560 = vmatpush1.xpose.msra.mxu0 0.0
  %3561 = vmatprep.subr.mxu0 0.0
  %3562 = vmatpush1.xpose.msra.mxu0 0.0
  %3563 = vmatprep.subr.mxu0 0.0
  %3564 = vmatpush1.xpose.msra.mxu0 0.0
  %3565 = vmatprep.subr.mxu0 0.0
  %3566 = vmatpush1.xpose.msra.mxu0 0.0
  %3567 = vmatprep.mubr.f32.mxu0 0.0
  %3568 = vmatmul.mubr.f32.gmra.mrb[0].mxu0 %v3477
  %v3569 = vpop.f32.mrb[0].mxu0
  %v3570 = vadd.f32 0.0, %v3569
  %v3571 = vpop.f32.mrb[0].mxu0
  %3572 = vdwg.mxu0
  %3573 = vrot.lane.b32.xlu0 %v591, 64
  %v3574 = vpop.permute.xlu0 %3573
  %v3575 = vsel %vm31, %v3574, 0
  %v3578 = vsel %vm31, %v3412, 0
  %v3581 = vsel %vm31, %v3414, 0
  %v3584 = vsel %vm31, %v3416, 0
  %v3587 = vsel %vm31, %v3418, 0
  %v3590 = vsel %vm31, %v3420, 0
  %v3593 = vsel %vm31, %v3422, 0
  %v3596 = vsel %vm31, %v3424, 0
  %v3599 = vsel %vm31, %v3426, 0
  %3601 = vmatprep.subr.mxu0 0.0
  %3602 = vmatpush1.xpose.msra.mxu0 %v3578
  %3603 = vmatprep.subr.mxu0 0.0
  %3604 = vmatpush1.xpose.msra.mxu0 %v3581
  %3605 = vmatprep.subr.mxu0 0.0
  %3606 = vmatpush1.xpose.msra.mxu0 %v3584
  %3607 = vmatprep.subr.mxu0 0.0
  %3608 = vmatpush1.xpose.msra.mxu0 %v3587
  %3609 = vmatprep.subr.mxu0 0.0
  %3610 = vmatpush1.xpose.msra.mxu0 %v3590
  %3611 = vmatprep.subr.mxu0 0.0
  %3612 = vmatpush1.xpose.msra.mxu0 %v3593
  %3613 = vmatprep.subr.mxu0 0.0
  %3614 = vmatpush1.xpose.msra.mxu0 %v3596
  %3615 = vmatprep.subr.mxu0 0.0
  %3616 = vmatpush1.xpose.msra.mxu0 %v3599
  %3617 = vmatprep.subr.mxu0 0.0
  %3618 = vmatpush1.xpose.msra.mxu0 0.0
  %3619 = vmatprep.subr.mxu0 0.0
  %3620 = vmatpush1.xpose.msra.mxu0 0.0
  %3621 = vmatprep.subr.mxu0 0.0
  %3622 = vmatpush1.xpose.msra.mxu0 0.0
  %3623 = vmatprep.subr.mxu0 0.0
  %3624 = vmatpush1.xpose.msra.mxu0 0.0
  %3625 = vmatprep.subr.mxu0 0.0
  %3626 = vmatpush1.xpose.msra.mxu0 0.0
  %3627 = vmatprep.subr.mxu0 0.0
  %3628 = vmatpush1.xpose.msra.mxu0 0.0
  %3629 = vmatprep.subr.mxu0 0.0
  %3630 = vmatpush1.xpose.msra.mxu0 0.0
  %3631 = vmatprep.subr.mxu0 0.0
  %3632 = vmatpush1.xpose.msra.mxu0 0.0
  %3633 = vmatprep.subr.mxu0 0.0
  %3634 = vmatpush1.xpose.msra.mxu0 0.0
  %3635 = vmatprep.subr.mxu0 0.0
  %3636 = vmatpush1.xpose.msra.mxu0 0.0
  %3637 = vmatprep.subr.mxu0 0.0
  %3638 = vmatpush1.xpose.msra.mxu0 0.0
  %3639 = vmatprep.subr.mxu0 0.0
  %3640 = vmatpush1.xpose.msra.mxu0 0.0
  %3641 = vmatprep.subr.mxu0 0.0
  %3642 = vmatpush1.xpose.msra.mxu0 0.0
  %3643 = vmatprep.subr.mxu0 0.0
  %3644 = vmatpush1.xpose.msra.mxu0 0.0
  %3645 = vmatprep.subr.mxu0 0.0
  %3646 = vmatpush1.xpose.msra.mxu0 0.0
  %3647 = vmatprep.subr.mxu0 0.0
  %3648 = vmatpush1.xpose.msra.mxu0 0.0
  %3649 = vmatprep.subr.mxu0 0.0
  %3650 = vmatpush1.xpose.msra.mxu0 0.0
  %3651 = vmatprep.subr.mxu0 0.0
  %3652 = vmatpush1.xpose.msra.mxu0 0.0
  %3653 = vmatprep.subr.mxu0 0.0
  %3654 = vmatpush1.xpose.msra.mxu0 0.0
  %3655 = vmatprep.subr.mxu0 0.0
  %3656 = vmatpush1.xpose.msra.mxu0 0.0
  %3657 = vmatprep.subr.mxu0 0.0
  %3658 = vmatpush1.xpose.msra.mxu0 0.0
  %3659 = vmatprep.subr.mxu0 0.0
  %3660 = vmatpush1.xpose.msra.mxu0 0.0
  %3661 = vmatprep.subr.mxu0 0.0
  %3662 = vmatpush1.xpose.msra.mxu0 0.0
  %3663 = vmatprep.subr.mxu0 0.0
  %3664 = vmatpush1.xpose.msra.mxu0 0.0
  %3665 = vmatprep.mubr.f32.mxu0 0.0
  %3666 = vmatmul.mubr.f32.gmra.mrb[0].mxu0 %v3575
  %v3667 = vpop.f32.mrb[0].mxu0
  %v3668 = vadd.f32 0.0, %v3667
  %v3669 = vpop.f32.mrb[0].mxu0
  %3670 = vdwg.mxu0
  %v3671 = vrcp.pop %v3429
  %v3672 = vrcp.pop %v3432
  %v3673 = vrcp.pop %v3435
  %v3674 = vrcp.pop %v3438
  %v3675 = vrcp.pop %v3441
  %v3676 = vrcp.pop %v3444
  %v3677 = vrcp.pop %v3447
  %v3678 = vrcp.pop %v3450
  %v3679 = vrcp.pop %v3453
  %v3680 = vrcp.pop %v3456
  %v3681 = vrcp.pop %v3459
  %v3682 = vrcp.pop %v3462
  %v3683 = vrcp.pop %v3465
  %v3684 = vrcp.pop %v3468
  %v3685 = vrcp.pop %v3471
  %v3686 = vrcp.pop %v3474
  %v3703 = vlaneseq
  %v3704 = vshrl.u32 %v3703, 7
  %v3705 = vsub.s32 %v1288, %v3704
  %v3706 = vrot.slane %v3671, %v3705
  %v3707 = vlaneseq
  %v3708 = vshrl.u32 %v3707, 7
  %v3709 = vsub.s32 %v1293, %v3708
  %v3710 = vrot.slane %v3672, %v3709
  %v3711 = vsel %vm1298, %v3710, %v3706
  %v3712 = vlaneseq
  %v3713 = vshrl.u32 %v3712, 7
  %v3714 = vsub.s32 %v1300, %v3713
  %v3715 = vrot.slane %v3673, %v3714
  %v3716 = vsel %vm1305, %v3715, %v3711
  %v3717 = vlaneseq
  %v3718 = vshrl.u32 %v3717, 7
  %v3719 = vsub.s32 %v1307, %v3718
  %v3720 = vrot.slane %v3674, %v3719
  %v3721 = vsel %vm1312, %v3720, %v3716
  %v3722 = vlaneseq
  %v3723 = vshrl.u32 %v3722, 7
  %v3724 = vsub.s32 %v1314, %v3723
  %v3725 = vrot.slane %v3675, %v3724
  %v3726 = vsel %vm1319, %v3725, %v3721
  %v3727 = vlaneseq
  %v3728 = vshrl.u32 %v3727, 7
  %v3729 = vsub.s32 %v1321, %v3728
  %v3730 = vrot.slane %v3676, %v3729
  %v3731 = vsel %vm1326, %v3730, %v3726
  %v3732 = vlaneseq
  %v3733 = vshrl.u32 %v3732, 7
  %v3734 = vsub.s32 %v1328, %v3733
  %v3735 = vrot.slane %v3677, %v3734
  %v3736 = vsel %vm1333, %v3735, %v3731
  %v3737 = vlaneseq
  %v3738 = vshrl.u32 %v3737, 7
  %v3739 = vsub.s32 %v1335, %v3738
  %v3740 = vrot.slane %v3678, %v3739
  %v3741 = vsel %vm1340, %v3740, %v3736
  %v3742 = vlaneseq
  %v3743 = vshrl.u32 %v3742, 7
  %v3744 = vsub.s32 %v1288, %v3743
  %v3745 = vrot.slane %v3679, %v3744
  %v3746 = vlaneseq
  %v3747 = vshrl.u32 %v3746, 7
  %v3748 = vsub.s32 %v1293, %v3747
  %v3749 = vrot.slane %v3680, %v3748
  %v3750 = vsel %vm1298, %v3749, %v3745
  %v3751 = vlaneseq
  %v3752 = vshrl.u32 %v3751, 7
  %v3753 = vsub.s32 %v1300, %v3752
  %v3754 = vrot.slane %v3681, %v3753
  %v3755 = vsel %vm1305, %v3754, %v3750
  %v3756 = vlaneseq
  %v3757 = vshrl.u32 %v3756, 7
  %v3758 = vsub.s32 %v1307, %v3757
  %v3759 = vrot.slane %v3682, %v3758
  %v3760 = vsel %vm1312, %v3759, %v3755
  %v3761 = vlaneseq
  %v3762 = vshrl.u32 %v3761, 7
  %v3763 = vsub.s32 %v1314, %v3762
  %v3764 = vrot.slane %v3683, %v3763
  %v3765 = vsel %vm1319, %v3764, %v3760
  %v3766 = vlaneseq
  %v3767 = vshrl.u32 %v3766, 7
  %v3768 = vsub.s32 %v1321, %v3767
  %v3769 = vrot.slane %v3684, %v3768
  %v3770 = vsel %vm1326, %v3769, %v3765
  %v3771 = vlaneseq
  %v3772 = vshrl.u32 %v3771, 7
  %v3773 = vsub.s32 %v1328, %v3772
  %v3774 = vrot.slane %v3685, %v3773
  %v3775 = vsel %vm1333, %v3774, %v3770
  %v3776 = vlaneseq
  %v3777 = vshrl.u32 %v3776, 7
  %v3778 = vsub.s32 %v1335, %v3777
  %v3779 = vrot.slane %v3686, %v3778
  %v3780 = vsel %vm1340, %v3779, %v3775
  %v3781 = vsel %vm1381, %v3741, %v3741
  %v3782 = vsel %vm1383, %v3741, %v3781
  %v3783 = vsel %vm1385, %v3741, %v3782
  %v3784 = vsel %vm1387, %v3741, %v3783
  %v3785 = vsel %vm1389, %v3741, %v3784
  %v3786 = vsel %vm1391, %v3741, %v3785
  %v3787 = vsel %vm1381, %v3780, %v3780
  %v3788 = vsel %vm1383, %v3780, %v3787
  %v3789 = vsel %vm1385, %v3780, %v3788
  %v3790 = vsel %vm1387, %v3780, %v3789
  %v3791 = vsel %vm1389, %v3780, %v3790
  %v3792 = vsel %vm1391, %v3780, %v3791
  %v3795 = vmul.f32 %v3570, %v3786
  %v3796 = vmul.f32 %v3668, %v3792
  %3801 = vrot.lane.b32.xlu0 %v2991, 64
  %v3802 = vpop.permute.xlu0 %3801
  %3803 = vrot.lane.b32.xlu0 %v2992, 64
  %v3804 = vpop.permute.xlu0 %3803
  %3805 = vrot.lane.b32.xlu0 %v3795, 64
  %v3806 = vpop.permute.xlu0 %3805
  %3807 = vrot.lane.b32.xlu0 %v3796, 64
  %v3808 = vpop.permute.xlu0 %3807
  %v3813 = vsel %vm31, %v1401, %v3802
  %v3814 = vsel %vm31, %v1402, %v3804
  %v3815 = vsel %vm31, %v2187, %v3806
  %v3816 = vsel %vm31, %v2188, %v3808
  %v3817 = vld [vmem:[%s3] sm:$0xff]
  %v3818 = vld [vmem:[%s3 + $0x8] sm:$0xff]
  %v3819 = vld [vmem:[%s3 + $0x10] sm:$0xff]
  %v3820 = vld [vmem:[%s3 + $0x18] sm:$0xff]
  %v3821 = vld [vmem:[%s4] sm:$0xff]
  %v3822 = vld [vmem:[%s4 + $0x8] sm:$0xff]
  %v3823 = vld [vmem:[%s4 + $0x10] sm:$0xff]
  %v3824 = vld [vmem:[%s4 + $0x18] sm:$0xff]
  %3826 = vset.pattern.permute.xlu0 0
  %3827 = vperm.xlu0 %3826, %v3821
  %v3828 = vpop.permute.xlu0 %3827
  %3831 = vset.pattern.permute.xlu0 0
  %3832 = vperm.xlu0 %3831, %v3822
  %v3833 = vpop.permute.xlu0 %3832
  %3836 = vset.pattern.permute.xlu0 0
  %3837 = vperm.xlu0 %3836, %v3823
  %v3838 = vpop.permute.xlu0 %3837
  %3841 = vset.pattern.permute.xlu0 0
  %3842 = vperm.xlu0 %3841, %v3824
  %v3843 = vpop.permute.xlu0 %3842
  %v3846 = vsel %vm107, %v3817, 0
  %v3849 = vsel %vm107, %v3818, 0
  %v3852 = vsel %vm107, %v3819, 0
  %v3855 = vsel %vm107, %v3820, 0
  %3857 = vmatprep.subr.mxu0 0.0
  %3858 = vmatpush1.msra.mxu0 %v3813
  %3859 = vmatprep.subr.mxu0 0.0
  %3860 = vmatpush1.msra.mxu0 %v3814
  %3861 = vmatprep.subr.mxu0 0.0
  %3862 = vmatpush1.msra.mxu0 %v3815
  %3863 = vmatprep.subr.mxu0 0.0
  %3864 = vmatpush1.msra.mxu0 %v3816
  %3865 = vmatprep.subr.mxu0 0.0
  %3866 = vmatpush1.msra.mxu0 0.0
  %3867 = vmatprep.subr.mxu0 0.0
  %3868 = vmatpush1.msra.mxu0 0.0
  %3869 = vmatprep.subr.mxu0 0.0
  %3870 = vmatpush1.msra.mxu0 0.0
  %3871 = vmatprep.subr.mxu0 0.0
  %3872 = vmatpush1.msra.mxu0 0.0
  %3873 = vmatprep.subr.mxu0 0.0
  %3874 = vmatpush1.msra.mxu0 0.0
  %3875 = vmatprep.subr.mxu0 0.0
  %3876 = vmatpush1.msra.mxu0 0.0
  %3877 = vmatprep.subr.mxu0 0.0
  %3878 = vmatpush1.msra.mxu0 0.0
  %3879 = vmatprep.subr.mxu0 0.0
  %3880 = vmatpush1.msra.mxu0 0.0
  %3881 = vmatprep.subr.mxu0 0.0
  %3882 = vmatpush1.msra.mxu0 0.0
  %3883 = vmatprep.subr.mxu0 0.0
  %3884 = vmatpush1.msra.mxu0 0.0
  %3885 = vmatprep.subr.mxu0 0.0
  %3886 = vmatpush1.msra.mxu0 0.0
  %3887 = vmatprep.subr.mxu0 0.0
  %3888 = vmatpush1.msra.mxu0 0.0
  %3889 = vmatprep.subr.mxu0 0.0
  %3890 = vmatpush1.msra.mxu0 0.0
  %3891 = vmatprep.subr.mxu0 0.0
  %3892 = vmatpush1.msra.mxu0 0.0
  %3893 = vmatprep.subr.mxu0 0.0
  %3894 = vmatpush1.msra.mxu0 0.0
  %3895 = vmatprep.subr.mxu0 0.0
  %3896 = vmatpush1.msra.mxu0 0.0
  %3897 = vmatprep.subr.mxu0 0.0
  %3898 = vmatpush1.msra.mxu0 0.0
  %3899 = vmatprep.subr.mxu0 0.0
  %3900 = vmatpush1.msra.mxu0 0.0
  %3901 = vmatprep.subr.mxu0 0.0
  %3902 = vmatpush1.msra.mxu0 0.0
  %3903 = vmatprep.subr.mxu0 0.0
  %3904 = vmatpush1.msra.mxu0 0.0
  %3905 = vmatprep.subr.mxu0 0.0
  %3906 = vmatpush1.msra.mxu0 0.0
  %3907 = vmatprep.subr.mxu0 0.0
  %3908 = vmatpush1.msra.mxu0 0.0
  %3909 = vmatprep.subr.mxu0 0.0
  %3910 = vmatpush1.msra.mxu0 0.0
  %3911 = vmatprep.subr.mxu0 0.0
  %3912 = vmatpush1.msra.mxu0 0.0
  %3913 = vmatprep.subr.mxu0 0.0
  %3914 = vmatpush1.msra.mxu0 0.0
  %3915 = vmatprep.subr.mxu0 0.0
  %3916 = vmatpush1.msra.mxu0 0.0
  %3917 = vmatprep.subr.mxu0 0.0
  %3918 = vmatpush1.msra.mxu0 0.0
  %3919 = vmatprep.subr.mxu0 0.0
  %3920 = vmatpush1.msra.mxu0 0.0
  %3921 = vmatprep.mubr.f32.mxu0 0.0
  %3922 = vmatmul.mubr.f32.gmra.mrb[0].mxu0 %v3846
  %v3923 = vpop.f32.mrb[0].mxu0
  %v3924 = vadd.f32 %v3828, %v3923
  %v3925 = vpop.f32.mrb[0].mxu0
  %3926 = vmatprep.mubr.f32.mxu0 0.0
  %3927 = vmatmul.mubr.f32.gmra.mrb[0].mxu0 %v3849
  %v3928 = vpop.f32.mrb[0].mxu0
  %v3929 = vadd.f32 %v3833, %v3928
  %v3930 = vpop.f32.mrb[0].mxu0
  %3931 = vmatprep.mubr.f32.mxu0 0.0
  %3932 = vmatmul.mubr.f32.gmra.mrb[0].mxu0 %v3852
  %v3933 = vpop.f32.mrb[0].mxu0
  %v3934 = vadd.f32 %v3838, %v3933
  %v3935 = vpop.f32.mrb[0].mxu0
  %3936 = vmatprep.mubr.f32.mxu0 0.0
  %3937 = vmatmul.mubr.f32.gmra.mrb[0].mxu0 %v3855
  %v3938 = vpop.f32.mrb[0].mxu0
  %v3939 = vadd.f32 %v3843, %v3938
  %v3940 = vpop.f32.mrb[0].mxu0
  %3941 = vdwg.mxu0
  %3946 = vrot.lane.b32.xlu0 %v27, 64
  %v3947 = vpop.permute.xlu0 %3946
  %3948 = vrot.lane.b32.xlu0 %v28, 64
  %v3949 = vpop.permute.xlu0 %3948
  %3950 = vrot.lane.b32.xlu0 %v29, 64
  %v3951 = vpop.permute.xlu0 %3950
  %3952 = vrot.lane.b32.xlu0 %v30, 64
  %v3953 = vpop.permute.xlu0 %3952
  %v3958 = vsel %vm31, %v23, %v3947
  %v3959 = vsel %vm31, %v24, %v3949
  %v3960 = vsel %vm31, %v25, %v3951
  %v3961 = vsel %vm31, %v26, %v3953
  %v3962 = vadd.f32 %v3924, %v3958
  %v3963 = vadd.f32 %v3929, %v3959
  %v3964 = vadd.f32 %v3934, %v3960
  %v3965 = vadd.f32 %v3939, %v3961
  %3966 = vst.msk [vmem:[%s6] sm:$0xff] %vm31, %v3962
  %3967 = vst.msk [vmem:[%s6 + $0x8] sm:$0xff] %vm31, %v3963
  %3968 = vst.msk [vmem:[%s6 + $0x10] sm:$0xff] %vm31, %v3964
  %3969 = vst.msk [vmem:[%s6 + $0x18] sm:$0xff] %vm31, %v3965
  %3974 = vrot.lane.b32.xlu0 %v3962, 64
  %v3975 = vpop.permute.xlu0 %3974
  %3976 = vrot.lane.b32.xlu0 %v3963, 64
  %v3977 = vpop.permute.xlu0 %3976
  %3978 = vrot.lane.b32.xlu0 %v3964, 64
  %v3979 = vpop.permute.xlu0 %3978
  %3980 = vrot.lane.b32.xlu0 %v3965, 64
  %v3981 = vpop.permute.xlu0 %3980
  %s3986 = scalar_lea.vmem %s6, 32
  %3987 = vst.msk [vmem:[%s3986] sm:$0xff] %vm31, %v3975
  %3988 = vst.msk [vmem:[%s3986 + $0x8] sm:$0xff] %vm31, %v3977
  %3989 = vst.msk [vmem:[%s3986 + $0x10] sm:$0xff] %vm31, %v3979
  %3990 = vst.msk [vmem:[%s3986 + $0x18] sm:$0xff] %vm31, %v3981
  // Predicated region
  $region26: #{attention_block.1} parent=0 // pred_check
    _
  $region27: #{attention_block.1} parent=0 // pred_check_branch
    %3992 = sbr.rel (0) target = $region29
  $region28: #{attention_block.1} parent=0 // pred_region
    _
  $region29: #{attention_block.1} parent=0 // pred_fallthru
    _
  // Predicated region
  $region30: #{attention_block.1} parent=0 // pred_check
    _
  $region31: #{attention_block.1} parent=0 // pred_check_branch
    %3994 = sbr.rel (0) target = $region33
  $region32: #{attention_block.1} parent=0 // pred_region
    _
  $region33: #{attention_block.1} parent=0 // pred_fallthru
    _

</llo_original>
